<compile_context>
chip_gen: v5e
topology: v5e:2x2
jax: 0.10.0
libtpu: 0.0.40
codegen_flags: <defaults>
</compile_context>

<pallas_src>
import jax
import jax.numpy as jnp
from jax import lax
from jax.experimental import pallas as pl
from jax.experimental.pallas import tpu as pltpu


# ----------------------------------------------------------------------------
# Fused kernel: conv3x3 + ReLU -> conv3x3 + ReLU for one image (NHWC in VMEM)
# ----------------------------------------------------------------------------
def _block_kernel(x_ref, w1_ref, b1_ref, w2_ref, b2_ref, o_ref):
    """x_ref : (1, H, W, Cin)      VMEM (NHWC)
       w1_ref: (9*Cin, C1)         VMEM (tap-major im2col weight layout)
       b1_ref: (1, C1)             VMEM
       w2_ref: (9*C1, C2)          VMEM
       b2_ref: (1, C2)             VMEM
       o_ref : (1, C2, Ho2*Wo2)    VMEM (channel-major == NCHW with H,W flattened)
    """
    _, H, W, Cin = x_ref.shape
    C1 = w1_ref.shape[1]
    Ho1, Wo1 = H - 2, W - 2
    Ho2, Wo2 = Ho1 - 2, Wo1 - 2

    x = x_ref[0]                                          # (H, W, Cin)

    # ---- conv1 + ReLU: one (Ho1*Wo1, 9*Cin) @ (9*Cin, C1) MXU matmul ----
    p1 = jnp.concatenate(
        [x[ky:ky + Ho1, kx:kx + Wo1, :] for ky in range(3) for kx in range(3)],
        axis=-1)                                          # (Ho1, Wo1, 9*Cin)
    p1 = p1.reshape(Ho1 * Wo1, 9 * Cin)                   # in-VMEM im2col
    y1 = jnp.dot(p1, w1_ref[...], preferred_element_type=jnp.float32)
    y1 = jnp.maximum(y1 + b1_ref[...], 0.0)               # bias added once
    y1 = y1.reshape(Ho1, Wo1, C1)                         # stays in VMEM

    # ---- conv2 + ReLU: one (Ho2*Wo2, 9*C1) @ (9*C1, C2) MXU matmul ----
    p2 = jnp.concatenate(
        [y1[ky:ky + Ho2, kx:kx + Wo2, :] for ky in range(3) for kx in range(3)],
        axis=-1)                                          # (Ho2, Wo2, 9*C1)
    p2 = p2.reshape(Ho2 * Wo2, 9 * C1)
    y2 = jnp.dot(p2, w2_ref[...], preferred_element_type=jnp.float32)
    y2 = jnp.maximum(y2 + b2_ref[...], 0.0)               # (Ho2*Wo2, C2)

    # Single lane-dense store per grid step: (C2, Ho2*Wo2), last dim >= 128.
    o_ref[0] = y2.T.astype(o_ref.dtype)


# ----------------------------------------------------------------------------
# Wrapper: layout plumbing + pallas_call
# ----------------------------------------------------------------------------
def block_forward(x_nchw, w1, b1, w2, b2):
    """x_nchw: (N, Cin, H, W); w1: (C1, Cin, 3, 3); w2: (C2, C1, 3, 3) (PyTorch OIHW).
    Returns relu(conv2(relu(conv1(x)))) in NCHW: (N, C2, H-4, W-4)."""
    N, Cin, H, W = x_nchw.shape
    C1 = w1.shape[0]
    C2 = w2.shape[0]
    Ho2, Wo2 = H - 4, W - 4

    x = jnp.transpose(x_nchw, (0, 2, 3, 1))               # NCHW -> NHWC (only glue transpose)
    # OIHW -> (ky, kx, Cin, Cout) -> (9*Cin, Cout): matches the tap-major im2col.
    w1k = jnp.transpose(w1, (2, 3, 1, 0)).reshape(9 * Cin, C1)
    w2k = jnp.transpose(w2, (2, 3, 1, 0)).reshape(9 * C1, C2)
    b1k = b1.reshape(1, C1)
    b2k = b2.reshape(1, C2)

    out = pl.pallas_call(
        _block_kernel,
        out_shape=jax.ShapeDtypeStruct((N, C2, Ho2 * Wo2), x_nchw.dtype),
        grid=(N,),
        in_specs=[
            pl.BlockSpec((1, H, W, Cin), lambda n: (n, 0, 0, 0)),
            pl.BlockSpec((9 * Cin, C1), lambda n: (0, 0)),
            pl.BlockSpec((1, C1), lambda n: (0, 0)),
            pl.BlockSpec((9 * C1, C2), lambda n: (0, 0)),
            pl.BlockSpec((1, C2), lambda n: (0, 0)),
        ],
        out_specs=pl.BlockSpec((1, C2, Ho2 * Wo2), lambda n: (n, 0, 0)),
        compiler_params=pltpu.CompilerParams(dimension_semantics=("parallel",)),
    )(x, w1k, b1k, w2k, b2k)

    return out.reshape(N, C2, Ho2, Wo2)                   # free reshape: already NCHW order


# ----------------------------------------------------------------------------
# Pure-JAX reference (correctness check only)
# ----------------------------------------------------------------------------
def _ref_block(x_nchw, w1, b1, w2, b2):
    def conv_relu(x, w, b):
        y = lax.conv_general_dilated(x, w, (1, 1), "VALID",
                                     dimension_numbers=("NCHW", "OIHW", "NCHW"))
        return jnp.maximum(y + b.reshape(1, -1, 1, 1), 0.0)
    return conv_relu(conv_relu(x_nchw, w1, b1), w2, b2)


# ----------------------------------------------------------------------------
if __name__ == "__main__":
    key = jax.random.PRNGKey(0)
    kx, k1, k2, k3, k4 = jax.random.split(key, 5)

    # Small shapes consistent with Block(in_ch=4, out_ch=8): N=2, C=4, H=W=16.
    N, in_ch, out_ch, H, W = 2, 4, 8, 16, 16
    x = jax.random.normal(kx, (N, in_ch, H, W), jnp.float32)
    s1 = 1.0 / (in_ch * 9.0) ** 0.5
    s2 = 1.0 / (out_ch * 9.0) ** 0.5
    w1 = jax.random.normal(k1, (out_ch, in_ch, 3, 3), jnp.float32) * s1
    b1 = jax.random.normal(k2, (out_ch,), jnp.float32) * s1
    w2 = jax.random.normal(k3, (out_ch, out_ch, 3, 3), jnp.float32) * s2
    b2 = jax.random.normal(k4, (out_ch,), jnp.float32) * s2

    y = jax.jit(block_forward)(x, w1, b1, w2, b2)
    y = jax.block_until_ready(y)

    assert y.shape == (N, out_ch, H - 4, W - 4), y.shape
    y_ref = _ref_block(x, w1, b1, w2, b2)
    assert jnp.allclose(y, y_ref, rtol=1e-4, atol=1e-4), "mismatch vs reference"

    print("KERNEL_OK")
</pallas_src>

<mosaic_0001>
module attributes {stable_mosaic.version = 11 : i64} {
  func.func @_block_kernel(%arg0: i32, %arg1: memref<1x16x16x4xf32, #tpu.memory_space<vmem>>, %arg2: memref<36x8xf32, #tpu.memory_space<vmem>>, %arg3: memref<1x8xf32, #tpu.memory_space<vmem>>, %arg4: memref<72x8xf32, #tpu.memory_space<vmem>>, %arg5: memref<1x8xf32, #tpu.memory_space<vmem>>, %arg6: memref<1x8x144xf32, #tpu.memory_space<vmem>>) attributes {dimension_semantics = [#tpu.dimension_semantics<parallel>], iteration_bounds = array<i64: 2>, scalar_prefetch = 0 : i64, scratch_operands = 0 : i64, tpu.core_type = #tpu.core_type<tc>, window_params = [{transform_indices = @transform_0, window_bounds = array<i64: 1, 16, 16, 4>}, {pipeline_mode = #tpu.pipeline_mode<synchronous>, transform_indices = @transform_1, window_bounds = array<i64: 36, 8>}, {pipeline_mode = #tpu.pipeline_mode<synchronous>, transform_indices = @transform_2, window_bounds = array<i64: 1, 8>}, {pipeline_mode = #tpu.pipeline_mode<synchronous>, transform_indices = @transform_3, window_bounds = array<i64: 72, 8>}, {pipeline_mode = #tpu.pipeline_mode<synchronous>, transform_indices = @transform_4, window_bounds = array<i64: 1, 8>}, {transform_indices = @transform_5, window_bounds = array<i64: 1, 8, 144>}]} {
    %c0 = arith.constant 0 : index
    %c0_0 = arith.constant 0 : index
    %c0_1 = arith.constant 0 : index
    %c0_2 = arith.constant 0 : index
    %0 = vector.load %arg1[%c0, %c0_0, %c0_1, %c0_2] : memref<1x16x16x4xf32, #tpu.memory_space<vmem>>, vector<1x16x16x4xf32>
    %1 = vector.shape_cast %0 : vector<1x16x16x4xf32> to vector<16x16x4xf32>
    %2 = vector.extract_strided_slice %1 {offsets = [0, 0, 0], sizes = [14, 14, 4], strides = [1, 1, 1]} : vector<16x16x4xf32> to vector<14x14x4xf32>
    %3 = vector.extract_strided_slice %1 {offsets = [0, 1, 0], sizes = [14, 14, 4], strides = [1, 1, 1]} : vector<16x16x4xf32> to vector<14x14x4xf32>
    %4 = vector.extract_strided_slice %1 {offsets = [0, 2, 0], sizes = [14, 14, 4], strides = [1, 1, 1]} : vector<16x16x4xf32> to vector<14x14x4xf32>
    %5 = vector.extract_strided_slice %1 {offsets = [1, 0, 0], sizes = [14, 14, 4], strides = [1, 1, 1]} : vector<16x16x4xf32> to vector<14x14x4xf32>
    %6 = vector.extract_strided_slice %1 {offsets = [1, 1, 0], sizes = [14, 14, 4], strides = [1, 1, 1]} : vector<16x16x4xf32> to vector<14x14x4xf32>
    %7 = vector.extract_strided_slice %1 {offsets = [1, 2, 0], sizes = [14, 14, 4], strides = [1, 1, 1]} : vector<16x16x4xf32> to vector<14x14x4xf32>
    %8 = vector.extract_strided_slice %1 {offsets = [2, 0, 0], sizes = [14, 14, 4], strides = [1, 1, 1]} : vector<16x16x4xf32> to vector<14x14x4xf32>
    %9 = vector.extract_strided_slice %1 {offsets = [2, 1, 0], sizes = [14, 14, 4], strides = [1, 1, 1]} : vector<16x16x4xf32> to vector<14x14x4xf32>
    %10 = vector.extract_strided_slice %1 {offsets = [2, 2, 0], sizes = [14, 14, 4], strides = [1, 1, 1]} : vector<16x16x4xf32> to vector<14x14x4xf32>
    %11 = tpu.concatenate %2, %3, %4, %5, %6, %7, %8, %9, %10 in 2 : vector<14x14x4xf32>, vector<14x14x4xf32>, vector<14x14x4xf32>, vector<14x14x4xf32>, vector<14x14x4xf32>, vector<14x14x4xf32>, vector<14x14x4xf32>, vector<14x14x4xf32>, vector<14x14x4xf32> -> vector<14x14x36xf32>
    %12 = vector.shape_cast %11 : vector<14x14x36xf32> to vector<196x36xf32>
    %c0_3 = arith.constant 0 : index
    %c0_4 = arith.constant 0 : index
    %13 = vector.load %arg2[%c0_3, %c0_4] : memref<36x8xf32, #tpu.memory_space<vmem>>, vector<36x8xf32>
    %cst = arith.constant dense<0.000000e+00> : vector<196x8xf32>
    %14 = tpu.matmul %12, %13, %cst {dimension_numbers = #tpu.dot_dimension_numbers<[1], [0], [0], [1], [0, 0, 1, 1], [], []>} : vector<196x36xf32>, vector<36x8xf32>, vector<196x8xf32> -> vector<196x8xf32>
    %c0_5 = arith.constant 0 : index
    %c0_6 = arith.constant 0 : index
    %15 = vector.load %arg3[%c0_5, %c0_6] : memref<1x8xf32, #tpu.memory_space<vmem>>, vector<1x8xf32>
    %16 = vector.broadcast %15 : vector<1x8xf32> to vector<196x8xf32>
    %17 = arith.addf %14, %16 : vector<196x8xf32>
    %cst_7 = arith.constant 0.000000e+00 : f32
    %18 = vector.broadcast %cst_7 : f32 to vector<196x8xf32>
    %19 = arith.maximumf %17, %18 : vector<196x8xf32>
    %20 = vector.shape_cast %19 : vector<196x8xf32> to vector<14x14x8xf32>
    %21 = vector.extract_strided_slice %20 {offsets = [0, 0, 0], sizes = [12, 12, 8], strides = [1, 1, 1]} : vector<14x14x8xf32> to vector<12x12x8xf32>
    %22 = vector.extract_strided_slice %20 {offsets = [0, 1, 0], sizes = [12, 12, 8], strides = [1, 1, 1]} : vector<14x14x8xf32> to vector<12x12x8xf32>
    %23 = vector.extract_strided_slice %20 {offsets = [0, 2, 0], sizes = [12, 12, 8], strides = [1, 1, 1]} : vector<14x14x8xf32> to vector<12x12x8xf32>
    %24 = vector.extract_strided_slice %20 {offsets = [1, 0, 0], sizes = [12, 12, 8], strides = [1, 1, 1]} : vector<14x14x8xf32> to vector<12x12x8xf32>
    %25 = vector.extract_strided_slice %20 {offsets = [1, 1, 0], sizes = [12, 12, 8], strides = [1, 1, 1]} : vector<14x14x8xf32> to vector<12x12x8xf32>
    %26 = vector.extract_strided_slice %20 {offsets = [1, 2, 0], sizes = [12, 12, 8], strides = [1, 1, 1]} : vector<14x14x8xf32> to vector<12x12x8xf32>
    %27 = vector.extract_strided_slice %20 {offsets = [2, 0, 0], sizes = [12, 12, 8], strides = [1, 1, 1]} : vector<14x14x8xf32> to vector<12x12x8xf32>
    %28 = vector.extract_strided_slice %20 {offsets = [2, 1, 0], sizes = [12, 12, 8], strides = [1, 1, 1]} : vector<14x14x8xf32> to vector<12x12x8xf32>
    %29 = vector.extract_strided_slice %20 {offsets = [2, 2, 0], sizes = [12, 12, 8], strides = [1, 1, 1]} : vector<14x14x8xf32> to vector<12x12x8xf32>
    %30 = tpu.concatenate %21, %22, %23, %24, %25, %26, %27, %28, %29 in 2 : vector<12x12x8xf32>, vector<12x12x8xf32>, vector<12x12x8xf32>, vector<12x12x8xf32>, vector<12x12x8xf32>, vector<12x12x8xf32>, vector<12x12x8xf32>, vector<12x12x8xf32>, vector<12x12x8xf32> -> vector<12x12x72xf32>
    %31 = vector.shape_cast %30 : vector<12x12x72xf32> to vector<144x72xf32>
    %c0_8 = arith.constant 0 : index
    %c0_9 = arith.constant 0 : index
    %32 = vector.load %arg4[%c0_8, %c0_9] : memref<72x8xf32, #tpu.memory_space<vmem>>, vector<72x8xf32>
    %cst_10 = arith.constant dense<0.000000e+00> : vector<144x8xf32>
    %33 = tpu.matmul %31, %32, %cst_10 {dimension_numbers = #tpu.dot_dimension_numbers<[1], [0], [0], [1], [0, 0, 1, 1], [], []>} : vector<144x72xf32>, vector<72x8xf32>, vector<144x8xf32> -> vector<144x8xf32>
    %c0_11 = arith.constant 0 : index
    %c0_12 = arith.constant 0 : index
    %34 = vector.load %arg5[%c0_11, %c0_12] : memref<1x8xf32, #tpu.memory_space<vmem>>, vector<1x8xf32>
    %35 = vector.broadcast %34 : vector<1x8xf32> to vector<144x8xf32>
    %36 = arith.addf %33, %35 : vector<144x8xf32>
    %cst_13 = arith.constant 0.000000e+00 : f32
    %37 = vector.broadcast %cst_13 : f32 to vector<144x8xf32>
    %38 = arith.maximumf %36, %37 : vector<144x8xf32>
    %39 = tpu.transpose %38, [1, 0] : vector<144x8xf32> -> vector<8x144xf32>
    %c0_14 = arith.constant 0 : index
    %c0_15 = arith.constant 0 : index
    %c0_16 = arith.constant 0 : index
    %40 = vector.load %arg6[%c0_14, %c0_15, %c0_16] : memref<1x8x144xf32, #tpu.memory_space<vmem>>, vector<1x8x144xf32>
    %41 = vector.shape_cast %40 : vector<1x8x144xf32> to vector<8x144xf32>
    %42 = vector.shape_cast %39 : vector<8x144xf32> to vector<1x8x144xf32>
    tpu.vector_store %arg6[%c0_14, %c0_15, %c0_16], %42 {strides = array<i32>} : memref<1x8x144xf32, #tpu.memory_space<vmem>>, vector<1x8x144xf32>,
    return
  }
  func.func @transform_0(%arg0: i32) -> (i32, i32, i32, i32) {
    %c0_i32 = arith.constant 0 : i32
    %c0_i32_0 = arith.constant 0 : i32
    %c0_i32_1 = arith.constant 0 : i32
    %c0_i32_2 = arith.constant 0 : i32
    return %arg0, %c0_i32, %c0_i32_0, %c0_i32_1 : i32, i32, i32, i32
  }
  func.func @transform_1(%arg0: i32) -> (i32, i32) {
    %c0_i32 = arith.constant 0 : i32
    %c0_i32_0 = arith.constant 0 : i32
    %c0_i32_1 = arith.constant 0 : i32
    return %c0_i32, %c0_i32_0 : i32, i32
  }
  func.func @transform_2(%arg0: i32) -> (i32, i32) {
    %c0_i32 = arith.constant 0 : i32
    %c0_i32_0 = arith.constant 0 : i32
    %c0_i32_1 = arith.constant 0 : i32
    return %c0_i32, %c0_i32_0 : i32, i32
  }
  func.func @transform_3(%arg0: i32) -> (i32, i32) {
    %c0_i32 = arith.constant 0 : i32
    %c0_i32_0 = arith.constant 0 : i32
    %c0_i32_1 = arith.constant 0 : i32
    return %c0_i32, %c0_i32_0 : i32, i32
  }
  func.func @transform_4(%arg0: i32) -> (i32, i32) {
    %c0_i32 = arith.constant 0 : i32
    %c0_i32_0 = arith.constant 0 : i32
    %c0_i32_1 = arith.constant 0 : i32
    return %c0_i32, %c0_i32_0 : i32, i32
  }
  func.func @transform_5(%arg0: i32) -> (i32, i32, i32) {
    %c0_i32 = arith.constant 0 : i32
    %c0_i32_0 = arith.constant 0 : i32
    %c0_i32_1 = arith.constant 0 : i32
    return %arg0, %c0_i32, %c0_i32_0 : i32, i32, i32
  }
}

</mosaic_0001>

<llo_original>
// kernel: block_forward.1
$region0: #{block_forward.1}
  #allocation0 [shape = 'u32[]', space=smem, size = 0x4, offset = 0x4, fixed_abs, tag = 'smem constant byte address 0x4 - core index']
  #allocation1 [shape = 'u32[72,128]{1,0:T(1,128)}', space=vmem, size = 0x9000, scoped, tag = 'internal scratch']
  %s0 = inlined_call_operand.vmem [shape: f32[2,16,16,4], index: 0, kind: input, shape index: {}]
  %s1 = inlined_call_operand.vmem [shape: f32[36,8], index: 1, kind: input, shape index: {}]
  %s2 = inlined_call_operand.vmem [shape: f32[1,8], index: 2, kind: input, shape index: {}]
  %s3 = inlined_call_operand.vmem [shape: f32[72,8], index: 3, kind: input, shape index: {}]
  %s4 = inlined_call_operand.vmem [shape: f32[1,8], index: 4, kind: input, shape index: {}]
  %s5 = inlined_call_operand.vmem [shape: f32[2,8,144], index: 5, kind: output, shape index: {}]
  %s6 = sld [smem:[#allocation0]]
  $region53: #{block_forward.1} parent=0
    _
  %s8 = ssub.s32 1, %s6
  %s9 = scalar_select 0, %s8, %s6
  loop: start=0, step=1, limit=4
  $region2: #{block_forward.1} parent=0 // loop_pre_header
    _
  $region3: #{block_forward.1} parent=0 // loop_header
    %s11 = sphi 0, %s15
    %p12 = scmp.ge.s32.totalorder %s11, 4
    %s21 = sphi 0, %s23
    %s24 = sphi 0, %s21
    %s25 = sphi 0, %s24
    %s41 = sphi 0, %s25
    %s45 = sphi 0, %s45
    %s47 = sphi 0, %s45
    %s48 = sphi 0, %s47
    %s62 = sphi 0, %s48
    %s66 = sphi 0, %s66
    %s68 = sphi 0, %s66
    %s69 = sphi 0, %s68
    %s83 = sphi 0, %s69
    %s87 = sphi 0, %s87
    %s89 = sphi 0, %s87
    %s90 = sphi 0, %s89
    %s104 = sphi 0, %s90
    %s108 = sphi 0, %s108
    %s110 = sphi 0, %s108
    %s111 = sphi 0, %s110
    %s125 = sphi 0, %s111
    %s131 = sphi 0, %s133
    %s134 = sphi 0, %s131
    %s135 = sphi 0, %s134
    %s151 = sphi 0, %s135
  $region4: #{block_forward.1} parent=0 // loop_header_branch
    %14 = sbr.rel (%p12) target = $region8
  $region5: #{block_forward.1} parent=0 // loop_body
    %s16 = ssub.s32 %s11, 1
    %s17 = ssub.s32 %s11, 2
    %s18 = sadd.s32 %s11, 1
    %s19 = ssub.s32 %s11, %s18
    %p20 = scmp.eq.s32.totalorder %s19, 0
    %s22 = sadd.s32 %s21, 1
    %s23 = scalar_select %p20, %s21, %s22
    %p26 = pneg %p20
    %p27 = scmp.eq.s32.totalorder %s11, 1
    %p28 = por %p26, %p27
    %p29 = scmp.ne.s32.totalorder %s21, %s24
    %p30 = scmp.eq.s32.totalorder %s11, 0
    %p31 = por %p29, %p30
    %p32 = scmp.ne.s32.totalorder %s21, %s24
    %p33 = scmp.eq.s32.totalorder %s16, 1
    %p34 = por %p32, %p33
    %p35 = scmp.ne.s32.totalorder %s24, %s25
    %p36 = scmp.eq.s32.totalorder %s16, 0
    %p37 = por %p35, %p36
    %p38 = scmp.ne.s32.totalorder %s24, %s25
    %p39 = scmp.eq.s32.totalorder %s17, 1
    %p40 = por %p38, %p39
    %p42 = scmp.ne.s32.totalorder %s25, %s41
    %p43 = scmp.eq.s32.totalorder %s17, 0
    %p44 = por %p42, %p43
    %s46 = sadd.s32 %s45, 1
    %p49 = scmp.eq.s32.totalorder %s11, 1
    %p50 = scmp.ne.s32.totalorder %s45, %s47
    %p51 = scmp.eq.s32.totalorder %s11, 0
    %p52 = por %p50, %p51
    %p53 = scmp.ne.s32.totalorder %s45, %s47
    %p54 = scmp.eq.s32.totalorder %s16, 1
    %p55 = por %p53, %p54
    %p56 = scmp.ne.s32.totalorder %s47, %s48
    %p57 = scmp.eq.s32.totalorder %s16, 0
    %p58 = por %p56, %p57
    %p59 = scmp.ne.s32.totalorder %s47, %s48
    %p60 = scmp.eq.s32.totalorder %s17, 1
    %p61 = por %p59, %p60
    %p63 = scmp.ne.s32.totalorder %s48, %s62
    %p64 = scmp.eq.s32.totalorder %s17, 0
    %p65 = por %p63, %p64
    %s67 = sadd.s32 %s66, 1
    %p70 = scmp.eq.s32.totalorder %s11, 1
    %p71 = scmp.ne.s32.totalorder %s66, %s68
    %p72 = scmp.eq.s32.totalorder %s11, 0
    %p73 = por %p71, %p72
    %p74 = scmp.ne.s32.totalorder %s66, %s68
    %p75 = scmp.eq.s32.totalorder %s16, 1
    %p76 = por %p74, %p75
    %p77 = scmp.ne.s32.totalorder %s68, %s69
    %p78 = scmp.eq.s32.totalorder %s16, 0
    %p79 = por %p77, %p78
    %p80 = scmp.ne.s32.totalorder %s68, %s69
    %p81 = scmp.eq.s32.totalorder %s17, 1
    %p82 = por %p80, %p81
    %p84 = scmp.ne.s32.totalorder %s69, %s83
    %p85 = scmp.eq.s32.totalorder %s17, 0
    %p86 = por %p84, %p85
    %s88 = sadd.s32 %s87, 1
    %p91 = scmp.eq.s32.totalorder %s11, 1
    %p92 = scmp.ne.s32.totalorder %s87, %s89
    %p93 = scmp.eq.s32.totalorder %s11, 0
    %p94 = por %p92, %p93
    %p95 = scmp.ne.s32.totalorder %s87, %s89
    %p96 = scmp.eq.s32.totalorder %s16, 1
    %p97 = por %p95, %p96
    %p98 = scmp.ne.s32.totalorder %s89, %s90
    %p99 = scmp.eq.s32.totalorder %s16, 0
    %p100 = por %p98, %p99
    %p101 = scmp.ne.s32.totalorder %s89, %s90
    %p102 = scmp.eq.s32.totalorder %s17, 1
    %p103 = por %p101, %p102
    %p105 = scmp.ne.s32.totalorder %s90, %s104
    %p106 = scmp.eq.s32.totalorder %s17, 0
    %p107 = por %p105, %p106
    %s109 = sadd.s32 %s108, 1
    %p112 = scmp.eq.s32.totalorder %s11, 1
    %p113 = scmp.ne.s32.totalorder %s108, %s110
    %p114 = scmp.eq.s32.totalorder %s11, 0
    %p115 = por %p113, %p114
    %p116 = scmp.ne.s32.totalorder %s108, %s110
    %p117 = scmp.eq.s32.totalorder %s16, 1
    %p118 = por %p116, %p117
    %p119 = scmp.ne.s32.totalorder %s110, %s111
    %p120 = scmp.eq.s32.totalorder %s16, 0
    %p121 = por %p119, %p120
    %p122 = scmp.ne.s32.totalorder %s110, %s111
    %p123 = scmp.eq.s32.totalorder %s17, 1
    %p124 = por %p122, %p123
    %p126 = scmp.ne.s32.totalorder %s111, %s125
    %p127 = scmp.eq.s32.totalorder %s17, 0
    %p128 = por %p126, %p127
    %s129 = ssub.s32 %s11, %s18
    %p130 = scmp.eq.s32.totalorder %s129, 0
    %s132 = sadd.s32 %s131, 1
    %s133 = scalar_select %p130, %s131, %s132
    %p136 = pneg %p130
    %p137 = scmp.eq.s32.totalorder %s11, 1
    %p138 = por %p136, %p137
    %p139 = scmp.ne.s32.totalorder %s131, %s134
    %p140 = scmp.eq.s32.totalorder %s11, 0
    %p141 = por %p139, %p140
    %p142 = scmp.ne.s32.totalorder %s131, %s134
    %p143 = scmp.eq.s32.totalorder %s16, 1
    %p144 = por %p142, %p143
    %p145 = scmp.ne.s32.totalorder %s134, %s135
    %p146 = scmp.eq.s32.totalorder %s16, 0
    %p147 = por %p145, %p146
    %p148 = scmp.ne.s32.totalorder %s134, %s135
    %p149 = scmp.eq.s32.totalorder %s17, 1
    %p150 = por %p148, %p149
    %p152 = scmp.ne.s32.totalorder %s135, %s151
    %p153 = scmp.eq.s32.totalorder %s17, 0
    %p154 = por %p152, %p153
    %p155 = scmp.le.s32.totalorder 1, %s11
    %p156 = scmp.lt.s32.totalorder %s11, 3
    %p157 = pnand %p155, %p156
    %p158 = pneg %p157
    // Predicated region
    $region9: #{block_forward.1} parent=5 // pred_check
      _
    $region10: #{block_forward.1} parent=5 // pred_check_branch
      %160 = sbr.rel (%p157) target = $region12
    $region11: #{block_forward.1} parent=5 // pred_region
      %s161 = ssub.s32 %s11, 1
      // Predicated region
      $region13: #{block_forward.1} parent=11 // pred_check
        %p162 = pneg %p58
      $region14: #{block_forward.1} parent=11 // pred_check_branch
        %164 = sbr.rel (%p162) target = $region16
      $region15: #{block_forward.1} parent=11 // pred_region
        _
      $region16: #{block_forward.1} parent=11 // pred_fallthru
        _
      // Predicated region
      $region17: #{block_forward.1} parent=11 // pred_check
        %p165 = pneg %p79
      $region18: #{block_forward.1} parent=11 // pred_check_branch
        %167 = sbr.rel (%p165) target = $region20
      $region19: #{block_forward.1} parent=11 // pred_region
        _
      $region20: #{block_forward.1} parent=11 // pred_fallthru
        _
      // Predicated region
      $region21: #{block_forward.1} parent=11 // pred_check
        %p168 = pneg %p100
      $region22: #{block_forward.1} parent=11 // pred_check_branch
        %170 = sbr.rel (%p168) target = $region24
      $region23: #{block_forward.1} parent=11 // pred_region
        _
      $region24: #{block_forward.1} parent=11 // pred_fallthru
        _
      // Predicated region
      $region25: #{block_forward.1} parent=11 // pred_check
        %p171 = pneg %p121
      $region26: #{block_forward.1} parent=11 // pred_check_branch
        %173 = sbr.rel (%p171) target = $region28
      $region27: #{block_forward.1} parent=11 // pred_region
        _
      $region28: #{block_forward.1} parent=11 // pred_fallthru
        _
    $region12: #{block_forward.1} parent=5 // pred_fallthru
      _
    %p174 = scmp.lt.s32.totalorder %s11, 2
    // Predicated region
    $region29: #{block_forward.1} parent=5 // pred_check
      %p175 = pneg %p174
    $region30: #{block_forward.1} parent=5 // pred_check_branch
      %177 = sbr.rel (%p175) target = $region32
    $region31: #{block_forward.1} parent=5 // pred_region
      // Predicated region
      $region33: #{block_forward.1} parent=31 // pred_check
        %p178 = pneg %p31
      $region34: #{block_forward.1} parent=31 // pred_check_branch
        %180 = sbr.rel (%p178) target = $region36
      $region35: #{block_forward.1} parent=31 // pred_region
        %p181 = scmp.lt.s32.totalorder %s11, 1
        %s182 = scalar_select %p181, %s11, 1
        %s183 = smul.addr %s182, 32
        %s184 = smul.addr %s183, 8
        %s185 = scalar_lea.vmem %s0, %s184
      $region36: #{block_forward.1} parent=31 // pred_fallthru
        _
    $region32: #{block_forward.1} parent=5 // pred_fallthru
      _
    %p186 = scmp.le.s32.totalorder 1, %s11
    %p187 = scmp.lt.s32.totalorder %s11, 3
    %p188 = pnand %p186, %p187
    %p189 = pneg %p188
    // Predicated region
    $region37: #{block_forward.1} parent=5 // pred_check
      _
    $region38: #{block_forward.1} parent=5 // pred_check_branch
      %191 = sbr.rel (%p188) target = $region40
    $region39: #{block_forward.1} parent=5 // pred_region
      %s192 = ssub.s32 %s11, 1
      %p193 = scmp.lt.s32.totalorder %s16, 1
      %s194 = scalar_select %p193, %s16, 1
      %s195 = smul.addr %s194, 32
      %s196 = smul.addr %s195, 8
      %s197 = scalar_lea.vmem %s0, %s196
      %p198 = pneg %p37
      %p199 = pneg %p34
      %p200 = pneg %p58
      %p201 = pneg %p55
      %p202 = pneg %p79
      %p203 = pneg %p76
      %p204 = pneg %p100
      %p205 = pneg %p97
      %p206 = pneg %p121
      %p207 = pneg %p118
      %p208 = pneg %p147
      %p209 = pneg %p144
      %p210 = scmp.lt.s32.totalorder %s16, 1
      %s211 = scalar_select %p210, %s16, 1
      %s212 = smul.addr %s211, 2
      %s213 = smul.addr %s212, 8
      %s214 = scalar_lea.vmem %s5, %s213
      %p215 = scmp.lt.s32.totalorder %s16, 1
      %s216 = scalar_select %p215, %s16, 1
      %s217 = smul.addr %s216, 32
      %s218 = smul.addr %s217, 8
      %s219 = scalar_lea.vmem %s0, %s218
      %p220 = scmp.lt.s32.totalorder %s16, 1
      %s221 = scalar_select %p220, %s16, 1
      %s222 = smul.addr %s221, 2
      %s223 = smul.addr %s222, 8
      %s224 = scalar_lea.vmem %s5, %s223
      %v225 = vld [vmem:[%s219] sm:$0xff]
      %v226 = vld [vmem:[%s219 + $0x8] sm:$0xff]
      %v227 = vld [vmem:[%s219 + $0x10] sm:$0xff]
      %v228 = vld [vmem:[%s219 + $0x18] sm:$0xff]
      %v229 = vld [vmem:[%s219 + $0x20] sm:$0xff]
      %v230 = vld [vmem:[%s219 + $0x28] sm:$0xff]
      %v231 = vld [vmem:[%s219 + $0x30] sm:$0xff]
      %v232 = vld [vmem:[%s219 + $0x38] sm:$0xff]
      %v233 = vld [vmem:[%s219 + $0x40] sm:$0xff]
      %v234 = vld [vmem:[%s219 + $0x48] sm:$0xff]
      %v235 = vld [vmem:[%s219 + $0x50] sm:$0xff]
      %v236 = vld [vmem:[%s219 + $0x58] sm:$0xff]
      %v237 = vld [vmem:[%s219 + $0x60] sm:$0xff]
      %v238 = vld [vmem:[%s219 + $0x68] sm:$0xff]
      %v239 = vld [vmem:[%s219 + $0x70] sm:$0xff]
      %v240 = vld [vmem:[%s219 + $0x78] sm:$0xff]
      %v241 = vld [vmem:[%s219 + $0x80] sm:$0xff]
      %v242 = vld [vmem:[%s219 + $0x88] sm:$0xff]
      %v243 = vld [vmem:[%s219 + $0x90] sm:$0xff]
      %v244 = vld [vmem:[%s219 + $0x98] sm:$0xff]
      %v245 = vld [vmem:[%s219 + $0xa0] sm:$0xff]
      %v246 = vld [vmem:[%s219 + $0xa8] sm:$0xff]
      %v247 = vld [vmem:[%s219 + $0xb0] sm:$0xff]
      %v248 = vld [vmem:[%s219 + $0xb8] sm:$0xff]
      %v249 = vld [vmem:[%s219 + $0xc0] sm:$0xff]
      %v250 = vld [vmem:[%s219 + $0xc8] sm:$0xff]
      %v251 = vld [vmem:[%s219 + $0xd0] sm:$0xff]
      %v252 = vld [vmem:[%s219 + $0xd8] sm:$0xff]
      %v253 = vld [vmem:[%s219 + $0xe0] sm:$0xff]
      %v254 = vld [vmem:[%s219 + $0xe8] sm:$0xff]
      %v255 = vld [vmem:[%s219 + $0xf0] sm:$0xff]
      %v256 = vld [vmem:[%s219 + $0xf8] sm:$0xff]
      %vm285 = vcmask 1046528
      %v286 = vrot.slane %v225, 1
      %v287 = vrot.slane %v226, 1
      %v288 = vsel %vm285, %v286, %v287
      %v289 = vrot.slane %v227, 1
      %v290 = vrot.slane %v228, 1
      %v291 = vsel %vm285, %v289, %v290
      %v292 = vrot.slane %v229, 1
      %v293 = vrot.slane %v230, 1
      %v294 = vsel %vm285, %v292, %v293
      %v295 = vrot.slane %v231, 1
      %v296 = vrot.slane %v232, 1
      %v297 = vsel %vm285, %v295, %v296
      %v298 = vrot.slane %v233, 1
      %v299 = vrot.slane %v234, 1
      %v300 = vsel %vm285, %v298, %v299
      %v301 = vrot.slane %v235, 1
      %v302 = vrot.slane %v236, 1
      %v303 = vsel %vm285, %v301, %v302
      %v304 = vrot.slane %v237, 1
      %v305 = vrot.slane %v238, 1
      %v306 = vsel %vm285, %v304, %v305
      %v307 = vrot.slane %v239, 1
      %v308 = vrot.slane %v240, 1
      %v309 = vsel %vm285, %v307, %v308
      %v310 = vrot.slane %v241, 1
      %v311 = vrot.slane %v242, 1
      %v312 = vsel %vm285, %v310, %v311
      %v313 = vrot.slane %v243, 1
      %v314 = vrot.slane %v244, 1
      %v315 = vsel %vm285, %v313, %v314
      %v316 = vrot.slane %v245, 1
      %v317 = vrot.slane %v246, 1
      %v318 = vsel %vm285, %v316, %v317
      %v319 = vrot.slane %v247, 1
      %v320 = vrot.slane %v248, 1
      %v321 = vsel %vm285, %v319, %v320
      %v322 = vrot.slane %v249, 1
      %v323 = vrot.slane %v250, 1
      %v324 = vsel %vm285, %v322, %v323
      %v325 = vrot.slane %v251, 1
      %v326 = vrot.slane %v252, 1
      %v327 = vsel %vm285, %v325, %v326
      %328 = vrot.lane.b32.xlu0 %v288, 4
      %v329 = vpop.permute.xlu0 %328
      %330 = vrot.lane.b32.xlu0 %v287, 4
      %v331 = vpop.permute.xlu0 %330
      %332 = vrot.lane.b32.xlu0 %v291, 4
      %v333 = vpop.permute.xlu0 %332
      %334 = vrot.lane.b32.xlu0 %v290, 4
      %v335 = vpop.permute.xlu0 %334
      %336 = vrot.lane.b32.xlu0 %v294, 4
      %v337 = vpop.permute.xlu0 %336
      %338 = vrot.lane.b32.xlu0 %v293, 4
      %v339 = vpop.permute.xlu0 %338
      %340 = vrot.lane.b32.xlu0 %v297, 4
      %v341 = vpop.permute.xlu0 %340
      %342 = vrot.lane.b32.xlu0 %v296, 4
      %v343 = vpop.permute.xlu0 %342
      %344 = vrot.lane.b32.xlu0 %v300, 4
      %v345 = vpop.permute.xlu0 %344
      %346 = vrot.lane.b32.xlu0 %v299, 4
      %v347 = vpop.permute.xlu0 %346
      %348 = vrot.lane.b32.xlu0 %v303, 4
      %v349 = vpop.permute.xlu0 %348
      %350 = vrot.lane.b32.xlu0 %v302, 4
      %v351 = vpop.permute.xlu0 %350
      %352 = vrot.lane.b32.xlu0 %v306, 4
      %v353 = vpop.permute.xlu0 %352
      %354 = vrot.lane.b32.xlu0 %v305, 4
      %v355 = vpop.permute.xlu0 %354
      %356 = vrot.lane.b32.xlu0 %v309, 4
      %v357 = vpop.permute.xlu0 %356
      %358 = vrot.lane.b32.xlu0 %v308, 4
      %v359 = vpop.permute.xlu0 %358
      %360 = vrot.lane.b32.xlu0 %v312, 4
      %v361 = vpop.permute.xlu0 %360
      %362 = vrot.lane.b32.xlu0 %v311, 4
      %v363 = vpop.permute.xlu0 %362
      %364 = vrot.lane.b32.xlu0 %v315, 4
      %v365 = vpop.permute.xlu0 %364
      %366 = vrot.lane.b32.xlu0 %v314, 4
      %v367 = vpop.permute.xlu0 %366
      %368 = vrot.lane.b32.xlu0 %v318, 4
      %v369 = vpop.permute.xlu0 %368
      %370 = vrot.lane.b32.xlu0 %v317, 4
      %v371 = vpop.permute.xlu0 %370
      %372 = vrot.lane.b32.xlu0 %v321, 4
      %v373 = vpop.permute.xlu0 %372
      %374 = vrot.lane.b32.xlu0 %v320, 4
      %v375 = vpop.permute.xlu0 %374
      %376 = vrot.lane.b32.xlu0 %v324, 4
      %v377 = vpop.permute.xlu0 %376
      %378 = vrot.lane.b32.xlu0 %v323, 4
      %v379 = vpop.permute.xlu0 %378
      %380 = vrot.lane.b32.xlu0 %v327, 4
      %v381 = vpop.permute.xlu0 %380
      %382 = vrot.lane.b32.xlu0 %v326, 4
      %v383 = vpop.permute.xlu0 %382
      %vm412 = vcmask 1045504
      %v413 = vrot.slane %v225, 2
      %v414 = vrot.slane %v226, 2
      %v415 = vsel %vm412, %v413, %v414
      %v416 = vrot.slane %v227, 2
      %v417 = vrot.slane %v228, 2
      %v418 = vsel %vm412, %v416, %v417
      %v419 = vrot.slane %v229, 2
      %v420 = vrot.slane %v230, 2
      %v421 = vsel %vm412, %v419, %v420
      %v422 = vrot.slane %v231, 2
      %v423 = vrot.slane %v232, 2
      %v424 = vsel %vm412, %v422, %v423
      %v425 = vrot.slane %v233, 2
      %v426 = vrot.slane %v234, 2
      %v427 = vsel %vm412, %v425, %v426
      %v428 = vrot.slane %v235, 2
      %v429 = vrot.slane %v236, 2
      %v430 = vsel %vm412, %v428, %v429
      %v431 = vrot.slane %v237, 2
      %v432 = vrot.slane %v238, 2
      %v433 = vsel %vm412, %v431, %v432
      %v434 = vrot.slane %v239, 2
      %v435 = vrot.slane %v240, 2
      %v436 = vsel %vm412, %v434, %v435
      %v437 = vrot.slane %v241, 2
      %v438 = vrot.slane %v242, 2
      %v439 = vsel %vm412, %v437, %v438
      %v440 = vrot.slane %v243, 2
      %v441 = vrot.slane %v244, 2
      %v442 = vsel %vm412, %v440, %v441
      %v443 = vrot.slane %v245, 2
      %v444 = vrot.slane %v246, 2
      %v445 = vsel %vm412, %v443, %v444
      %v446 = vrot.slane %v247, 2
      %v447 = vrot.slane %v248, 2
      %v448 = vsel %vm412, %v446, %v447
      %v449 = vrot.slane %v249, 2
      %v450 = vrot.slane %v250, 2
      %v451 = vsel %vm412, %v449, %v450
      %v452 = vrot.slane %v251, 2
      %v453 = vrot.slane %v252, 2
      %v454 = vsel %vm412, %v452, %v453
      %455 = vrot.lane.b32.xlu0 %v415, 8
      %v456 = vpop.permute.xlu0 %455
      %457 = vrot.lane.b32.xlu0 %v414, 8
      %v458 = vpop.permute.xlu0 %457
      %459 = vrot.lane.b32.xlu0 %v418, 8
      %v460 = vpop.permute.xlu0 %459
      %461 = vrot.lane.b32.xlu0 %v417, 8
      %v462 = vpop.permute.xlu0 %461
      %463 = vrot.lane.b32.xlu0 %v421, 8
      %v464 = vpop.permute.xlu0 %463
      %465 = vrot.lane.b32.xlu0 %v420, 8
      %v466 = vpop.permute.xlu0 %465
      %467 = vrot.lane.b32.xlu0 %v424, 8
      %v468 = vpop.permute.xlu0 %467
      %469 = vrot.lane.b32.xlu0 %v423, 8
      %v470 = vpop.permute.xlu0 %469
      %471 = vrot.lane.b32.xlu0 %v427, 8
      %v472 = vpop.permute.xlu0 %471
      %473 = vrot.lane.b32.xlu0 %v426, 8
      %v474 = vpop.permute.xlu0 %473
      %475 = vrot.lane.b32.xlu0 %v430, 8
      %v476 = vpop.permute.xlu0 %475
      %477 = vrot.lane.b32.xlu0 %v429, 8
      %v478 = vpop.permute.xlu0 %477
      %479 = vrot.lane.b32.xlu0 %v433, 8
      %v480 = vpop.permute.xlu0 %479
      %481 = vrot.lane.b32.xlu0 %v432, 8
      %v482 = vpop.permute.xlu0 %481
      %483 = vrot.lane.b32.xlu0 %v436, 8
      %v484 = vpop.permute.xlu0 %483
      %485 = vrot.lane.b32.xlu0 %v435, 8
      %v486 = vpop.permute.xlu0 %485
      %487 = vrot.lane.b32.xlu0 %v439, 8
      %v488 = vpop.permute.xlu0 %487
      %489 = vrot.lane.b32.xlu0 %v438, 8
      %v490 = vpop.permute.xlu0 %489
      %491 = vrot.lane.b32.xlu0 %v442, 8
      %v492 = vpop.permute.xlu0 %491
      %493 = vrot.lane.b32.xlu0 %v441, 8
      %v494 = vpop.permute.xlu0 %493
      %495 = vrot.lane.b32.xlu0 %v445, 8
      %v496 = vpop.permute.xlu0 %495
      %497 = vrot.lane.b32.xlu0 %v444, 8
      %v498 = vpop.permute.xlu0 %497
      %499 = vrot.lane.b32.xlu0 %v448, 8
      %v500 = vpop.permute.xlu0 %499
      %501 = vrot.lane.b32.xlu0 %v447, 8
      %v502 = vpop.permute.xlu0 %501
      %503 = vrot.lane.b32.xlu0 %v451, 8
      %v504 = vpop.permute.xlu0 %503
      %505 = vrot.lane.b32.xlu0 %v450, 8
      %v506 = vpop.permute.xlu0 %505
      %507 = vrot.lane.b32.xlu0 %v454, 8
      %v508 = vpop.permute.xlu0 %507
      %509 = vrot.lane.b32.xlu0 %v453, 8
      %v510 = vpop.permute.xlu0 %509
      %541 = vrot.lane.b32.xlu0 %v227, 12
      %v542 = vpop.permute.xlu0 %541
      %543 = vrot.lane.b32.xlu0 %v228, 12
      %v544 = vpop.permute.xlu0 %543
      %545 = vrot.lane.b32.xlu0 %v229, 12
      %v546 = vpop.permute.xlu0 %545
      %547 = vrot.lane.b32.xlu0 %v230, 12
      %v548 = vpop.permute.xlu0 %547
      %549 = vrot.lane.b32.xlu0 %v231, 12
      %v550 = vpop.permute.xlu0 %549
      %551 = vrot.lane.b32.xlu0 %v232, 12
      %v552 = vpop.permute.xlu0 %551
      %553 = vrot.lane.b32.xlu0 %v233, 12
      %v554 = vpop.permute.xlu0 %553
      %555 = vrot.lane.b32.xlu0 %v234, 12
      %v556 = vpop.permute.xlu0 %555
      %557 = vrot.lane.b32.xlu0 %v235, 12
      %v558 = vpop.permute.xlu0 %557
      %559 = vrot.lane.b32.xlu0 %v236, 12
      %v560 = vpop.permute.xlu0 %559
      %561 = vrot.lane.b32.xlu0 %v237, 12
      %v562 = vpop.permute.xlu0 %561
      %563 = vrot.lane.b32.xlu0 %v238, 12
      %v564 = vpop.permute.xlu0 %563
      %565 = vrot.lane.b32.xlu0 %v239, 12
      %v566 = vpop.permute.xlu0 %565
      %567 = vrot.lane.b32.xlu0 %v240, 12
      %v568 = vpop.permute.xlu0 %567
      %569 = vrot.lane.b32.xlu0 %v241, 12
      %v570 = vpop.permute.xlu0 %569
      %571 = vrot.lane.b32.xlu0 %v242, 12
      %v572 = vpop.permute.xlu0 %571
      %573 = vrot.lane.b32.xlu0 %v243, 12
      %v574 = vpop.permute.xlu0 %573
      %575 = vrot.lane.b32.xlu0 %v244, 12
      %v576 = vpop.permute.xlu0 %575
      %577 = vrot.lane.b32.xlu0 %v245, 12
      %v578 = vpop.permute.xlu0 %577
      %579 = vrot.lane.b32.xlu0 %v246, 12
      %v580 = vpop.permute.xlu0 %579
      %581 = vrot.lane.b32.xlu0 %v247, 12
      %v582 = vpop.permute.xlu0 %581
      %583 = vrot.lane.b32.xlu0 %v248, 12
      %v584 = vpop.permute.xlu0 %583
      %585 = vrot.lane.b32.xlu0 %v249, 12
      %v586 = vpop.permute.xlu0 %585
      %587 = vrot.lane.b32.xlu0 %v250, 12
      %v588 = vpop.permute.xlu0 %587
      %589 = vrot.lane.b32.xlu0 %v251, 12
      %v590 = vpop.permute.xlu0 %589
      %591 = vrot.lane.b32.xlu0 %v252, 12
      %v592 = vpop.permute.xlu0 %591
      %593 = vrot.lane.b32.xlu0 %v253, 12
      %v594 = vpop.permute.xlu0 %593
      %595 = vrot.lane.b32.xlu0 %v254, 12
      %v596 = vpop.permute.xlu0 %595
      %v625 = vrot.slane %v253, 1
      %v626 = vrot.slane %v254, 1
      %v627 = vsel %vm285, %v625, %v626
      %628 = vrot.lane.b32.xlu0 %v291, 16
      %v629 = vpop.permute.xlu0 %628
      %630 = vrot.lane.b32.xlu0 %v290, 16
      %v631 = vpop.permute.xlu0 %630
      %632 = vrot.lane.b32.xlu0 %v294, 16
      %v633 = vpop.permute.xlu0 %632
      %634 = vrot.lane.b32.xlu0 %v293, 16
      %v635 = vpop.permute.xlu0 %634
      %636 = vrot.lane.b32.xlu0 %v297, 16
      %v637 = vpop.permute.xlu0 %636
      %638 = vrot.lane.b32.xlu0 %v296, 16
      %v639 = vpop.permute.xlu0 %638
      %640 = vrot.lane.b32.xlu0 %v300, 16
      %v641 = vpop.permute.xlu0 %640
      %642 = vrot.lane.b32.xlu0 %v299, 16
      %v643 = vpop.permute.xlu0 %642
      %644 = vrot.lane.b32.xlu0 %v303, 16
      %v645 = vpop.permute.xlu0 %644
      %646 = vrot.lane.b32.xlu0 %v302, 16
      %v647 = vpop.permute.xlu0 %646
      %648 = vrot.lane.b32.xlu0 %v306, 16
      %v649 = vpop.permute.xlu0 %648
      %650 = vrot.lane.b32.xlu0 %v305, 16
      %v651 = vpop.permute.xlu0 %650
      %652 = vrot.lane.b32.xlu0 %v309, 16
      %v653 = vpop.permute.xlu0 %652
      %654 = vrot.lane.b32.xlu0 %v308, 16
      %v655 = vpop.permute.xlu0 %654
      %656 = vrot.lane.b32.xlu0 %v312, 16
      %v657 = vpop.permute.xlu0 %656
      %658 = vrot.lane.b32.xlu0 %v311, 16
      %v659 = vpop.permute.xlu0 %658
      %660 = vrot.lane.b32.xlu0 %v315, 16
      %v661 = vpop.permute.xlu0 %660
      %662 = vrot.lane.b32.xlu0 %v314, 16
      %v663 = vpop.permute.xlu0 %662
      %664 = vrot.lane.b32.xlu0 %v318, 16
      %v665 = vpop.permute.xlu0 %664
      %666 = vrot.lane.b32.xlu0 %v317, 16
      %v667 = vpop.permute.xlu0 %666
      %668 = vrot.lane.b32.xlu0 %v321, 16
      %v669 = vpop.permute.xlu0 %668
      %670 = vrot.lane.b32.xlu0 %v320, 16
      %v671 = vpop.permute.xlu0 %670
      %672 = vrot.lane.b32.xlu0 %v324, 16
      %v673 = vpop.permute.xlu0 %672
      %674 = vrot.lane.b32.xlu0 %v323, 16
      %v675 = vpop.permute.xlu0 %674
      %676 = vrot.lane.b32.xlu0 %v327, 16
      %v677 = vpop.permute.xlu0 %676
      %678 = vrot.lane.b32.xlu0 %v326, 16
      %v679 = vpop.permute.xlu0 %678
      %680 = vrot.lane.b32.xlu0 %v627, 16
      %v681 = vpop.permute.xlu0 %680
      %682 = vrot.lane.b32.xlu0 %v626, 16
      %v683 = vpop.permute.xlu0 %682
      %v712 = vrot.slane %v253, 2
      %v713 = vrot.slane %v254, 2
      %v714 = vsel %vm412, %v712, %v713
      %715 = vrot.lane.b32.xlu0 %v418, 20
      %v716 = vpop.permute.xlu0 %715
      %717 = vrot.lane.b32.xlu0 %v417, 20
      %v718 = vpop.permute.xlu0 %717
      %719 = vrot.lane.b32.xlu0 %v421, 20
      %v720 = vpop.permute.xlu0 %719
      %721 = vrot.lane.b32.xlu0 %v420, 20
      %v722 = vpop.permute.xlu0 %721
      %723 = vrot.lane.b32.xlu0 %v424, 20
      %v724 = vpop.permute.xlu0 %723
      %725 = vrot.lane.b32.xlu0 %v423, 20
      %v726 = vpop.permute.xlu0 %725
      %727 = vrot.lane.b32.xlu0 %v427, 20
      %v728 = vpop.permute.xlu0 %727
      %729 = vrot.lane.b32.xlu0 %v426, 20
      %v730 = vpop.permute.xlu0 %729
      %731 = vrot.lane.b32.xlu0 %v430, 20
      %v732 = vpop.permute.xlu0 %731
      %733 = vrot.lane.b32.xlu0 %v429, 20
      %v734 = vpop.permute.xlu0 %733
      %735 = vrot.lane.b32.xlu0 %v433, 20
      %v736 = vpop.permute.xlu0 %735
      %737 = vrot.lane.b32.xlu0 %v432, 20
      %v738 = vpop.permute.xlu0 %737
      %739 = vrot.lane.b32.xlu0 %v436, 20
      %v740 = vpop.permute.xlu0 %739
      %741 = vrot.lane.b32.xlu0 %v435, 20
      %v742 = vpop.permute.xlu0 %741
      %743 = vrot.lane.b32.xlu0 %v439, 20
      %v744 = vpop.permute.xlu0 %743
      %745 = vrot.lane.b32.xlu0 %v438, 20
      %v746 = vpop.permute.xlu0 %745
      %747 = vrot.lane.b32.xlu0 %v442, 20
      %v748 = vpop.permute.xlu0 %747
      %749 = vrot.lane.b32.xlu0 %v441, 20
      %v750 = vpop.permute.xlu0 %749
      %751 = vrot.lane.b32.xlu0 %v445, 20
      %v752 = vpop.permute.xlu0 %751
      %753 = vrot.lane.b32.xlu0 %v444, 20
      %v754 = vpop.permute.xlu0 %753
      %755 = vrot.lane.b32.xlu0 %v448, 20
      %v756 = vpop.permute.xlu0 %755
      %757 = vrot.lane.b32.xlu0 %v447, 20
      %v758 = vpop.permute.xlu0 %757
      %759 = vrot.lane.b32.xlu0 %v451, 20
      %v760 = vpop.permute.xlu0 %759
      %761 = vrot.lane.b32.xlu0 %v450, 20
      %v762 = vpop.permute.xlu0 %761
      %763 = vrot.lane.b32.xlu0 %v454, 20
      %v764 = vpop.permute.xlu0 %763
      %765 = vrot.lane.b32.xlu0 %v453, 20
      %v766 = vpop.permute.xlu0 %765
      %767 = vrot.lane.b32.xlu0 %v714, 20
      %v768 = vpop.permute.xlu0 %767
      %769 = vrot.lane.b32.xlu0 %v713, 20
      %v770 = vpop.permute.xlu0 %769
      %801 = vrot.lane.b32.xlu0 %v229, 24
      %v802 = vpop.permute.xlu0 %801
      %803 = vrot.lane.b32.xlu0 %v230, 24
      %v804 = vpop.permute.xlu0 %803
      %805 = vrot.lane.b32.xlu0 %v231, 24
      %v806 = vpop.permute.xlu0 %805
      %807 = vrot.lane.b32.xlu0 %v232, 24
      %v808 = vpop.permute.xlu0 %807
      %809 = vrot.lane.b32.xlu0 %v233, 24
      %v810 = vpop.permute.xlu0 %809
      %811 = vrot.lane.b32.xlu0 %v234, 24
      %v812 = vpop.permute.xlu0 %811
      %813 = vrot.lane.b32.xlu0 %v235, 24
      %v814 = vpop.permute.xlu0 %813
      %815 = vrot.lane.b32.xlu0 %v236, 24
      %v816 = vpop.permute.xlu0 %815
      %817 = vrot.lane.b32.xlu0 %v237, 24
      %v818 = vpop.permute.xlu0 %817
      %819 = vrot.lane.b32.xlu0 %v238, 24
      %v820 = vpop.permute.xlu0 %819
      %821 = vrot.lane.b32.xlu0 %v239, 24
      %v822 = vpop.permute.xlu0 %821
      %823 = vrot.lane.b32.xlu0 %v240, 24
      %v824 = vpop.permute.xlu0 %823
      %825 = vrot.lane.b32.xlu0 %v241, 24
      %v826 = vpop.permute.xlu0 %825
      %827 = vrot.lane.b32.xlu0 %v242, 24
      %v828 = vpop.permute.xlu0 %827
      %829 = vrot.lane.b32.xlu0 %v243, 24
      %v830 = vpop.permute.xlu0 %829
      %831 = vrot.lane.b32.xlu0 %v244, 24
      %v832 = vpop.permute.xlu0 %831
      %833 = vrot.lane.b32.xlu0 %v245, 24
      %v834 = vpop.permute.xlu0 %833
      %835 = vrot.lane.b32.xlu0 %v246, 24
      %v836 = vpop.permute.xlu0 %835
      %837 = vrot.lane.b32.xlu0 %v247, 24
      %v838 = vpop.permute.xlu0 %837
      %839 = vrot.lane.b32.xlu0 %v248, 24
      %v840 = vpop.permute.xlu0 %839
      %841 = vrot.lane.b32.xlu0 %v249, 24
      %v842 = vpop.permute.xlu0 %841
      %843 = vrot.lane.b32.xlu0 %v250, 24
      %v844 = vpop.permute.xlu0 %843
      %845 = vrot.lane.b32.xlu0 %v251, 24
      %v846 = vpop.permute.xlu0 %845
      %847 = vrot.lane.b32.xlu0 %v252, 24
      %v848 = vpop.permute.xlu0 %847
      %849 = vrot.lane.b32.xlu0 %v253, 24
      %v850 = vpop.permute.xlu0 %849
      %851 = vrot.lane.b32.xlu0 %v254, 24
      %v852 = vpop.permute.xlu0 %851
      %853 = vrot.lane.b32.xlu0 %v255, 24
      %v854 = vpop.permute.xlu0 %853
      %855 = vrot.lane.b32.xlu0 %v256, 24
      %v856 = vpop.permute.xlu0 %855
      %v885 = vrot.slane %v255, 1
      %v886 = vrot.slane %v256, 1
      %v887 = vsel %vm285, %v885, %v886
      %888 = vrot.lane.b32.xlu0 %v294, 28
      %v889 = vpop.permute.xlu0 %888
      %890 = vrot.lane.b32.xlu0 %v293, 28
      %v891 = vpop.permute.xlu0 %890
      %892 = vrot.lane.b32.xlu0 %v297, 28
      %v893 = vpop.permute.xlu0 %892
      %894 = vrot.lane.b32.xlu0 %v296, 28
      %v895 = vpop.permute.xlu0 %894
      %896 = vrot.lane.b32.xlu0 %v300, 28
      %v897 = vpop.permute.xlu0 %896
      %898 = vrot.lane.b32.xlu0 %v299, 28
      %v899 = vpop.permute.xlu0 %898
      %900 = vrot.lane.b32.xlu0 %v303, 28
      %v901 = vpop.permute.xlu0 %900
      %902 = vrot.lane.b32.xlu0 %v302, 28
      %v903 = vpop.permute.xlu0 %902
      %904 = vrot.lane.b32.xlu0 %v306, 28
      %v905 = vpop.permute.xlu0 %904
      %906 = vrot.lane.b32.xlu0 %v305, 28
      %v907 = vpop.permute.xlu0 %906
      %908 = vrot.lane.b32.xlu0 %v309, 28
      %v909 = vpop.permute.xlu0 %908
      %910 = vrot.lane.b32.xlu0 %v308, 28
      %v911 = vpop.permute.xlu0 %910
      %912 = vrot.lane.b32.xlu0 %v312, 28
      %v913 = vpop.permute.xlu0 %912
      %914 = vrot.lane.b32.xlu0 %v311, 28
      %v915 = vpop.permute.xlu0 %914
      %916 = vrot.lane.b32.xlu0 %v315, 28
      %v917 = vpop.permute.xlu0 %916
      %918 = vrot.lane.b32.xlu0 %v314, 28
      %v919 = vpop.permute.xlu0 %918
      %920 = vrot.lane.b32.xlu0 %v318, 28
      %v921 = vpop.permute.xlu0 %920
      %922 = vrot.lane.b32.xlu0 %v317, 28
      %v923 = vpop.permute.xlu0 %922
      %924 = vrot.lane.b32.xlu0 %v321, 28
      %v925 = vpop.permute.xlu0 %924
      %926 = vrot.lane.b32.xlu0 %v320, 28
      %v927 = vpop.permute.xlu0 %926
      %928 = vrot.lane.b32.xlu0 %v324, 28
      %v929 = vpop.permute.xlu0 %928
      %930 = vrot.lane.b32.xlu0 %v323, 28
      %v931 = vpop.permute.xlu0 %930
      %932 = vrot.lane.b32.xlu0 %v327, 28
      %v933 = vpop.permute.xlu0 %932
      %934 = vrot.lane.b32.xlu0 %v326, 28
      %v935 = vpop.permute.xlu0 %934
      %936 = vrot.lane.b32.xlu0 %v627, 28
      %v937 = vpop.permute.xlu0 %936
      %938 = vrot.lane.b32.xlu0 %v626, 28
      %v939 = vpop.permute.xlu0 %938
      %940 = vrot.lane.b32.xlu0 %v887, 28
      %v941 = vpop.permute.xlu0 %940
      %942 = vrot.lane.b32.xlu0 %v886, 28
      %v943 = vpop.permute.xlu0 %942
      %v972 = vrot.slane %v255, 2
      %v973 = vrot.slane %v256, 2
      %v974 = vsel %vm412, %v972, %v973
      %975 = vrot.lane.b32.xlu0 %v421, 32
      %v976 = vpop.permute.xlu0 %975
      %977 = vrot.lane.b32.xlu0 %v420, 32
      %v978 = vpop.permute.xlu0 %977
      %979 = vrot.lane.b32.xlu0 %v424, 32
      %v980 = vpop.permute.xlu0 %979
      %981 = vrot.lane.b32.xlu0 %v423, 32
      %v982 = vpop.permute.xlu0 %981
      %983 = vrot.lane.b32.xlu0 %v427, 32
      %v984 = vpop.permute.xlu0 %983
      %985 = vrot.lane.b32.xlu0 %v426, 32
      %v986 = vpop.permute.xlu0 %985
      %987 = vrot.lane.b32.xlu0 %v430, 32
      %v988 = vpop.permute.xlu0 %987
      %989 = vrot.lane.b32.xlu0 %v429, 32
      %v990 = vpop.permute.xlu0 %989
      %991 = vrot.lane.b32.xlu0 %v433, 32
      %v992 = vpop.permute.xlu0 %991
      %993 = vrot.lane.b32.xlu0 %v432, 32
      %v994 = vpop.permute.xlu0 %993
      %995 = vrot.lane.b32.xlu0 %v436, 32
      %v996 = vpop.permute.xlu0 %995
      %997 = vrot.lane.b32.xlu0 %v435, 32
      %v998 = vpop.permute.xlu0 %997
      %999 = vrot.lane.b32.xlu0 %v439, 32
      %v1000 = vpop.permute.xlu0 %999
      %1001 = vrot.lane.b32.xlu0 %v438, 32
      %v1002 = vpop.permute.xlu0 %1001
      %1003 = vrot.lane.b32.xlu0 %v442, 32
      %v1004 = vpop.permute.xlu0 %1003
      %1005 = vrot.lane.b32.xlu0 %v441, 32
      %v1006 = vpop.permute.xlu0 %1005
      %1007 = vrot.lane.b32.xlu0 %v445, 32
      %v1008 = vpop.permute.xlu0 %1007
      %1009 = vrot.lane.b32.xlu0 %v444, 32
      %v1010 = vpop.permute.xlu0 %1009
      %1011 = vrot.lane.b32.xlu0 %v448, 32
      %v1012 = vpop.permute.xlu0 %1011
      %1013 = vrot.lane.b32.xlu0 %v447, 32
      %v1014 = vpop.permute.xlu0 %1013
      %1015 = vrot.lane.b32.xlu0 %v451, 32
      %v1016 = vpop.permute.xlu0 %1015
      %1017 = vrot.lane.b32.xlu0 %v450, 32
      %v1018 = vpop.permute.xlu0 %1017
      %1019 = vrot.lane.b32.xlu0 %v454, 32
      %v1020 = vpop.permute.xlu0 %1019
      %1021 = vrot.lane.b32.xlu0 %v453, 32
      %v1022 = vpop.permute.xlu0 %1021
      %1023 = vrot.lane.b32.xlu0 %v714, 32
      %v1024 = vpop.permute.xlu0 %1023
      %1025 = vrot.lane.b32.xlu0 %v713, 32
      %v1026 = vpop.permute.xlu0 %1025
      %1027 = vrot.lane.b32.xlu0 %v974, 32
      %v1028 = vpop.permute.xlu0 %1027
      %1029 = vrot.lane.b32.xlu0 %v973, 32
      %v1030 = vpop.permute.xlu0 %1029
      %vm1059 = vcmask 31744
      %v1060 = vsel %vm1059, %v225, %v329
      %v1061 = vsel %vm1059, %v226, %v331
      %v1062 = vsel %vm1059, %v227, %v333
      %v1063 = vsel %vm1059, %v228, %v335
      %v1064 = vsel %vm1059, %v229, %v337
      %v1065 = vsel %vm1059, %v230, %v339
      %v1066 = vsel %vm1059, %v231, %v341
      %v1067 = vsel %vm1059, %v232, %v343
      %v1068 = vsel %vm1059, %v233, %v345
      %v1069 = vsel %vm1059, %v234, %v347
      %v1070 = vsel %vm1059, %v235, %v349
      %v1071 = vsel %vm1059, %v236, %v351
      %v1072 = vsel %vm1059, %v237, %v353
      %v1073 = vsel %vm1059, %v238, %v355
      %v1074 = vsel %vm1059, %v239, %v357
      %v1075 = vsel %vm1059, %v240, %v359
      %v1076 = vsel %vm1059, %v241, %v361
      %v1077 = vsel %vm1059, %v242, %v363
      %v1078 = vsel %vm1059, %v243, %v365
      %v1079 = vsel %vm1059, %v244, %v367
      %v1080 = vsel %vm1059, %v245, %v369
      %v1081 = vsel %vm1059, %v246, %v371
      %v1082 = vsel %vm1059, %v247, %v373
      %v1083 = vsel %vm1059, %v248, %v375
      %v1084 = vsel %vm1059, %v249, %v377
      %v1085 = vsel %vm1059, %v250, %v379
      %v1086 = vsel %vm1059, %v251, %v381
      %v1087 = vsel %vm1059, %v252, %v383
      %vm1088 = vcmask 64512
      %v1089 = vsel %vm1088, %v1060, %v456
      %v1090 = vsel %vm1088, %v1061, %v458
      %v1091 = vsel %vm1088, %v1062, %v460
      %v1092 = vsel %vm1088, %v1063, %v462
      %v1093 = vsel %vm1088, %v1064, %v464
      %v1094 = vsel %vm1088, %v1065, %v466
      %v1095 = vsel %vm1088, %v1066, %v468
      %v1096 = vsel %vm1088, %v1067, %v470
      %v1097 = vsel %vm1088, %v1068, %v472
      %v1098 = vsel %vm1088, %v1069, %v474
      %v1099 = vsel %vm1088, %v1070, %v476
      %v1100 = vsel %vm1088, %v1071, %v478
      %v1101 = vsel %vm1088, %v1072, %v480
      %v1102 = vsel %vm1088, %v1073, %v482
      %v1103 = vsel %vm1088, %v1074, %v484
      %v1104 = vsel %vm1088, %v1075, %v486
      %v1105 = vsel %vm1088, %v1076, %v488
      %v1106 = vsel %vm1088, %v1077, %v490
      %v1107 = vsel %vm1088, %v1078, %v492
      %v1108 = vsel %vm1088, %v1079, %v494
      %v1109 = vsel %vm1088, %v1080, %v496
      %v1110 = vsel %vm1088, %v1081, %v498
      %v1111 = vsel %vm1088, %v1082, %v500
      %v1112 = vsel %vm1088, %v1083, %v502
      %v1113 = vsel %vm1088, %v1084, %v504
      %v1114 = vsel %vm1088, %v1085, %v506
      %v1115 = vsel %vm1088, %v1086, %v508
      %v1116 = vsel %vm1088, %v1087, %v510
      %vm1117 = vcmask 97280
      %v1118 = vsel %vm1117, %v1089, %v542
      %v1119 = vsel %vm1117, %v1090, %v544
      %v1120 = vsel %vm1117, %v1091, %v546
      %v1121 = vsel %vm1117, %v1092, %v548
      %v1122 = vsel %vm1117, %v1093, %v550
      %v1123 = vsel %vm1117, %v1094, %v552
      %v1124 = vsel %vm1117, %v1095, %v554
      %v1125 = vsel %vm1117, %v1096, %v556
      %v1126 = vsel %vm1117, %v1097, %v558
      %v1127 = vsel %vm1117, %v1098, %v560
      %v1128 = vsel %vm1117, %v1099, %v562
      %v1129 = vsel %vm1117, %v1100, %v564
      %v1130 = vsel %vm1117, %v1101, %v566
      %v1131 = vsel %vm1117, %v1102, %v568
      %v1132 = vsel %vm1117, %v1103, %v570
      %v1133 = vsel %vm1117, %v1104, %v572
      %v1134 = vsel %vm1117, %v1105, %v574
      %v1135 = vsel %vm1117, %v1106, %v576
      %v1136 = vsel %vm1117, %v1107, %v578
      %v1137 = vsel %vm1117, %v1108, %v580
      %v1138 = vsel %vm1117, %v1109, %v582
      %v1139 = vsel %vm1117, %v1110, %v584
      %v1140 = vsel %vm1117, %v1111, %v586
      %v1141 = vsel %vm1117, %v1112, %v588
      %v1142 = vsel %vm1117, %v1113, %v590
      %v1143 = vsel %vm1117, %v1114, %v592
      %v1144 = vsel %vm1117, %v1115, %v594
      %v1145 = vsel %vm1117, %v1116, %v596
      %vm1146 = vcmask 130048
      %v1147 = vsel %vm1146, %v1118, %v629
      %v1148 = vsel %vm1146, %v1119, %v631
      %v1149 = vsel %vm1146, %v1120, %v633
      %v1150 = vsel %vm1146, %v1121, %v635
      %v1151 = vsel %vm1146, %v1122, %v637
      %v1152 = vsel %vm1146, %v1123, %v639
      %v1153 = vsel %vm1146, %v1124, %v641
      %v1154 = vsel %vm1146, %v1125, %v643
      %v1155 = vsel %vm1146, %v1126, %v645
      %v1156 = vsel %vm1146, %v1127, %v647
      %v1157 = vsel %vm1146, %v1128, %v649
      %v1158 = vsel %vm1146, %v1129, %v651
      %v1159 = vsel %vm1146, %v1130, %v653
      %v1160 = vsel %vm1146, %v1131, %v655
      %v1161 = vsel %vm1146, %v1132, %v657
      %v1162 = vsel %vm1146, %v1133, %v659
      %v1163 = vsel %vm1146, %v1134, %v661
      %v1164 = vsel %vm1146, %v1135, %v663
      %v1165 = vsel %vm1146, %v1136, %v665
      %v1166 = vsel %vm1146, %v1137, %v667
      %v1167 = vsel %vm1146, %v1138, %v669
      %v1168 = vsel %vm1146, %v1139, %v671
      %v1169 = vsel %vm1146, %v1140, %v673
      %v1170 = vsel %vm1146, %v1141, %v675
      %v1171 = vsel %vm1146, %v1142, %v677
      %v1172 = vsel %vm1146, %v1143, %v679
      %v1173 = vsel %vm1146, %v1144, %v681
      %v1174 = vsel %vm1146, %v1145, %v683
      %vm1175 = vcmask 162816
      %v1176 = vsel %vm1175, %v1147, %v716
      %v1177 = vsel %vm1175, %v1148, %v718
      %v1178 = vsel %vm1175, %v1149, %v720
      %v1179 = vsel %vm1175, %v1150, %v722
      %v1180 = vsel %vm1175, %v1151, %v724
      %v1181 = vsel %vm1175, %v1152, %v726
      %v1182 = vsel %vm1175, %v1153, %v728
      %v1183 = vsel %vm1175, %v1154, %v730
      %v1184 = vsel %vm1175, %v1155, %v732
      %v1185 = vsel %vm1175, %v1156, %v734
      %v1186 = vsel %vm1175, %v1157, %v736
      %v1187 = vsel %vm1175, %v1158, %v738
      %v1188 = vsel %vm1175, %v1159, %v740
      %v1189 = vsel %vm1175, %v1160, %v742
      %v1190 = vsel %vm1175, %v1161, %v744
      %v1191 = vsel %vm1175, %v1162, %v746
      %v1192 = vsel %vm1175, %v1163, %v748
      %v1193 = vsel %vm1175, %v1164, %v750
      %v1194 = vsel %vm1175, %v1165, %v752
      %v1195 = vsel %vm1175, %v1166, %v754
      %v1196 = vsel %vm1175, %v1167, %v756
      %v1197 = vsel %vm1175, %v1168, %v758
      %v1198 = vsel %vm1175, %v1169, %v760
      %v1199 = vsel %vm1175, %v1170, %v762
      %v1200 = vsel %vm1175, %v1171, %v764
      %v1201 = vsel %vm1175, %v1172, %v766
      %v1202 = vsel %vm1175, %v1173, %v768
      %v1203 = vsel %vm1175, %v1174, %v770
      %vm1204 = vcmask 195584
      %v1205 = vsel %vm1204, %v1176, %v802
      %v1206 = vsel %vm1204, %v1177, %v804
      %v1207 = vsel %vm1204, %v1178, %v806
      %v1208 = vsel %vm1204, %v1179, %v808
      %v1209 = vsel %vm1204, %v1180, %v810
      %v1210 = vsel %vm1204, %v1181, %v812
      %v1211 = vsel %vm1204, %v1182, %v814
      %v1212 = vsel %vm1204, %v1183, %v816
      %v1213 = vsel %vm1204, %v1184, %v818
      %v1214 = vsel %vm1204, %v1185, %v820
      %v1215 = vsel %vm1204, %v1186, %v822
      %v1216 = vsel %vm1204, %v1187, %v824
      %v1217 = vsel %vm1204, %v1188, %v826
      %v1218 = vsel %vm1204, %v1189, %v828
      %v1219 = vsel %vm1204, %v1190, %v830
      %v1220 = vsel %vm1204, %v1191, %v832
      %v1221 = vsel %vm1204, %v1192, %v834
      %v1222 = vsel %vm1204, %v1193, %v836
      %v1223 = vsel %vm1204, %v1194, %v838
      %v1224 = vsel %vm1204, %v1195, %v840
      %v1225 = vsel %vm1204, %v1196, %v842
      %v1226 = vsel %vm1204, %v1197, %v844
      %v1227 = vsel %vm1204, %v1198, %v846
      %v1228 = vsel %vm1204, %v1199, %v848
      %v1229 = vsel %vm1204, %v1200, %v850
      %v1230 = vsel %vm1204, %v1201, %v852
      %v1231 = vsel %vm1204, %v1202, %v854
      %v1232 = vsel %vm1204, %v1203, %v856
      %vm1233 = vcmask 228352
      %v1234 = vsel %vm1233, %v1205, %v889
      %v1235 = vsel %vm1233, %v1206, %v891
      %v1236 = vsel %vm1233, %v1207, %v893
      %v1237 = vsel %vm1233, %v1208, %v895
      %v1238 = vsel %vm1233, %v1209, %v897
      %v1239 = vsel %vm1233, %v1210, %v899
      %v1240 = vsel %vm1233, %v1211, %v901
      %v1241 = vsel %vm1233, %v1212, %v903
      %v1242 = vsel %vm1233, %v1213, %v905
      %v1243 = vsel %vm1233, %v1214, %v907
      %v1244 = vsel %vm1233, %v1215, %v909
      %v1245 = vsel %vm1233, %v1216, %v911
      %v1246 = vsel %vm1233, %v1217, %v913
      %v1247 = vsel %vm1233, %v1218, %v915
      %v1248 = vsel %vm1233, %v1219, %v917
      %v1249 = vsel %vm1233, %v1220, %v919
      %v1250 = vsel %vm1233, %v1221, %v921
      %v1251 = vsel %vm1233, %v1222, %v923
      %v1252 = vsel %vm1233, %v1223, %v925
      %v1253 = vsel %vm1233, %v1224, %v927
      %v1254 = vsel %vm1233, %v1225, %v929
      %v1255 = vsel %vm1233, %v1226, %v931
      %v1256 = vsel %vm1233, %v1227, %v933
      %v1257 = vsel %vm1233, %v1228, %v935
      %v1258 = vsel %vm1233, %v1229, %v937
      %v1259 = vsel %vm1233, %v1230, %v939
      %v1260 = vsel %vm1233, %v1231, %v941
      %v1261 = vsel %vm1233, %v1232, %v943
      %vm1262 = vcmask 261120
      %v1263 = vsel %vm1262, %v1234, %v976
      %v1264 = vsel %vm1262, %v1235, %v978
      %v1265 = vsel %vm1262, %v1236, %v980
      %v1266 = vsel %vm1262, %v1237, %v982
      %v1267 = vsel %vm1262, %v1238, %v984
      %v1268 = vsel %vm1262, %v1239, %v986
      %v1269 = vsel %vm1262, %v1240, %v988
      %v1270 = vsel %vm1262, %v1241, %v990
      %v1271 = vsel %vm1262, %v1242, %v992
      %v1272 = vsel %vm1262, %v1243, %v994
      %v1273 = vsel %vm1262, %v1244, %v996
      %v1274 = vsel %vm1262, %v1245, %v998
      %v1275 = vsel %vm1262, %v1246, %v1000
      %v1276 = vsel %vm1262, %v1247, %v1002
      %v1277 = vsel %vm1262, %v1248, %v1004
      %v1278 = vsel %vm1262, %v1249, %v1006
      %v1279 = vsel %vm1262, %v1250, %v1008
      %v1280 = vsel %vm1262, %v1251, %v1010
      %v1281 = vsel %vm1262, %v1252, %v1012
      %v1282 = vsel %vm1262, %v1253, %v1014
      %v1283 = vsel %vm1262, %v1254, %v1016
      %v1284 = vsel %vm1262, %v1255, %v1018
      %v1285 = vsel %vm1262, %v1256, %v1020
      %v1286 = vsel %vm1262, %v1257, %v1022
      %v1287 = vsel %vm1262, %v1258, %v1024
      %v1288 = vsel %vm1262, %v1259, %v1026
      %v1289 = vsel %vm1262, %v1260, %v1028
      %v1290 = vsel %vm1262, %v1261, %v1030
      %v1319 = vrot.slane %v1263, 2
      %v1320 = vrot.slane %v1263, 4
      %v1321 = vrot.slane %v1263, 6
      %v1322 = vrot.slane %v1264, 2
      %v1323 = vrot.slane %v1264, 4
      %v1324 = vrot.slane %v1265, 2
      %v1325 = vrot.slane %v1265, 4
      %v1326 = vrot.slane %v1265, 6
      %v1327 = vrot.slane %v1266, 2
      %v1328 = vrot.slane %v1266, 4
      %v1329 = vrot.slane %v1267, 2
      %v1330 = vrot.slane %v1267, 4
      %v1331 = vrot.slane %v1267, 6
      %v1332 = vrot.slane %v1268, 2
      %v1333 = vrot.slane %v1268, 4
      %v1334 = vrot.slane %v1269, 2
      %v1335 = vrot.slane %v1269, 4
      %v1336 = vrot.slane %v1269, 6
      %v1337 = vrot.slane %v1270, 2
      %v1338 = vrot.slane %v1270, 4
      %v1339 = vrot.slane %v1271, 2
      %v1340 = vrot.slane %v1271, 4
      %v1341 = vrot.slane %v1271, 6
      %v1342 = vrot.slane %v1272, 2
      %v1343 = vrot.slane %v1272, 4
      %v1344 = vrot.slane %v1273, 2
      %v1345 = vrot.slane %v1273, 4
      %v1346 = vrot.slane %v1273, 6
      %v1347 = vrot.slane %v1274, 2
      %v1348 = vrot.slane %v1274, 4
      %v1349 = vrot.slane %v1275, 2
      %v1350 = vrot.slane %v1275, 4
      %v1351 = vrot.slane %v1275, 6
      %v1352 = vrot.slane %v1276, 2
      %v1353 = vrot.slane %v1276, 4
      %v1354 = vrot.slane %v1277, 2
      %v1355 = vrot.slane %v1277, 4
      %v1356 = vrot.slane %v1277, 6
      %v1357 = vrot.slane %v1278, 2
      %v1358 = vrot.slane %v1278, 4
      %v1359 = vrot.slane %v1279, 2
      %v1360 = vrot.slane %v1279, 4
      %v1361 = vrot.slane %v1279, 6
      %v1362 = vrot.slane %v1280, 2
      %v1363 = vrot.slane %v1280, 4
      %v1364 = vrot.slane %v1281, 2
      %v1365 = vrot.slane %v1281, 4
      %v1366 = vrot.slane %v1281, 6
      %v1367 = vrot.slane %v1282, 2
      %v1368 = vrot.slane %v1282, 4
      %v1369 = vrot.slane %v1283, 2
      %v1370 = vrot.slane %v1283, 4
      %v1371 = vrot.slane %v1283, 6
      %v1372 = vrot.slane %v1284, 2
      %v1373 = vrot.slane %v1284, 4
      %v1374 = vrot.slane %v1285, 2
      %v1375 = vrot.slane %v1285, 4
      %v1376 = vrot.slane %v1285, 6
      %v1377 = vrot.slane %v1286, 2
      %v1378 = vrot.slane %v1286, 4
      %v1379 = vrot.slane %v1287, 2
      %v1380 = vrot.slane %v1287, 4
      %v1381 = vrot.slane %v1287, 6
      %v1382 = vrot.slane %v1288, 2
      %v1383 = vrot.slane %v1288, 4
      %v1384 = vrot.slane %v1289, 2
      %v1385 = vrot.slane %v1289, 4
      %v1386 = vrot.slane %v1289, 6
      %v1387 = vrot.slane %v1290, 2
      %v1388 = vrot.slane %v1290, 4
      %v1389 = vld [vmem:[%s1] sm:$0xff]
      %v1390 = vld [vmem:[%s1 + $0x8] sm:$0xff]
      %v1391 = vld [vmem:[%s1 + $0x10] sm:$0xff]
      %v1392 = vld [vmem:[%s1 + $0x18] sm:$0xff]
      %v1393 = vld [vmem:[%s1 + $0x20] sm:$0xf]
      %v1394 = vld [vmem:[%s2] sm:$0x1]
      %v1396 = vperm.slane %v1394, 0
      %1398 = vst [vmem:[#allocation1] ss:$4 sm:$0xff] %v1263
      %s1399 = scalar_lea.vmem [#allocation1], 1
      %1400 = vst [vmem:[%s1399] ss:$4 sm:$0xff] %v1319
      %s1401 = scalar_lea.vmem [#allocation1], 2
      %1402 = vst [vmem:[%s1401] ss:$4 sm:$0xff] %v1320
      %s1403 = scalar_lea.vmem [#allocation1], 3
      %1404 = vst [vmem:[%s1403] ss:$4 sm:$0xff] %v1321
      %s1405 = scalar_lea.vmem [#allocation1], 32
      %1406 = vst [vmem:[%s1405] ss:$4 sm:$0xff] %v1264
      %s1407 = scalar_lea.vmem [#allocation1], 33
      %1408 = vst [vmem:[%s1407] ss:$4 sm:$0xff] %v1322
      %s1409 = scalar_lea.vmem [#allocation1], 34
      %1410 = vst [vmem:[%s1409] ss:$4 sm:$0xff] %v1323
      %s1411 = scalar_lea.vmem [#allocation1], 35
      %1412 = vst [vmem:[%s1411] ss:$4 sm:$0xff] %v1265
      %v1413 = vld.sshfl [vmem:[#allocation1] sm:$0xff pattern:$0x73625140]
      %v1414 = vld.sshfl [vmem:[#allocation1 + $0x20] sm:$0xff pattern:$0x73625140]
      %1415 = vst [vmem:[#allocation1] ss:$4 sm:$0xff] %v1324
      %1416 = vst [vmem:[%s1399] ss:$4 sm:$0xff] %v1325
      %1417 = vst [vmem:[%s1401] ss:$4 sm:$0xff] %v1326
      %1418 = vst [vmem:[%s1403] ss:$4 sm:$0xff] %v1266
      %1419 = vst [vmem:[%s1405] ss:$4 sm:$0xff] %v1327
      %1420 = vst [vmem:[%s1407] ss:$4 sm:$0xff] %v1328
      %1421 = vst [vmem:[%s1409] ss:$4 sm:$0xff] %v1267
      %1422 = vst [vmem:[%s1411] ss:$4 sm:$0xff] %v1329
      %v1423 = vld.sshfl [vmem:[#allocation1] sm:$0xff pattern:$0x73625140]
      %v1424 = vld.sshfl [vmem:[#allocation1 + $0x20] sm:$0xff pattern:$0x73625140]
      %1425 = vst [vmem:[#allocation1] ss:$4 sm:$0xff] %v1330
      %1426 = vst [vmem:[%s1399] ss:$4 sm:$0xff] %v1331
      %1427 = vst [vmem:[%s1401] ss:$4 sm:$0xff] %v1268
      %1428 = vst [vmem:[%s1403] ss:$4 sm:$0xff] %v1332
      %1429 = vst [vmem:[%s1405] ss:$4 sm:$0xff] %v1333
      %1430 = vst [vmem:[%s1407] ss:$4 sm:$0xff] %v1269
      %1431 = vst [vmem:[%s1409] ss:$4 sm:$0xff] %v1334
      %1432 = vst [vmem:[%s1411] ss:$4 sm:$0xff] %v1335
      %v1433 = vld.sshfl [vmem:[#allocation1] sm:$0xff pattern:$0x73625140]
      %v1434 = vld.sshfl [vmem:[#allocation1 + $0x20] sm:$0xff pattern:$0x73625140]
      %1435 = vst [vmem:[#allocation1] ss:$4 sm:$0xff] %v1336
      %1436 = vst [vmem:[%s1399] ss:$4 sm:$0xff] %v1270
      %1437 = vst [vmem:[%s1401] ss:$4 sm:$0xff] %v1337
      %1438 = vst [vmem:[%s1403] ss:$4 sm:$0xff] %v1338
      %1439 = vst [vmem:[%s1405] ss:$4 sm:$0xff] %v1271
      %1440 = vst [vmem:[%s1407] ss:$4 sm:$0xff] %v1339
      %1441 = vst [vmem:[%s1409] ss:$4 sm:$0xff] %v1340
      %1442 = vst [vmem:[%s1411] ss:$4 sm:$0xff] %v1341
      %v1443 = vld.sshfl [vmem:[#allocation1] sm:$0xff pattern:$0x73625140]
      %v1444 = vld.sshfl [vmem:[#allocation1 + $0x20] sm:$0xff pattern:$0x73625140]
      %1445 = vst [vmem:[#allocation1] ss:$4 sm:$0xff] %v1272
      %1446 = vst [vmem:[%s1399] ss:$4 sm:$0xff] %v1342
      %1447 = vst [vmem:[%s1401] ss:$4 sm:$0xff] %v1343
      %1448 = vst [vmem:[%s1403] ss:$4 sm:$0xff] %v1273
      %1449 = vst [vmem:[%s1405] ss:$4 sm:$0xff] %v1344
      %1450 = vst [vmem:[%s1407] ss:$4 sm:$0xff] %v1345
      %1451 = vst [vmem:[%s1409] ss:$4 sm:$0xff] %v1346
      %1452 = vst [vmem:[%s1411] ss:$4 sm:$0xff] %v1274
      %v1453 = vld.sshfl [vmem:[#allocation1] sm:$0xff pattern:$0x73625140]
      %v1454 = vld.sshfl [vmem:[#allocation1 + $0x20] sm:$0xff pattern:$0x73625140]
      %1455 = vst [vmem:[#allocation1] ss:$4 sm:$0xff] %v1347
      %1456 = vst [vmem:[%s1399] ss:$4 sm:$0xff] %v1348
      %1457 = vst [vmem:[%s1401] ss:$4 sm:$0xff] %v1275
      %1458 = vst [vmem:[%s1403] ss:$4 sm:$0xff] %v1349
      %1459 = vst [vmem:[%s1405] ss:$4 sm:$0xff] %v1350
      %1460 = vst [vmem:[%s1407] ss:$4 sm:$0xff] %v1351
      %1461 = vst [vmem:[%s1409] ss:$4 sm:$0xff] %v1276
      %1462 = vst [vmem:[%s1411] ss:$4 sm:$0xff] %v1352
      %v1463 = vld.sshfl [vmem:[#allocation1] sm:$0xff pattern:$0x73625140]
      %v1464 = vld.sshfl [vmem:[#allocation1 + $0x20] sm:$0xff pattern:$0x73625140]
      %1465 = vst [vmem:[#allocation1] ss:$4 sm:$0xff] %v1353
      %1466 = vst [vmem:[%s1399] ss:$4 sm:$0xff] %v1277
      %1467 = vst [vmem:[%s1401] ss:$4 sm:$0xff] %v1354
      %1468 = vst [vmem:[%s1403] ss:$4 sm:$0xff] %v1355
      %1469 = vst [vmem:[%s1405] ss:$4 sm:$0xff] %v1356
      %1470 = vst [vmem:[%s1407] ss:$4 sm:$0xff] %v1278
      %1471 = vst [vmem:[%s1409] ss:$4 sm:$0xff] %v1357
      %1472 = vst [vmem:[%s1411] ss:$4 sm:$0xff] %v1358
      %v1473 = vld.sshfl [vmem:[#allocation1] sm:$0xff pattern:$0x73625140]
      %v1474 = vld.sshfl [vmem:[#allocation1 + $0x20] sm:$0xff pattern:$0x73625140]
      %1475 = vst [vmem:[#allocation1] ss:$4 sm:$0xff] %v1279
      %1476 = vst [vmem:[%s1399] ss:$4 sm:$0xff] %v1359
      %1477 = vst [vmem:[%s1401] ss:$4 sm:$0xff] %v1360
      %1478 = vst [vmem:[%s1403] ss:$4 sm:$0xff] %v1361
      %1479 = vst [vmem:[%s1405] ss:$4 sm:$0xff] %v1280
      %1480 = vst [vmem:[%s1407] ss:$4 sm:$0xff] %v1362
      %1481 = vst [vmem:[%s1409] ss:$4 sm:$0xff] %v1363
      %1482 = vst [vmem:[%s1411] ss:$4 sm:$0xff] %v1281
      %v1483 = vld.sshfl [vmem:[#allocation1] sm:$0xff pattern:$0x73625140]
      %v1484 = vld.sshfl [vmem:[#allocation1 + $0x20] sm:$0xff pattern:$0x73625140]
      %1485 = vst [vmem:[#allocation1] ss:$4 sm:$0xff] %v1364
      %1486 = vst [vmem:[%s1399] ss:$4 sm:$0xff] %v1365
      %1487 = vst [vmem:[%s1401] ss:$4 sm:$0xff] %v1366
      %1488 = vst [vmem:[%s1403] ss:$4 sm:$0xff] %v1282
      %1489 = vst [vmem:[%s1405] ss:$4 sm:$0xff] %v1367
      %1490 = vst [vmem:[%s1407] ss:$4 sm:$0xff] %v1368
      %1491 = vst [vmem:[%s1409] ss:$4 sm:$0xff] %v1283
      %1492 = vst [vmem:[%s1411] ss:$4 sm:$0xff] %v1369
      %v1493 = vld.sshfl [vmem:[#allocation1] sm:$0xff pattern:$0x73625140]
      %v1494 = vld.sshfl [vmem:[#allocation1 + $0x20] sm:$0xff pattern:$0x73625140]
      %1495 = vst [vmem:[#allocation1] ss:$4 sm:$0xff] %v1370
      %1496 = vst [vmem:[%s1399] ss:$4 sm:$0xff] %v1371
      %1497 = vst [vmem:[%s1401] ss:$4 sm:$0xff] %v1284
      %1498 = vst [vmem:[%s1403] ss:$4 sm:$0xff] %v1372
      %1499 = vst [vmem:[%s1405] ss:$4 sm:$0xff] %v1373
      %1500 = vst [vmem:[%s1407] ss:$4 sm:$0xff] %v1285
      %1501 = vst [vmem:[%s1409] ss:$4 sm:$0xff] %v1374
      %1502 = vst [vmem:[%s1411] ss:$4 sm:$0xff] %v1375
      %v1503 = vld.sshfl [vmem:[#allocation1] sm:$0xff pattern:$0x73625140]
      %v1504 = vld.sshfl [vmem:[#allocation1 + $0x20] sm:$0xff pattern:$0x73625140]
      %1505 = vst [vmem:[#allocation1] ss:$4 sm:$0xff] %v1376
      %1506 = vst [vmem:[%s1399] ss:$4 sm:$0xff] %v1286
      %1507 = vst [vmem:[%s1401] ss:$4 sm:$0xff] %v1377
      %1508 = vst [vmem:[%s1403] ss:$4 sm:$0xff] %v1378
      %1509 = vst [vmem:[%s1405] ss:$4 sm:$0xff] %v1287
      %1510 = vst [vmem:[%s1407] ss:$4 sm:$0xff] %v1379
      %1511 = vst [vmem:[%s1409] ss:$4 sm:$0xff] %v1380
      %1512 = vst [vmem:[%s1411] ss:$4 sm:$0xff] %v1381
      %v1513 = vld.sshfl [vmem:[#allocation1] sm:$0xff pattern:$0x73625140]
      %v1514 = vld.sshfl [vmem:[#allocation1 + $0x20] sm:$0xff pattern:$0x73625140]
      %1515 = vst [vmem:[#allocation1] ss:$4 sm:$0xff] %v1288
      %1516 = vst [vmem:[%s1399] ss:$4 sm:$0xff] %v1382
      %1517 = vst [vmem:[%s1401] ss:$4 sm:$0xff] %v1383
      %1518 = vst [vmem:[%s1403] ss:$4 sm:$0xff] %v1289
      %1519 = vst [vmem:[%s1405] ss:$4 sm:$0xff] %v1384
      %1520 = vst [vmem:[%s1407] ss:$4 sm:$0xff] %v1385
      %1521 = vst [vmem:[%s1409] ss:$4 sm:$0xff] %v1386
      %1522 = vst [vmem:[%s1411] ss:$4 sm:$0xff] %v1290
      %v1523 = vld.sshfl [vmem:[#allocation1] sm:$0xff pattern:$0x73625140]
      %v1524 = vld.sshfl [vmem:[#allocation1 + $0x20] sm:$0xff pattern:$0x73625140]
      %1525 = vst [vmem:[#allocation1] ss:$4 sm:$0xff] %v1387
      %1526 = vst [vmem:[%s1399] ss:$4 sm:$0xff] %v1388
      %v1527 = vld.sshfl [vmem:[#allocation1] sm:$0xff pattern:$0x73625140]
      %vm1528 = vcmask 293888
      %v1529 = vsel %vm1528, %v1413, 0
      %v1531 = vsel %vm1528, %v1414, 0
      %v1533 = vsel %vm1528, %v1423, 0
      %v1535 = vsel %vm1528, %v1424, 0
      %v1537 = vsel %vm1528, %v1433, 0
      %v1539 = vsel %vm1528, %v1434, 0
      %v1541 = vsel %vm1528, %v1443, 0
      %v1543 = vsel %vm1528, %v1444, 0
      %v1545 = vsel %vm1528, %v1453, 0
      %v1547 = vsel %vm1528, %v1454, 0
      %v1549 = vsel %vm1528, %v1463, 0
      %v1551 = vsel %vm1528, %v1464, 0
      %v1553 = vsel %vm1528, %v1473, 0
      %v1555 = vsel %vm1528, %v1474, 0
      %v1557 = vsel %vm1528, %v1483, 0
      %v1559 = vsel %vm1528, %v1484, 0
      %v1561 = vsel %vm1528, %v1493, 0
      %v1563 = vsel %vm1528, %v1494, 0
      %v1565 = vsel %vm1528, %v1503, 0
      %v1567 = vsel %vm1528, %v1504, 0
      %v1569 = vsel %vm1528, %v1513, 0
      %v1571 = vsel %vm1528, %v1514, 0
      %v1573 = vsel %vm1528, %v1523, 0
      %v1575 = vsel %vm1528, %v1524, 0
      %v1577 = vsel %vm1528, %v1527, 0
      %vm1579 = vcmask 1043456
      %v1581 = vsel %vm1579, %v1393, 0
      %1583 = vmatpush.msra.mxu0 0.0
      %1584 = vmatpush.msra.mxu0 0.0
      %1585 = vmatpush.msra.mxu0 0.0
      %1586 = vmatpush.msra.mxu0 0.0
      %1587 = vmatpush.msra.mxu0 0.0
      %1588 = vmatpush.msra.mxu0 0.0
      %1589 = vmatpush.msra.mxu0 0.0
      %1590 = vmatpush.msra.mxu0 0.0
      %1591 = vmatpush.msra.mxu0 0.0
      %1592 = vmatpush.msra.mxu0 0.0
      %1593 = vmatpush.msra.mxu0 0.0
      %1594 = vmatpush.msra.mxu0 %v1581
      %1595 = vmatpush.msra.mxu0 %v1392
      %1596 = vmatpush.msra.mxu0 %v1391
      %1597 = vmatpush.msra.mxu0 %v1390
      %1598 = vmatpush.msra.mxu0 %v1389
      %1599 = vmatmul.f32.gmra.mxu0 %v1529
      %v1600 = vpop.f32.mrf.mxu0
      %v1601 = vadd.f32 %v1396, %v1600
      %1602 = vmatmul.f32.gmra.mxu0 %v1531
      %v1603 = vpop.f32.mrf.mxu0
      %v1604 = vadd.f32 %v1396, %v1603
      %1605 = vmatmul.f32.gmra.mxu0 %v1533
      %v1606 = vpop.f32.mrf.mxu0
      %v1607 = vadd.f32 %v1396, %v1606
      %1608 = vmatmul.f32.gmra.mxu0 %v1535
      %v1609 = vpop.f32.mrf.mxu0
      %v1610 = vadd.f32 %v1396, %v1609
      %1611 = vmatmul.f32.gmra.mxu0 %v1537
      %v1612 = vpop.f32.mrf.mxu0
      %v1613 = vadd.f32 %v1396, %v1612
      %1614 = vmatmul.f32.gmra.mxu0 %v1539
      %v1615 = vpop.f32.mrf.mxu0
      %v1616 = vadd.f32 %v1396, %v1615
      %1617 = vmatmul.f32.gmra.mxu0 %v1541
      %v1618 = vpop.f32.mrf.mxu0
      %v1619 = vadd.f32 %v1396, %v1618
      %1620 = vmatmul.f32.gmra.mxu0 %v1543
      %v1621 = vpop.f32.mrf.mxu0
      %v1622 = vadd.f32 %v1396, %v1621
      %1623 = vmatmul.f32.gmra.mxu0 %v1545
      %v1624 = vpop.f32.mrf.mxu0
      %v1625 = vadd.f32 %v1396, %v1624
      %1626 = vmatmul.f32.gmra.mxu0 %v1547
      %v1627 = vpop.f32.mrf.mxu0
      %v1628 = vadd.f32 %v1396, %v1627
      %1629 = vmatmul.f32.gmra.mxu0 %v1549
      %v1630 = vpop.f32.mrf.mxu0
      %v1631 = vadd.f32 %v1396, %v1630
      %1632 = vmatmul.f32.gmra.mxu0 %v1551
      %v1633 = vpop.f32.mrf.mxu0
      %v1634 = vadd.f32 %v1396, %v1633
      %1635 = vmatmul.f32.gmra.mxu0 %v1553
      %v1636 = vpop.f32.mrf.mxu0
      %v1637 = vadd.f32 %v1396, %v1636
      %1638 = vmatmul.f32.gmra.mxu0 %v1555
      %v1639 = vpop.f32.mrf.mxu0
      %v1640 = vadd.f32 %v1396, %v1639
      %1641 = vmatmul.f32.gmra.mxu0 %v1557
      %v1642 = vpop.f32.mrf.mxu0
      %v1643 = vadd.f32 %v1396, %v1642
      %1644 = vmatmul.f32.gmra.mxu0 %v1559
      %v1645 = vpop.f32.mrf.mxu0
      %v1646 = vadd.f32 %v1396, %v1645
      %1647 = vmatmul.f32.gmra.mxu0 %v1561
      %v1648 = vpop.f32.mrf.mxu0
      %v1649 = vadd.f32 %v1396, %v1648
      %1650 = vmatmul.f32.gmra.mxu0 %v1563
      %v1651 = vpop.f32.mrf.mxu0
      %v1652 = vadd.f32 %v1396, %v1651
      %1653 = vmatmul.f32.gmra.mxu0 %v1565
      %v1654 = vpop.f32.mrf.mxu0
      %v1655 = vadd.f32 %v1396, %v1654
      %1656 = vmatmul.f32.gmra.mxu0 %v1567
      %v1657 = vpop.f32.mrf.mxu0
      %v1658 = vadd.f32 %v1396, %v1657
      %1659 = vmatmul.f32.gmra.mxu0 %v1569
      %v1660 = vpop.f32.mrf.mxu0
      %v1661 = vadd.f32 %v1396, %v1660
      %1662 = vmatmul.f32.gmra.mxu0 %v1571
      %v1663 = vpop.f32.mrf.mxu0
      %v1664 = vadd.f32 %v1396, %v1663
      %1665 = vmatmul.f32.gmra.mxu0 %v1573
      %v1666 = vpop.f32.mrf.mxu0
      %v1667 = vadd.f32 %v1396, %v1666
      %1668 = vmatmul.f32.gmra.mxu0 %v1575
      %v1669 = vpop.f32.mrf.mxu0
      %v1670 = vadd.f32 %v1396, %v1669
      %1671 = vmatmul.f32.gmra.mxu0 %v1577
      %v1672 = vpop.f32.mrf.mxu0
      %v1673 = vadd.f32 %v1396, %v1672
      %1674 = vdwg.mxu0
      %v1675 = vmax.f32 %v1601, 0.0
      %v1676 = vmax.f32 %v1604, 0.0
      %v1677 = vmax.f32 %v1607, 0.0
      %v1678 = vmax.f32 %v1610, 0.0
      %v1679 = vmax.f32 %v1613, 0.0
      %v1680 = vmax.f32 %v1616, 0.0
      %v1681 = vmax.f32 %v1619, 0.0
      %v1682 = vmax.f32 %v1622, 0.0
      %v1683 = vmax.f32 %v1625, 0.0
      %v1684 = vmax.f32 %v1628, 0.0
      %v1685 = vmax.f32 %v1631, 0.0
      %v1686 = vmax.f32 %v1634, 0.0
      %v1687 = vmax.f32 %v1637, 0.0
      %v1688 = vmax.f32 %v1640, 0.0
      %v1689 = vmax.f32 %v1643, 0.0
      %v1690 = vmax.f32 %v1646, 0.0
      %v1691 = vmax.f32 %v1649, 0.0
      %v1692 = vmax.f32 %v1652, 0.0
      %v1693 = vmax.f32 %v1655, 0.0
      %v1694 = vmax.f32 %v1658, 0.0
      %v1695 = vmax.f32 %v1661, 0.0
      %v1696 = vmax.f32 %v1664, 0.0
      %v1697 = vmax.f32 %v1667, 0.0
      %v1698 = vmax.f32 %v1670, 0.0
      %v1699 = vmax.f32 %v1673, 0.0
      %v1725 = vrot.slane %v1675, 2
      %v1726 = vrot.slane %v1675, 4
      %v1727 = vrot.slane %v1675, 6
      %v1728 = vrot.slane %v1676, 2
      %v1729 = vrot.slane %v1676, 4
      %v1730 = vrot.slane %v1676, 6
      %v1731 = vrot.slane %v1677, 2
      %v1732 = vrot.slane %v1677, 4
      %v1733 = vrot.slane %v1677, 6
      %v1734 = vrot.slane %v1678, 2
      %v1735 = vrot.slane %v1678, 4
      %v1736 = vrot.slane %v1678, 6
      %v1737 = vrot.slane %v1679, 2
      %v1738 = vrot.slane %v1679, 4
      %v1739 = vrot.slane %v1679, 6
      %v1740 = vrot.slane %v1680, 2
      %v1741 = vrot.slane %v1680, 4
      %v1742 = vrot.slane %v1680, 6
      %v1743 = vrot.slane %v1681, 2
      %v1744 = vrot.slane %v1681, 4
      %v1745 = vrot.slane %v1681, 6
      %v1746 = vrot.slane %v1682, 2
      %v1747 = vrot.slane %v1682, 4
      %v1748 = vrot.slane %v1682, 6
      %v1749 = vrot.slane %v1683, 2
      %v1750 = vrot.slane %v1683, 4
      %v1751 = vrot.slane %v1683, 6
      %v1752 = vrot.slane %v1684, 2
      %v1753 = vrot.slane %v1684, 4
      %v1754 = vrot.slane %v1684, 6
      %v1755 = vrot.slane %v1685, 2
      %v1756 = vrot.slane %v1685, 4
      %v1757 = vrot.slane %v1685, 6
      %v1758 = vrot.slane %v1686, 2
      %v1759 = vrot.slane %v1686, 4
      %v1760 = vrot.slane %v1686, 6
      %v1761 = vrot.slane %v1687, 2
      %v1762 = vrot.slane %v1687, 4
      %v1763 = vrot.slane %v1687, 6
      %v1764 = vrot.slane %v1688, 2
      %v1765 = vrot.slane %v1688, 4
      %v1766 = vrot.slane %v1688, 6
      %v1767 = vrot.slane %v1689, 2
      %v1768 = vrot.slane %v1689, 4
      %v1769 = vrot.slane %v1689, 6
      %v1770 = vrot.slane %v1690, 2
      %v1771 = vrot.slane %v1690, 4
      %v1772 = vrot.slane %v1690, 6
      %v1773 = vrot.slane %v1691, 2
      %v1774 = vrot.slane %v1691, 4
      %v1775 = vrot.slane %v1691, 6
      %v1776 = vrot.slane %v1692, 2
      %v1777 = vrot.slane %v1692, 4
      %v1778 = vrot.slane %v1692, 6
      %v1779 = vrot.slane %v1693, 2
      %v1780 = vrot.slane %v1693, 4
      %v1781 = vrot.slane %v1693, 6
      %v1782 = vrot.slane %v1694, 2
      %v1783 = vrot.slane %v1694, 4
      %v1784 = vrot.slane %v1694, 6
      %v1785 = vrot.slane %v1695, 2
      %v1786 = vrot.slane %v1695, 4
      %v1787 = vrot.slane %v1695, 6
      %v1788 = vrot.slane %v1696, 2
      %v1789 = vrot.slane %v1696, 4
      %v1790 = vrot.slane %v1696, 6
      %v1791 = vrot.slane %v1697, 2
      %v1792 = vrot.slane %v1697, 4
      %v1793 = vrot.slane %v1697, 6
      %v1794 = vrot.slane %v1698, 2
      %v1795 = vrot.slane %v1698, 4
      %v1796 = vrot.slane %v1698, 6
      %v1797 = vrot.slane %v1699, 2
      %1798 = vst [vmem:[#allocation1] ss:$4 sm:$0xff] %v1675
      %s1799 = scalar_lea.vmem [#allocation1], 1
      %1800 = vst [vmem:[%s1799] ss:$4 sm:$0xff] %v1725
      %s1801 = scalar_lea.vmem [#allocation1], 2
      %1802 = vst [vmem:[%s1801] ss:$4 sm:$0xff] %v1726
      %s1803 = scalar_lea.vmem [#allocation1], 3
      %1804 = vst [vmem:[%s1803] ss:$4 sm:$0xff] %v1727
      %s1805 = scalar_lea.vmem [#allocation1], 32
      %1806 = vst [vmem:[%s1805] ss:$4 sm:$0xff] %v1676
      %s1807 = scalar_lea.vmem [#allocation1], 33
      %1808 = vst [vmem:[%s1807] ss:$4 sm:$0xff] %v1728
      %v1809 = vld.sshfl [vmem:[#allocation1] sm:$0xff pattern:$0x73625140]
      %v1810 = vld.sshfl [vmem:[#allocation1 + $0x20] sm:$0xff pattern:$0x73625140]
      %1811 = vst [vmem:[#allocation1] ss:$4 sm:$0xff] %v1730
      %1812 = vst [vmem:[%s1799] ss:$4 sm:$0xff] %v1677
      %1813 = vst [vmem:[%s1801] ss:$4 sm:$0xff] %v1731
      %1814 = vst [vmem:[%s1803] ss:$4 sm:$0xff] %v1732
      %1815 = vst [vmem:[%s1805] ss:$4 sm:$0xff] %v1733
      %1816 = vst [vmem:[%s1807] ss:$4 sm:$0xff] %v1678
      %v1817 = vld.sshfl [vmem:[#allocation1] sm:$0xff pattern:$0x73625140]
      %v1818 = vld.sshfl [vmem:[#allocation1 + $0x20] sm:$0xff pattern:$0x73625140]
      %1819 = vst [vmem:[#allocation1] ss:$4 sm:$0xff] %v1735
      %1820 = vst [vmem:[%s1799] ss:$4 sm:$0xff] %v1736
      %1821 = vst [vmem:[%s1801] ss:$4 sm:$0xff] %v1679
      %1822 = vst [vmem:[%s1803] ss:$4 sm:$0xff] %v1737
      %1823 = vst [vmem:[%s1805] ss:$4 sm:$0xff] %v1738
      %1824 = vst [vmem:[%s1807] ss:$4 sm:$0xff] %v1739
      %v1825 = vld.sshfl [vmem:[#allocation1] sm:$0xff pattern:$0x73625140]
      %v1826 = vld.sshfl [vmem:[#allocation1 + $0x20] sm:$0xff pattern:$0x73625140]
      %1827 = vst [vmem:[#allocation1] ss:$4 sm:$0xff] %v1740
      %1828 = vst [vmem:[%s1799] ss:$4 sm:$0xff] %v1741
      %1829 = vst [vmem:[%s1801] ss:$4 sm:$0xff] %v1742
      %1830 = vst [vmem:[%s1803] ss:$4 sm:$0xff] %v1681
      %1831 = vst [vmem:[%s1805] ss:$4 sm:$0xff] %v1743
      %1832 = vst [vmem:[%s1807] ss:$4 sm:$0xff] %v1744
      %v1833 = vld.sshfl [vmem:[#allocation1] sm:$0xff pattern:$0x73625140]
      %v1834 = vld.sshfl [vmem:[#allocation1 + $0x20] sm:$0xff pattern:$0x73625140]
      %1835 = vst [vmem:[#allocation1] ss:$4 sm:$0xff] %v1682
      %1836 = vst [vmem:[%s1799] ss:$4 sm:$0xff] %v1746
      %1837 = vst [vmem:[%s1801] ss:$4 sm:$0xff] %v1747
      %1838 = vst [vmem:[%s1803] ss:$4 sm:$0xff] %v1748
      %1839 = vst [vmem:[%s1805] ss:$4 sm:$0xff] %v1683
      %1840 = vst [vmem:[%s1807] ss:$4 sm:$0xff] %v1749
      %v1841 = vld.sshfl [vmem:[#allocation1] sm:$0xff pattern:$0x73625140]
      %v1842 = vld.sshfl [vmem:[#allocation1 + $0x20] sm:$0xff pattern:$0x73625140]
      %1843 = vst [vmem:[#allocation1] ss:$4 sm:$0xff] %v1751
      %1844 = vst [vmem:[%s1799] ss:$4 sm:$0xff] %v1684
      %1845 = vst [vmem:[%s1801] ss:$4 sm:$0xff] %v1752
      %1846 = vst [vmem:[%s1803] ss:$4 sm:$0xff] %v1753
      %1847 = vst [vmem:[%s1805] ss:$4 sm:$0xff] %v1754
      %1848 = vst [vmem:[%s1807] ss:$4 sm:$0xff] %v1685
      %v1849 = vld.sshfl [vmem:[#allocation1] sm:$0xff pattern:$0x73625140]
      %v1850 = vld.sshfl [vmem:[#allocation1 + $0x20] sm:$0xff pattern:$0x73625140]
      %1851 = vst [vmem:[#allocation1] ss:$4 sm:$0xff] %v1756
      %1852 = vst [vmem:[%s1799] ss:$4 sm:$0xff] %v1757
      %1853 = vst [vmem:[%s1801] ss:$4 sm:$0xff] %v1686
      %1854 = vst [vmem:[%s1803] ss:$4 sm:$0xff] %v1758
      %1855 = vst [vmem:[%s1805] ss:$4 sm:$0xff] %v1759
      %1856 = vst [vmem:[%s1807] ss:$4 sm:$0xff] %v1760
      %v1857 = vld.sshfl [vmem:[#allocation1] sm:$0xff pattern:$0x73625140]
      %v1858 = vld.sshfl [vmem:[#allocation1 + $0x20] sm:$0xff pattern:$0x73625140]
      %1859 = vst [vmem:[#allocation1] ss:$4 sm:$0xff] %v1761
      %1860 = vst [vmem:[%s1799] ss:$4 sm:$0xff] %v1762
      %1861 = vst [vmem:[%s1801] ss:$4 sm:$0xff] %v1763
      %1862 = vst [vmem:[%s1803] ss:$4 sm:$0xff] %v1688
      %1863 = vst [vmem:[%s1805] ss:$4 sm:$0xff] %v1764
      %1864 = vst [vmem:[%s1807] ss:$4 sm:$0xff] %v1765
      %v1865 = vld.sshfl [vmem:[#allocation1] sm:$0xff pattern:$0x73625140]
      %v1866 = vld.sshfl [vmem:[#allocation1 + $0x20] sm:$0xff pattern:$0x73625140]
      %1867 = vst [vmem:[#allocation1] ss:$4 sm:$0xff] %v1689
      %1868 = vst [vmem:[%s1799] ss:$4 sm:$0xff] %v1767
      %1869 = vst [vmem:[%s1801] ss:$4 sm:$0xff] %v1768
      %1870 = vst [vmem:[%s1803] ss:$4 sm:$0xff] %v1769
      %1871 = vst [vmem:[%s1805] ss:$4 sm:$0xff] %v1690
      %1872 = vst [vmem:[%s1807] ss:$4 sm:$0xff] %v1770
      %v1873 = vld.sshfl [vmem:[#allocation1] sm:$0xff pattern:$0x73625140]
      %v1874 = vld.sshfl [vmem:[#allocation1 + $0x20] sm:$0xff pattern:$0x73625140]
      %1875 = vst [vmem:[#allocation1] ss:$4 sm:$0xff] %v1772
      %1876 = vst [vmem:[%s1799] ss:$4 sm:$0xff] %v1691
      %1877 = vst [vmem:[%s1801] ss:$4 sm:$0xff] %v1773
      %1878 = vst [vmem:[%s1803] ss:$4 sm:$0xff] %v1774
      %1879 = vst [vmem:[%s1805] ss:$4 sm:$0xff] %v1775
      %1880 = vst [vmem:[%s1807] ss:$4 sm:$0xff] %v1692
      %v1881 = vld.sshfl [vmem:[#allocation1] sm:$0xff pattern:$0x73625140]
      %v1882 = vld.sshfl [vmem:[#allocation1 + $0x20] sm:$0xff pattern:$0x73625140]
      %1883 = vst [vmem:[#allocation1] ss:$4 sm:$0xff] %v1777
      %1884 = vst [vmem:[%s1799] ss:$4 sm:$0xff] %v1778
      %1885 = vst [vmem:[%s1801] ss:$4 sm:$0xff] %v1693
      %1886 = vst [vmem:[%s1803] ss:$4 sm:$0xff] %v1779
      %1887 = vst [vmem:[%s1805] ss:$4 sm:$0xff] %v1780
      %1888 = vst [vmem:[%s1807] ss:$4 sm:$0xff] %v1781
      %v1889 = vld.sshfl [vmem:[#allocation1] sm:$0xff pattern:$0x73625140]
      %v1890 = vld.sshfl [vmem:[#allocation1 + $0x20] sm:$0xff pattern:$0x73625140]
      %1891 = vst [vmem:[#allocation1] ss:$4 sm:$0xff] %v1782
      %1892 = vst [vmem:[%s1799] ss:$4 sm:$0xff] %v1783
      %1893 = vst [vmem:[%s1801] ss:$4 sm:$0xff] %v1784
      %1894 = vst [vmem:[%s1803] ss:$4 sm:$0xff] %v1695
      %1895 = vst [vmem:[%s1805] ss:$4 sm:$0xff] %v1785
      %1896 = vst [vmem:[%s1807] ss:$4 sm:$0xff] %v1786
      %v1897 = vld.sshfl [vmem:[#allocation1] sm:$0xff pattern:$0x73625140]
      %v1898 = vld.sshfl [vmem:[#allocation1 + $0x20] sm:$0xff pattern:$0x73625140]
      %1923 = vst [vmem:[#allocation1] ss:$4 sm:$0xff] %v1675
      %s1924 = scalar_lea.vmem [#allocation1], 1
      %1925 = vst [vmem:[%s1924] ss:$4 sm:$0xff] %v1725
      %s1926 = scalar_lea.vmem [#allocation1], 2
      %1927 = vst [vmem:[%s1926] ss:$4 sm:$0xff] %v1726
      %s1928 = scalar_lea.vmem [#allocation1], 3
      %1929 = vst [vmem:[%s1928] ss:$4 sm:$0xff] %v1727
      %s1930 = scalar_lea.vmem [#allocation1], 32
      %1931 = vst [vmem:[%s1930] ss:$4 sm:$0xff] %v1676
      %s1932 = scalar_lea.vmem [#allocation1], 33
      %1933 = vst [vmem:[%s1932] ss:$4 sm:$0xff] %v1728
      %s1934 = scalar_lea.vmem [#allocation1], 34
      %1935 = vst [vmem:[%s1934] ss:$4 sm:$0xff] %v1729
      %v1936 = vld.sshfl [vmem:[#allocation1] sm:$0xff pattern:$0x73625140]
      %v1937 = vld.sshfl [vmem:[#allocation1 + $0x20] sm:$0xff pattern:$0x73625140]
      %1938 = vst [vmem:[#allocation1] ss:$4 sm:$0xff] %v1730
      %1939 = vst [vmem:[%s1924] ss:$4 sm:$0xff] %v1677
      %1940 = vst [vmem:[%s1926] ss:$4 sm:$0xff] %v1731
      %1941 = vst [vmem:[%s1928] ss:$4 sm:$0xff] %v1732
      %1942 = vst [vmem:[%s1930] ss:$4 sm:$0xff] %v1733
      %1943 = vst [vmem:[%s1932] ss:$4 sm:$0xff] %v1678
      %1944 = vst [vmem:[%s1934] ss:$4 sm:$0xff] %v1734
      %v1945 = vld.sshfl [vmem:[#allocation1] sm:$0xff pattern:$0x73625140]
      %v1946 = vld.sshfl [vmem:[#allocation1 + $0x20] sm:$0xff pattern:$0x73625140]
      %1947 = vst [vmem:[#allocation1] ss:$4 sm:$0xff] %v1735
      %1948 = vst [vmem:[%s1924] ss:$4 sm:$0xff] %v1736
      %1949 = vst [vmem:[%s1926] ss:$4 sm:$0xff] %v1679
      %1950 = vst [vmem:[%s1928] ss:$4 sm:$0xff] %v1737
      %1951 = vst [vmem:[%s1930] ss:$4 sm:$0xff] %v1738
      %1952 = vst [vmem:[%s1932] ss:$4 sm:$0xff] %v1739
      %1953 = vst [vmem:[%s1934] ss:$4 sm:$0xff] %v1680
      %v1954 = vld.sshfl [vmem:[#allocation1] sm:$0xff pattern:$0x73625140]
      %v1955 = vld.sshfl [vmem:[#allocation1 + $0x20] sm:$0xff pattern:$0x73625140]
      %1956 = vst [vmem:[#allocation1] ss:$4 sm:$0xff] %v1740
      %1957 = vst [vmem:[%s1924] ss:$4 sm:$0xff] %v1741
      %1958 = vst [vmem:[%s1926] ss:$4 sm:$0xff] %v1742
      %1959 = vst [vmem:[%s1928] ss:$4 sm:$0xff] %v1681
      %1960 = vst [vmem:[%s1930] ss:$4 sm:$0xff] %v1743
      %1961 = vst [vmem:[%s1932] ss:$4 sm:$0xff] %v1744
      %1962 = vst [vmem:[%s1934] ss:$4 sm:$0xff] %v1745
      %v1963 = vld.sshfl [vmem:[#allocation1] sm:$0xff pattern:$0x73625140]
      %v1964 = vld.sshfl [vmem:[#allocation1 + $0x20] sm:$0xff pattern:$0x73625140]
      %1965 = vst [vmem:[#allocation1] ss:$4 sm:$0xff] %v1682
      %1966 = vst [vmem:[%s1924] ss:$4 sm:$0xff] %v1746
      %1967 = vst [vmem:[%s1926] ss:$4 sm:$0xff] %v1747
      %1968 = vst [vmem:[%s1928] ss:$4 sm:$0xff] %v1748
      %1969 = vst [vmem:[%s1930] ss:$4 sm:$0xff] %v1683
      %1970 = vst [vmem:[%s1932] ss:$4 sm:$0xff] %v1749
      %1971 = vst [vmem:[%s1934] ss:$4 sm:$0xff] %v1750
      %v1972 = vld.sshfl [vmem:[#allocation1] sm:$0xff pattern:$0x73625140]
      %v1973 = vld.sshfl [vmem:[#allocation1 + $0x20] sm:$0xff pattern:$0x73625140]
      %1974 = vst [vmem:[#allocation1] ss:$4 sm:$0xff] %v1751
      %1975 = vst [vmem:[%s1924] ss:$4 sm:$0xff] %v1684
      %1976 = vst [vmem:[%s1926] ss:$4 sm:$0xff] %v1752
      %1977 = vst [vmem:[%s1928] ss:$4 sm:$0xff] %v1753
      %1978 = vst [vmem:[%s1930] ss:$4 sm:$0xff] %v1754
      %1979 = vst [vmem:[%s1932] ss:$4 sm:$0xff] %v1685
      %1980 = vst [vmem:[%s1934] ss:$4 sm:$0xff] %v1755
      %v1981 = vld.sshfl [vmem:[#allocation1] sm:$0xff pattern:$0x73625140]
      %v1982 = vld.sshfl [vmem:[#allocation1 + $0x20] sm:$0xff pattern:$0x73625140]
      %1983 = vst [vmem:[#allocation1] ss:$4 sm:$0xff] %v1756
      %1984 = vst [vmem:[%s1924] ss:$4 sm:$0xff] %v1757
      %1985 = vst [vmem:[%s1926] ss:$4 sm:$0xff] %v1686
      %1986 = vst [vmem:[%s1928] ss:$4 sm:$0xff] %v1758
      %1987 = vst [vmem:[%s1930] ss:$4 sm:$0xff] %v1759
      %1988 = vst [vmem:[%s1932] ss:$4 sm:$0xff] %v1760
      %1989 = vst [vmem:[%s1934] ss:$4 sm:$0xff] %v1687
      %v1990 = vld.sshfl [vmem:[#allocation1] sm:$0xff pattern:$0x73625140]
      %v1991 = vld.sshfl [vmem:[#allocation1 + $0x20] sm:$0xff pattern:$0x73625140]
      %1992 = vst [vmem:[#allocation1] ss:$4 sm:$0xff] %v1761
      %1993 = vst [vmem:[%s1924] ss:$4 sm:$0xff] %v1762
      %1994 = vst [vmem:[%s1926] ss:$4 sm:$0xff] %v1763
      %1995 = vst [vmem:[%s1928] ss:$4 sm:$0xff] %v1688
      %1996 = vst [vmem:[%s1930] ss:$4 sm:$0xff] %v1764
      %1997 = vst [vmem:[%s1932] ss:$4 sm:$0xff] %v1765
      %1998 = vst [vmem:[%s1934] ss:$4 sm:$0xff] %v1766
      %v1999 = vld.sshfl [vmem:[#allocation1] sm:$0xff pattern:$0x73625140]
      %v2000 = vld.sshfl [vmem:[#allocation1 + $0x20] sm:$0xff pattern:$0x73625140]
      %2001 = vst [vmem:[#allocation1] ss:$4 sm:$0xff] %v1689
      %2002 = vst [vmem:[%s1924] ss:$4 sm:$0xff] %v1767
      %2003 = vst [vmem:[%s1926] ss:$4 sm:$0xff] %v1768
      %2004 = vst [vmem:[%s1928] ss:$4 sm:$0xff] %v1769
      %2005 = vst [vmem:[%s1930] ss:$4 sm:$0xff] %v1690
      %2006 = vst [vmem:[%s1932] ss:$4 sm:$0xff] %v1770
      %2007 = vst [vmem:[%s1934] ss:$4 sm:$0xff] %v1771
      %v2008 = vld.sshfl [vmem:[#allocation1] sm:$0xff pattern:$0x73625140]
      %v2009 = vld.sshfl [vmem:[#allocation1 + $0x20] sm:$0xff pattern:$0x73625140]
      %2010 = vst [vmem:[#allocation1] ss:$4 sm:$0xff] %v1772
      %2011 = vst [vmem:[%s1924] ss:$4 sm:$0xff] %v1691
      %2012 = vst [vmem:[%s1926] ss:$4 sm:$0xff] %v1773
      %2013 = vst [vmem:[%s1928] ss:$4 sm:$0xff] %v1774
      %2014 = vst [vmem:[%s1930] ss:$4 sm:$0xff] %v1775
      %2015 = vst [vmem:[%s1932] ss:$4 sm:$0xff] %v1692
      %2016 = vst [vmem:[%s1934] ss:$4 sm:$0xff] %v1776
      %v2017 = vld.sshfl [vmem:[#allocation1] sm:$0xff pattern:$0x73625140]
      %v2018 = vld.sshfl [vmem:[#allocation1 + $0x20] sm:$0xff pattern:$0x73625140]
      %2019 = vst [vmem:[#allocation1] ss:$4 sm:$0xff] %v1777
      %2020 = vst [vmem:[%s1924] ss:$4 sm:$0xff] %v1778
      %2021 = vst [vmem:[%s1926] ss:$4 sm:$0xff] %v1693
      %2022 = vst [vmem:[%s1928] ss:$4 sm:$0xff] %v1779
      %2023 = vst [vmem:[%s1930] ss:$4 sm:$0xff] %v1780
      %2024 = vst [vmem:[%s1932] ss:$4 sm:$0xff] %v1781
      %2025 = vst [vmem:[%s1934] ss:$4 sm:$0xff] %v1694
      %v2026 = vld.sshfl [vmem:[#allocation1] sm:$0xff pattern:$0x73625140]
      %v2027 = vld.sshfl [vmem:[#allocation1 + $0x20] sm:$0xff pattern:$0x73625140]
      %2028 = vst [vmem:[#allocation1] ss:$4 sm:$0xff] %v1782
      %2029 = vst [vmem:[%s1924] ss:$4 sm:$0xff] %v1783
      %2030 = vst [vmem:[%s1926] ss:$4 sm:$0xff] %v1784
      %2031 = vst [vmem:[%s1928] ss:$4 sm:$0xff] %v1695
      %2032 = vst [vmem:[%s1930] ss:$4 sm:$0xff] %v1785
      %2033 = vst [vmem:[%s1932] ss:$4 sm:$0xff] %v1786
      %2034 = vst [vmem:[%s1934] ss:$4 sm:$0xff] %v1787
      %v2035 = vld.sshfl [vmem:[#allocation1] sm:$0xff pattern:$0x73625140]
      %v2036 = vld.sshfl [vmem:[#allocation1 + $0x20] sm:$0xff pattern:$0x73625140]
      %v2037 = vrot.slane %v1936, 1
      %v2038 = vrot.slane %v1937, 1
      %v2039 = vsel %vm285, %v2037, %v2038
      %v2040 = vrot.slane %v1945, 1
      %v2041 = vrot.slane %v1946, 1
      %v2042 = vsel %vm285, %v2040, %v2041
      %v2043 = vrot.slane %v1954, 1
      %v2044 = vrot.slane %v1955, 1
      %v2045 = vsel %vm285, %v2043, %v2044
      %v2046 = vrot.slane %v1963, 1
      %v2047 = vrot.slane %v1964, 1
      %v2048 = vsel %vm285, %v2046, %v2047
      %v2049 = vrot.slane %v1972, 1
      %v2050 = vrot.slane %v1973, 1
      %v2051 = vsel %vm285, %v2049, %v2050
      %v2052 = vrot.slane %v1981, 1
      %v2053 = vrot.slane %v1982, 1
      %v2054 = vsel %vm285, %v2052, %v2053
      %v2055 = vrot.slane %v1990, 1
      %v2056 = vrot.slane %v1991, 1
      %v2057 = vsel %vm285, %v2055, %v2056
      %v2058 = vrot.slane %v1999, 1
      %v2059 = vrot.slane %v2000, 1
      %v2060 = vsel %vm285, %v2058, %v2059
      %v2061 = vrot.slane %v2008, 1
      %v2062 = vrot.slane %v2009, 1
      %v2063 = vsel %vm285, %v2061, %v2062
      %v2064 = vrot.slane %v2017, 1
      %v2065 = vrot.slane %v2018, 1
      %v2066 = vsel %vm285, %v2064, %v2065
      %v2067 = vrot.slane %v2026, 1
      %v2068 = vrot.slane %v2027, 1
      %v2069 = vsel %vm285, %v2067, %v2068
      %v2070 = vrot.slane %v2035, 1
      %v2071 = vrot.slane %v2036, 1
      %v2072 = vsel %vm285, %v2070, %v2071
      %2073 = vrot.lane.b32.xlu0 %v2039, 8
      %v2074 = vpop.permute.xlu0 %2073
      %2075 = vrot.lane.b32.xlu0 %v2038, 8
      %v2076 = vpop.permute.xlu0 %2075
      %2077 = vrot.lane.b32.xlu0 %v2042, 8
      %v2078 = vpop.permute.xlu0 %2077
      %2079 = vrot.lane.b32.xlu0 %v2041, 8
      %v2080 = vpop.permute.xlu0 %2079
      %2081 = vrot.lane.b32.xlu0 %v2045, 8
      %v2082 = vpop.permute.xlu0 %2081
      %2083 = vrot.lane.b32.xlu0 %v2044, 8
      %v2084 = vpop.permute.xlu0 %2083
      %2085 = vrot.lane.b32.xlu0 %v2048, 8
      %v2086 = vpop.permute.xlu0 %2085
      %2087 = vrot.lane.b32.xlu0 %v2047, 8
      %v2088 = vpop.permute.xlu0 %2087
      %2089 = vrot.lane.b32.xlu0 %v2051, 8
      %v2090 = vpop.permute.xlu0 %2089
      %2091 = vrot.lane.b32.xlu0 %v2050, 8
      %v2092 = vpop.permute.xlu0 %2091
      %2093 = vrot.lane.b32.xlu0 %v2054, 8
      %v2094 = vpop.permute.xlu0 %2093
      %2095 = vrot.lane.b32.xlu0 %v2053, 8
      %v2096 = vpop.permute.xlu0 %2095
      %2097 = vrot.lane.b32.xlu0 %v2057, 8
      %v2098 = vpop.permute.xlu0 %2097
      %2099 = vrot.lane.b32.xlu0 %v2056, 8
      %v2100 = vpop.permute.xlu0 %2099
      %2101 = vrot.lane.b32.xlu0 %v2060, 8
      %v2102 = vpop.permute.xlu0 %2101
      %2103 = vrot.lane.b32.xlu0 %v2059, 8
      %v2104 = vpop.permute.xlu0 %2103
      %2105 = vrot.lane.b32.xlu0 %v2063, 8
      %v2106 = vpop.permute.xlu0 %2105
      %2107 = vrot.lane.b32.xlu0 %v2062, 8
      %v2108 = vpop.permute.xlu0 %2107
      %2109 = vrot.lane.b32.xlu0 %v2066, 8
      %v2110 = vpop.permute.xlu0 %2109
      %2111 = vrot.lane.b32.xlu0 %v2065, 8
      %v2112 = vpop.permute.xlu0 %2111
      %2113 = vrot.lane.b32.xlu0 %v2069, 8
      %v2114 = vpop.permute.xlu0 %2113
      %2115 = vrot.lane.b32.xlu0 %v2068, 8
      %v2116 = vpop.permute.xlu0 %2115
      %2117 = vrot.lane.b32.xlu0 %v2072, 8
      %v2118 = vpop.permute.xlu0 %2117
      %2119 = vrot.lane.b32.xlu0 %v2071, 8
      %v2120 = vpop.permute.xlu0 %2119
      %2145 = vst [vmem:[#allocation1] ss:$4 sm:$0xff] %v1725
      %s2146 = scalar_lea.vmem [#allocation1], 1
      %2147 = vst [vmem:[%s2146] ss:$4 sm:$0xff] %v1726
      %s2148 = scalar_lea.vmem [#allocation1], 2
      %2149 = vst [vmem:[%s2148] ss:$4 sm:$0xff] %v1727
      %s2150 = scalar_lea.vmem [#allocation1], 3
      %2151 = vst [vmem:[%s2150] ss:$4 sm:$0xff] %v1676
      %s2152 = scalar_lea.vmem [#allocation1], 32
      %2153 = vst [vmem:[%s2152] ss:$4 sm:$0xff] %v1728
      %s2154 = scalar_lea.vmem [#allocation1], 33
      %2155 = vst [vmem:[%s2154] ss:$4 sm:$0xff] %v1729
      %v2156 = vld.sshfl [vmem:[#allocation1] sm:$0xff pattern:$0x73625140]
      %v2157 = vld.sshfl [vmem:[#allocation1 + $0x20] sm:$0xff pattern:$0x73625140]
      %2158 = vst [vmem:[#allocation1] ss:$4 sm:$0xff] %v1677
      %2159 = vst [vmem:[%s2146] ss:$4 sm:$0xff] %v1731
      %2160 = vst [vmem:[%s2148] ss:$4 sm:$0xff] %v1732
      %2161 = vst [vmem:[%s2150] ss:$4 sm:$0xff] %v1733
      %2162 = vst [vmem:[%s2152] ss:$4 sm:$0xff] %v1678
      %2163 = vst [vmem:[%s2154] ss:$4 sm:$0xff] %v1734
      %v2164 = vld.sshfl [vmem:[#allocation1] sm:$0xff pattern:$0x73625140]
      %v2165 = vld.sshfl [vmem:[#allocation1 + $0x20] sm:$0xff pattern:$0x73625140]
      %2166 = vst [vmem:[#allocation1] ss:$4 sm:$0xff] %v1736
      %2167 = vst [vmem:[%s2146] ss:$4 sm:$0xff] %v1679
      %2168 = vst [vmem:[%s2148] ss:$4 sm:$0xff] %v1737
      %2169 = vst [vmem:[%s2150] ss:$4 sm:$0xff] %v1738
      %2170 = vst [vmem:[%s2152] ss:$4 sm:$0xff] %v1739
      %2171 = vst [vmem:[%s2154] ss:$4 sm:$0xff] %v1680
      %v2172 = vld.sshfl [vmem:[#allocation1] sm:$0xff pattern:$0x73625140]
      %v2173 = vld.sshfl [vmem:[#allocation1 + $0x20] sm:$0xff pattern:$0x73625140]
      %2174 = vst [vmem:[#allocation1] ss:$4 sm:$0xff] %v1741
      %2175 = vst [vmem:[%s2146] ss:$4 sm:$0xff] %v1742
      %2176 = vst [vmem:[%s2148] ss:$4 sm:$0xff] %v1681
      %2177 = vst [vmem:[%s2150] ss:$4 sm:$0xff] %v1743
      %2178 = vst [vmem:[%s2152] ss:$4 sm:$0xff] %v1744
      %2179 = vst [vmem:[%s2154] ss:$4 sm:$0xff] %v1745
      %v2180 = vld.sshfl [vmem:[#allocation1] sm:$0xff pattern:$0x73625140]
      %v2181 = vld.sshfl [vmem:[#allocation1 + $0x20] sm:$0xff pattern:$0x73625140]
      %2182 = vst [vmem:[#allocation1] ss:$4 sm:$0xff] %v1746
      %2183 = vst [vmem:[%s2146] ss:$4 sm:$0xff] %v1747
      %2184 = vst [vmem:[%s2148] ss:$4 sm:$0xff] %v1748
      %2185 = vst [vmem:[%s2150] ss:$4 sm:$0xff] %v1683
      %2186 = vst [vmem:[%s2152] ss:$4 sm:$0xff] %v1749
      %2187 = vst [vmem:[%s2154] ss:$4 sm:$0xff] %v1750
      %v2188 = vld.sshfl [vmem:[#allocation1] sm:$0xff pattern:$0x73625140]
      %v2189 = vld.sshfl [vmem:[#allocation1 + $0x20] sm:$0xff pattern:$0x73625140]
      %2190 = vst [vmem:[#allocation1] ss:$4 sm:$0xff] %v1684
      %2191 = vst [vmem:[%s2146] ss:$4 sm:$0xff] %v1752
      %2192 = vst [vmem:[%s2148] ss:$4 sm:$0xff] %v1753
      %2193 = vst [vmem:[%s2150] ss:$4 sm:$0xff] %v1754
      %2194 = vst [vmem:[%s2152] ss:$4 sm:$0xff] %v1685
      %2195 = vst [vmem:[%s2154] ss:$4 sm:$0xff] %v1755
      %v2196 = vld.sshfl [vmem:[#allocation1] sm:$0xff pattern:$0x73625140]
      %v2197 = vld.sshfl [vmem:[#allocation1 + $0x20] sm:$0xff pattern:$0x73625140]
      %2198 = vst [vmem:[#allocation1] ss:$4 sm:$0xff] %v1757
      %2199 = vst [vmem:[%s2146] ss:$4 sm:$0xff] %v1686
      %2200 = vst [vmem:[%s2148] ss:$4 sm:$0xff] %v1758
      %2201 = vst [vmem:[%s2150] ss:$4 sm:$0xff] %v1759
      %2202 = vst [vmem:[%s2152] ss:$4 sm:$0xff] %v1760
      %2203 = vst [vmem:[%s2154] ss:$4 sm:$0xff] %v1687
      %v2204 = vld.sshfl [vmem:[#allocation1] sm:$0xff pattern:$0x73625140]
      %v2205 = vld.sshfl [vmem:[#allocation1 + $0x20] sm:$0xff pattern:$0x73625140]
      %2206 = vst [vmem:[#allocation1] ss:$4 sm:$0xff] %v1762
      %2207 = vst [vmem:[%s2146] ss:$4 sm:$0xff] %v1763
      %2208 = vst [vmem:[%s2148] ss:$4 sm:$0xff] %v1688
      %2209 = vst [vmem:[%s2150] ss:$4 sm:$0xff] %v1764
      %2210 = vst [vmem:[%s2152] ss:$4 sm:$0xff] %v1765
      %2211 = vst [vmem:[%s2154] ss:$4 sm:$0xff] %v1766
      %v2212 = vld.sshfl [vmem:[#allocation1] sm:$0xff pattern:$0x73625140]
      %v2213 = vld.sshfl [vmem:[#allocation1 + $0x20] sm:$0xff pattern:$0x73625140]
      %2214 = vst [vmem:[#allocation1] ss:$4 sm:$0xff] %v1767
      %2215 = vst [vmem:[%s2146] ss:$4 sm:$0xff] %v1768
      %2216 = vst [vmem:[%s2148] ss:$4 sm:$0xff] %v1769
      %2217 = vst [vmem:[%s2150] ss:$4 sm:$0xff] %v1690
      %2218 = vst [vmem:[%s2152] ss:$4 sm:$0xff] %v1770
      %2219 = vst [vmem:[%s2154] ss:$4 sm:$0xff] %v1771
      %v2220 = vld.sshfl [vmem:[#allocation1] sm:$0xff pattern:$0x73625140]
      %v2221 = vld.sshfl [vmem:[#allocation1 + $0x20] sm:$0xff pattern:$0x73625140]
      %2222 = vst [vmem:[#allocation1] ss:$4 sm:$0xff] %v1691
      %2223 = vst [vmem:[%s2146] ss:$4 sm:$0xff] %v1773
      %2224 = vst [vmem:[%s2148] ss:$4 sm:$0xff] %v1774
      %2225 = vst [vmem:[%s2150] ss:$4 sm:$0xff] %v1775
      %2226 = vst [vmem:[%s2152] ss:$4 sm:$0xff] %v1692
      %2227 = vst [vmem:[%s2154] ss:$4 sm:$0xff] %v1776
      %v2228 = vld.sshfl [vmem:[#allocation1] sm:$0xff pattern:$0x73625140]
      %v2229 = vld.sshfl [vmem:[#allocation1 + $0x20] sm:$0xff pattern:$0x73625140]
      %2230 = vst [vmem:[#allocation1] ss:$4 sm:$0xff] %v1778
      %2231 = vst [vmem:[%s2146] ss:$4 sm:$0xff] %v1693
      %2232 = vst [vmem:[%s2148] ss:$4 sm:$0xff] %v1779
      %2233 = vst [vmem:[%s2150] ss:$4 sm:$0xff] %v1780
      %2234 = vst [vmem:[%s2152] ss:$4 sm:$0xff] %v1781
      %2235 = vst [vmem:[%s2154] ss:$4 sm:$0xff] %v1694
      %v2236 = vld.sshfl [vmem:[#allocation1] sm:$0xff pattern:$0x73625140]
      %v2237 = vld.sshfl [vmem:[#allocation1 + $0x20] sm:$0xff pattern:$0x73625140]
      %2238 = vst [vmem:[#allocation1] ss:$4 sm:$0xff] %v1783
      %2239 = vst [vmem:[%s2146] ss:$4 sm:$0xff] %v1784
      %2240 = vst [vmem:[%s2148] ss:$4 sm:$0xff] %v1695
      %2241 = vst [vmem:[%s2150] ss:$4 sm:$0xff] %v1785
      %2242 = vst [vmem:[%s2152] ss:$4 sm:$0xff] %v1786
      %2243 = vst [vmem:[%s2154] ss:$4 sm:$0xff] %v1787
      %v2244 = vld.sshfl [vmem:[#allocation1] sm:$0xff pattern:$0x73625140]
      %v2245 = vld.sshfl [vmem:[#allocation1 + $0x20] sm:$0xff pattern:$0x73625140]
      %2246 = vrot.lane.b32.xlu0 %v2156, 16
      %v2247 = vpop.permute.xlu0 %2246
      %2248 = vrot.lane.b32.xlu0 %v2157, 16
      %v2249 = vpop.permute.xlu0 %2248
      %2250 = vrot.lane.b32.xlu0 %v2164, 16
      %v2251 = vpop.permute.xlu0 %2250
      %2252 = vrot.lane.b32.xlu0 %v2165, 16
      %v2253 = vpop.permute.xlu0 %2252
      %2254 = vrot.lane.b32.xlu0 %v2172, 16
      %v2255 = vpop.permute.xlu0 %2254
      %2256 = vrot.lane.b32.xlu0 %v2173, 16
      %v2257 = vpop.permute.xlu0 %2256
      %2258 = vrot.lane.b32.xlu0 %v2180, 16
      %v2259 = vpop.permute.xlu0 %2258
      %2260 = vrot.lane.b32.xlu0 %v2181, 16
      %v2261 = vpop.permute.xlu0 %2260
      %2262 = vrot.lane.b32.xlu0 %v2188, 16
      %v2263 = vpop.permute.xlu0 %2262
      %2264 = vrot.lane.b32.xlu0 %v2189, 16
      %v2265 = vpop.permute.xlu0 %2264
      %2266 = vrot.lane.b32.xlu0 %v2196, 16
      %v2267 = vpop.permute.xlu0 %2266
      %2268 = vrot.lane.b32.xlu0 %v2197, 16
      %v2269 = vpop.permute.xlu0 %2268
      %2270 = vrot.lane.b32.xlu0 %v2204, 16
      %v2271 = vpop.permute.xlu0 %2270
      %2272 = vrot.lane.b32.xlu0 %v2205, 16
      %v2273 = vpop.permute.xlu0 %2272
      %2274 = vrot.lane.b32.xlu0 %v2212, 16
      %v2275 = vpop.permute.xlu0 %2274
      %2276 = vrot.lane.b32.xlu0 %v2213, 16
      %v2277 = vpop.permute.xlu0 %2276
      %2278 = vrot.lane.b32.xlu0 %v2220, 16
      %v2279 = vpop.permute.xlu0 %2278
      %2280 = vrot.lane.b32.xlu0 %v2221, 16
      %v2281 = vpop.permute.xlu0 %2280
      %2282 = vrot.lane.b32.xlu0 %v2228, 16
      %v2283 = vpop.permute.xlu0 %2282
      %2284 = vrot.lane.b32.xlu0 %v2229, 16
      %v2285 = vpop.permute.xlu0 %2284
      %2286 = vrot.lane.b32.xlu0 %v2236, 16
      %v2287 = vpop.permute.xlu0 %2286
      %2288 = vrot.lane.b32.xlu0 %v2237, 16
      %v2289 = vpop.permute.xlu0 %2288
      %2290 = vrot.lane.b32.xlu0 %v2244, 16
      %v2291 = vpop.permute.xlu0 %2290
      %2292 = vrot.lane.b32.xlu0 %v2245, 16
      %v2293 = vpop.permute.xlu0 %2292
      %2318 = vst [vmem:[#allocation1] ss:$4 sm:$0xff] %v1730
      %s2319 = scalar_lea.vmem [#allocation1], 1
      %2320 = vst [vmem:[%s2319] ss:$4 sm:$0xff] %v1677
      %s2321 = scalar_lea.vmem [#allocation1], 2
      %2322 = vst [vmem:[%s2321] ss:$4 sm:$0xff] %v1731
      %s2323 = scalar_lea.vmem [#allocation1], 3
      %2324 = vst [vmem:[%s2323] ss:$4 sm:$0xff] %v1732
      %s2325 = scalar_lea.vmem [#allocation1], 32
      %2326 = vst [vmem:[%s2325] ss:$4 sm:$0xff] %v1733
      %s2327 = scalar_lea.vmem [#allocation1], 33
      %2328 = vst [vmem:[%s2327] ss:$4 sm:$0xff] %v1678
      %v2329 = vld.sshfl [vmem:[#allocation1] sm:$0xff pattern:$0x73625140]
      %v2330 = vld.sshfl [vmem:[#allocation1 + $0x20] sm:$0xff pattern:$0x73625140]
      %2331 = vst [vmem:[#allocation1] ss:$4 sm:$0xff] %v1735
      %2332 = vst [vmem:[%s2319] ss:$4 sm:$0xff] %v1736
      %2333 = vst [vmem:[%s2321] ss:$4 sm:$0xff] %v1679
      %2334 = vst [vmem:[%s2323] ss:$4 sm:$0xff] %v1737
      %2335 = vst [vmem:[%s2325] ss:$4 sm:$0xff] %v1738
      %2336 = vst [vmem:[%s2327] ss:$4 sm:$0xff] %v1739
      %v2337 = vld.sshfl [vmem:[#allocation1] sm:$0xff pattern:$0x73625140]
      %v2338 = vld.sshfl [vmem:[#allocation1 + $0x20] sm:$0xff pattern:$0x73625140]
      %2339 = vst [vmem:[#allocation1] ss:$4 sm:$0xff] %v1740
      %2340 = vst [vmem:[%s2319] ss:$4 sm:$0xff] %v1741
      %2341 = vst [vmem:[%s2321] ss:$4 sm:$0xff] %v1742
      %2342 = vst [vmem:[%s2323] ss:$4 sm:$0xff] %v1681
      %2343 = vst [vmem:[%s2325] ss:$4 sm:$0xff] %v1743
      %2344 = vst [vmem:[%s2327] ss:$4 sm:$0xff] %v1744
      %v2345 = vld.sshfl [vmem:[#allocation1] sm:$0xff pattern:$0x73625140]
      %v2346 = vld.sshfl [vmem:[#allocation1 + $0x20] sm:$0xff pattern:$0x73625140]
      %2347 = vst [vmem:[#allocation1] ss:$4 sm:$0xff] %v1682
      %2348 = vst [vmem:[%s2319] ss:$4 sm:$0xff] %v1746
      %2349 = vst [vmem:[%s2321] ss:$4 sm:$0xff] %v1747
      %2350 = vst [vmem:[%s2323] ss:$4 sm:$0xff] %v1748
      %2351 = vst [vmem:[%s2325] ss:$4 sm:$0xff] %v1683
      %2352 = vst [vmem:[%s2327] ss:$4 sm:$0xff] %v1749
      %v2353 = vld.sshfl [vmem:[#allocation1] sm:$0xff pattern:$0x73625140]
      %v2354 = vld.sshfl [vmem:[#allocation1 + $0x20] sm:$0xff pattern:$0x73625140]
      %2355 = vst [vmem:[#allocation1] ss:$4 sm:$0xff] %v1751
      %2356 = vst [vmem:[%s2319] ss:$4 sm:$0xff] %v1684
      %2357 = vst [vmem:[%s2321] ss:$4 sm:$0xff] %v1752
      %2358 = vst [vmem:[%s2323] ss:$4 sm:$0xff] %v1753
      %2359 = vst [vmem:[%s2325] ss:$4 sm:$0xff] %v1754
      %2360 = vst [vmem:[%s2327] ss:$4 sm:$0xff] %v1685
      %v2361 = vld.sshfl [vmem:[#allocation1] sm:$0xff pattern:$0x73625140]
      %v2362 = vld.sshfl [vmem:[#allocation1 + $0x20] sm:$0xff pattern:$0x73625140]
      %2363 = vst [vmem:[#allocation1] ss:$4 sm:$0xff] %v1756
      %2364 = vst [vmem:[%s2319] ss:$4 sm:$0xff] %v1757
      %2365 = vst [vmem:[%s2321] ss:$4 sm:$0xff] %v1686
      %2366 = vst [vmem:[%s2323] ss:$4 sm:$0xff] %v1758
      %2367 = vst [vmem:[%s2325] ss:$4 sm:$0xff] %v1759
      %2368 = vst [vmem:[%s2327] ss:$4 sm:$0xff] %v1760
      %v2369 = vld.sshfl [vmem:[#allocation1] sm:$0xff pattern:$0x73625140]
      %v2370 = vld.sshfl [vmem:[#allocation1 + $0x20] sm:$0xff pattern:$0x73625140]
      %2371 = vst [vmem:[#allocation1] ss:$4 sm:$0xff] %v1761
      %2372 = vst [vmem:[%s2319] ss:$4 sm:$0xff] %v1762
      %2373 = vst [vmem:[%s2321] ss:$4 sm:$0xff] %v1763
      %2374 = vst [vmem:[%s2323] ss:$4 sm:$0xff] %v1688
      %2375 = vst [vmem:[%s2325] ss:$4 sm:$0xff] %v1764
      %2376 = vst [vmem:[%s2327] ss:$4 sm:$0xff] %v1765
      %v2377 = vld.sshfl [vmem:[#allocation1] sm:$0xff pattern:$0x73625140]
      %v2378 = vld.sshfl [vmem:[#allocation1 + $0x20] sm:$0xff pattern:$0x73625140]
      %2379 = vst [vmem:[#allocation1] ss:$4 sm:$0xff] %v1689
      %2380 = vst [vmem:[%s2319] ss:$4 sm:$0xff] %v1767
      %2381 = vst [vmem:[%s2321] ss:$4 sm:$0xff] %v1768
      %2382 = vst [vmem:[%s2323] ss:$4 sm:$0xff] %v1769
      %2383 = vst [vmem:[%s2325] ss:$4 sm:$0xff] %v1690
      %2384 = vst [vmem:[%s2327] ss:$4 sm:$0xff] %v1770
      %v2385 = vld.sshfl [vmem:[#allocation1] sm:$0xff pattern:$0x73625140]
      %v2386 = vld.sshfl [vmem:[#allocation1 + $0x20] sm:$0xff pattern:$0x73625140]
      %2387 = vst [vmem:[#allocation1] ss:$4 sm:$0xff] %v1772
      %2388 = vst [vmem:[%s2319] ss:$4 sm:$0xff] %v1691
      %2389 = vst [vmem:[%s2321] ss:$4 sm:$0xff] %v1773
      %2390 = vst [vmem:[%s2323] ss:$4 sm:$0xff] %v1774
      %2391 = vst [vmem:[%s2325] ss:$4 sm:$0xff] %v1775
      %2392 = vst [vmem:[%s2327] ss:$4 sm:$0xff] %v1692
      %v2393 = vld.sshfl [vmem:[#allocation1] sm:$0xff pattern:$0x73625140]
      %v2394 = vld.sshfl [vmem:[#allocation1 + $0x20] sm:$0xff pattern:$0x73625140]
      %2395 = vst [vmem:[#allocation1] ss:$4 sm:$0xff] %v1777
      %2396 = vst [vmem:[%s2319] ss:$4 sm:$0xff] %v1778
      %2397 = vst [vmem:[%s2321] ss:$4 sm:$0xff] %v1693
      %2398 = vst [vmem:[%s2323] ss:$4 sm:$0xff] %v1779
      %2399 = vst [vmem:[%s2325] ss:$4 sm:$0xff] %v1780
      %2400 = vst [vmem:[%s2327] ss:$4 sm:$0xff] %v1781
      %v2401 = vld.sshfl [vmem:[#allocation1] sm:$0xff pattern:$0x73625140]
      %v2402 = vld.sshfl [vmem:[#allocation1 + $0x20] sm:$0xff pattern:$0x73625140]
      %2403 = vst [vmem:[#allocation1] ss:$4 sm:$0xff] %v1782
      %2404 = vst [vmem:[%s2319] ss:$4 sm:$0xff] %v1783
      %2405 = vst [vmem:[%s2321] ss:$4 sm:$0xff] %v1784
      %2406 = vst [vmem:[%s2323] ss:$4 sm:$0xff] %v1695
      %2407 = vst [vmem:[%s2325] ss:$4 sm:$0xff] %v1785
      %2408 = vst [vmem:[%s2327] ss:$4 sm:$0xff] %v1786
      %v2409 = vld.sshfl [vmem:[#allocation1] sm:$0xff pattern:$0x73625140]
      %v2410 = vld.sshfl [vmem:[#allocation1 + $0x20] sm:$0xff pattern:$0x73625140]
      %2411 = vst [vmem:[#allocation1] ss:$4 sm:$0xff] %v1696
      %2412 = vst [vmem:[%s2319] ss:$4 sm:$0xff] %v1788
      %2413 = vst [vmem:[%s2321] ss:$4 sm:$0xff] %v1789
      %2414 = vst [vmem:[%s2323] ss:$4 sm:$0xff] %v1790
      %2415 = vst [vmem:[%s2325] ss:$4 sm:$0xff] %v1697
      %2416 = vst [vmem:[%s2327] ss:$4 sm:$0xff] %v1791
      %v2417 = vld.sshfl [vmem:[#allocation1] sm:$0xff pattern:$0x73625140]
      %v2418 = vld.sshfl [vmem:[#allocation1 + $0x20] sm:$0xff pattern:$0x73625140]
      %2419 = vrot.lane.b32.xlu0 %v2329, 24
      %v2420 = vpop.permute.xlu0 %2419
      %2421 = vrot.lane.b32.xlu0 %v2330, 24
      %v2422 = vpop.permute.xlu0 %2421
      %2423 = vrot.lane.b32.xlu0 %v2337, 24
      %v2424 = vpop.permute.xlu0 %2423
      %2425 = vrot.lane.b32.xlu0 %v2338, 24
      %v2426 = vpop.permute.xlu0 %2425
      %2427 = vrot.lane.b32.xlu0 %v2345, 24
      %v2428 = vpop.permute.xlu0 %2427
      %2429 = vrot.lane.b32.xlu0 %v2346, 24
      %v2430 = vpop.permute.xlu0 %2429
      %2431 = vrot.lane.b32.xlu0 %v2353, 24
      %v2432 = vpop.permute.xlu0 %2431
      %2433 = vrot.lane.b32.xlu0 %v2354, 24
      %v2434 = vpop.permute.xlu0 %2433
      %2435 = vrot.lane.b32.xlu0 %v2361, 24
      %v2436 = vpop.permute.xlu0 %2435
      %2437 = vrot.lane.b32.xlu0 %v2362, 24
      %v2438 = vpop.permute.xlu0 %2437
      %2439 = vrot.lane.b32.xlu0 %v2369, 24
      %v2440 = vpop.permute.xlu0 %2439
      %2441 = vrot.lane.b32.xlu0 %v2370, 24
      %v2442 = vpop.permute.xlu0 %2441
      %2443 = vrot.lane.b32.xlu0 %v2377, 24
      %v2444 = vpop.permute.xlu0 %2443
      %2445 = vrot.lane.b32.xlu0 %v2378, 24
      %v2446 = vpop.permute.xlu0 %2445
      %2447 = vrot.lane.b32.xlu0 %v2385, 24
      %v2448 = vpop.permute.xlu0 %2447
      %2449 = vrot.lane.b32.xlu0 %v2386, 24
      %v2450 = vpop.permute.xlu0 %2449
      %2451 = vrot.lane.b32.xlu0 %v2393, 24
      %v2452 = vpop.permute.xlu0 %2451
      %2453 = vrot.lane.b32.xlu0 %v2394, 24
      %v2454 = vpop.permute.xlu0 %2453
      %2455 = vrot.lane.b32.xlu0 %v2401, 24
      %v2456 = vpop.permute.xlu0 %2455
      %2457 = vrot.lane.b32.xlu0 %v2402, 24
      %v2458 = vpop.permute.xlu0 %2457
      %2459 = vrot.lane.b32.xlu0 %v2409, 24
      %v2460 = vpop.permute.xlu0 %2459
      %2461 = vrot.lane.b32.xlu0 %v2410, 24
      %v2462 = vpop.permute.xlu0 %2461
      %2463 = vrot.lane.b32.xlu0 %v2417, 24
      %v2464 = vpop.permute.xlu0 %2463
      %2465 = vrot.lane.b32.xlu0 %v2418, 24
      %v2466 = vpop.permute.xlu0 %2465
      %2491 = vst [vmem:[#allocation1] ss:$4 sm:$0xff] %v1730
      %s2492 = scalar_lea.vmem [#allocation1], 1
      %2493 = vst [vmem:[%s2492] ss:$4 sm:$0xff] %v1677
      %s2494 = scalar_lea.vmem [#allocation1], 2
      %2495 = vst [vmem:[%s2494] ss:$4 sm:$0xff] %v1731
      %s2496 = scalar_lea.vmem [#allocation1], 3
      %2497 = vst [vmem:[%s2496] ss:$4 sm:$0xff] %v1732
      %s2498 = scalar_lea.vmem [#allocation1], 32
      %2499 = vst [vmem:[%s2498] ss:$4 sm:$0xff] %v1733
      %s2500 = scalar_lea.vmem [#allocation1], 33
      %2501 = vst [vmem:[%s2500] ss:$4 sm:$0xff] %v1678
      %s2502 = scalar_lea.vmem [#allocation1], 34
      %2503 = vst [vmem:[%s2502] ss:$4 sm:$0xff] %v1734
      %v2504 = vld.sshfl [vmem:[#allocation1] sm:$0xff pattern:$0x73625140]
      %v2505 = vld.sshfl [vmem:[#allocation1 + $0x20] sm:$0xff pattern:$0x73625140]
      %2506 = vst [vmem:[#allocation1] ss:$4 sm:$0xff] %v1735
      %2507 = vst [vmem:[%s2492] ss:$4 sm:$0xff] %v1736
      %2508 = vst [vmem:[%s2494] ss:$4 sm:$0xff] %v1679
      %2509 = vst [vmem:[%s2496] ss:$4 sm:$0xff] %v1737
      %2510 = vst [vmem:[%s2498] ss:$4 sm:$0xff] %v1738
      %2511 = vst [vmem:[%s2500] ss:$4 sm:$0xff] %v1739
      %2512 = vst [vmem:[%s2502] ss:$4 sm:$0xff] %v1680
      %v2513 = vld.sshfl [vmem:[#allocation1] sm:$0xff pattern:$0x73625140]
      %v2514 = vld.sshfl [vmem:[#allocation1 + $0x20] sm:$0xff pattern:$0x73625140]
      %2515 = vst [vmem:[#allocation1] ss:$4 sm:$0xff] %v1740
      %2516 = vst [vmem:[%s2492] ss:$4 sm:$0xff] %v1741
      %2517 = vst [vmem:[%s2494] ss:$4 sm:$0xff] %v1742
      %2518 = vst [vmem:[%s2496] ss:$4 sm:$0xff] %v1681
      %2519 = vst [vmem:[%s2498] ss:$4 sm:$0xff] %v1743
      %2520 = vst [vmem:[%s2500] ss:$4 sm:$0xff] %v1744
      %2521 = vst [vmem:[%s2502] ss:$4 sm:$0xff] %v1745
      %v2522 = vld.sshfl [vmem:[#allocation1] sm:$0xff pattern:$0x73625140]
      %v2523 = vld.sshfl [vmem:[#allocation1 + $0x20] sm:$0xff pattern:$0x73625140]
      %2524 = vst [vmem:[#allocation1] ss:$4 sm:$0xff] %v1682
      %2525 = vst [vmem:[%s2492] ss:$4 sm:$0xff] %v1746
      %2526 = vst [vmem:[%s2494] ss:$4 sm:$0xff] %v1747
      %2527 = vst [vmem:[%s2496] ss:$4 sm:$0xff] %v1748
      %2528 = vst [vmem:[%s2498] ss:$4 sm:$0xff] %v1683
      %2529 = vst [vmem:[%s2500] ss:$4 sm:$0xff] %v1749
      %2530 = vst [vmem:[%s2502] ss:$4 sm:$0xff] %v1750
      %v2531 = vld.sshfl [vmem:[#allocation1] sm:$0xff pattern:$0x73625140]
      %v2532 = vld.sshfl [vmem:[#allocation1 + $0x20] sm:$0xff pattern:$0x73625140]
      %2533 = vst [vmem:[#allocation1] ss:$4 sm:$0xff] %v1751
      %2534 = vst [vmem:[%s2492] ss:$4 sm:$0xff] %v1684
      %2535 = vst [vmem:[%s2494] ss:$4 sm:$0xff] %v1752
      %2536 = vst [vmem:[%s2496] ss:$4 sm:$0xff] %v1753
      %2537 = vst [vmem:[%s2498] ss:$4 sm:$0xff] %v1754
      %2538 = vst [vmem:[%s2500] ss:$4 sm:$0xff] %v1685
      %2539 = vst [vmem:[%s2502] ss:$4 sm:$0xff] %v1755
      %v2540 = vld.sshfl [vmem:[#allocation1] sm:$0xff pattern:$0x73625140]
      %v2541 = vld.sshfl [vmem:[#allocation1 + $0x20] sm:$0xff pattern:$0x73625140]
      %2542 = vst [vmem:[#allocation1] ss:$4 sm:$0xff] %v1756
      %2543 = vst [vmem:[%s2492] ss:$4 sm:$0xff] %v1757
      %2544 = vst [vmem:[%s2494] ss:$4 sm:$0xff] %v1686
      %2545 = vst [vmem:[%s2496] ss:$4 sm:$0xff] %v1758
      %2546 = vst [vmem:[%s2498] ss:$4 sm:$0xff] %v1759
      %2547 = vst [vmem:[%s2500] ss:$4 sm:$0xff] %v1760
      %2548 = vst [vmem:[%s2502] ss:$4 sm:$0xff] %v1687
      %v2549 = vld.sshfl [vmem:[#allocation1] sm:$0xff pattern:$0x73625140]
      %v2550 = vld.sshfl [vmem:[#allocation1 + $0x20] sm:$0xff pattern:$0x73625140]
      %2551 = vst [vmem:[#allocation1] ss:$4 sm:$0xff] %v1761
      %2552 = vst [vmem:[%s2492] ss:$4 sm:$0xff] %v1762
      %2553 = vst [vmem:[%s2494] ss:$4 sm:$0xff] %v1763
      %2554 = vst [vmem:[%s2496] ss:$4 sm:$0xff] %v1688
      %2555 = vst [vmem:[%s2498] ss:$4 sm:$0xff] %v1764
      %2556 = vst [vmem:[%s2500] ss:$4 sm:$0xff] %v1765
      %2557 = vst [vmem:[%s2502] ss:$4 sm:$0xff] %v1766
      %v2558 = vld.sshfl [vmem:[#allocation1] sm:$0xff pattern:$0x73625140]
      %v2559 = vld.sshfl [vmem:[#allocation1 + $0x20] sm:$0xff pattern:$0x73625140]
      %2560 = vst [vmem:[#allocation1] ss:$4 sm:$0xff] %v1689
      %2561 = vst [vmem:[%s2492] ss:$4 sm:$0xff] %v1767
      %2562 = vst [vmem:[%s2494] ss:$4 sm:$0xff] %v1768
      %2563 = vst [vmem:[%s2496] ss:$4 sm:$0xff] %v1769
      %2564 = vst [vmem:[%s2498] ss:$4 sm:$0xff] %v1690
      %2565 = vst [vmem:[%s2500] ss:$4 sm:$0xff] %v1770
      %2566 = vst [vmem:[%s2502] ss:$4 sm:$0xff] %v1771
      %v2567 = vld.sshfl [vmem:[#allocation1] sm:$0xff pattern:$0x73625140]
      %v2568 = vld.sshfl [vmem:[#allocation1 + $0x20] sm:$0xff pattern:$0x73625140]
      %2569 = vst [vmem:[#allocation1] ss:$4 sm:$0xff] %v1772
      %2570 = vst [vmem:[%s2492] ss:$4 sm:$0xff] %v1691
      %2571 = vst [vmem:[%s2494] ss:$4 sm:$0xff] %v1773
      %2572 = vst [vmem:[%s2496] ss:$4 sm:$0xff] %v1774
      %2573 = vst [vmem:[%s2498] ss:$4 sm:$0xff] %v1775
      %2574 = vst [vmem:[%s2500] ss:$4 sm:$0xff] %v1692
      %2575 = vst [vmem:[%s2502] ss:$4 sm:$0xff] %v1776
      %v2576 = vld.sshfl [vmem:[#allocation1] sm:$0xff pattern:$0x73625140]
      %v2577 = vld.sshfl [vmem:[#allocation1 + $0x20] sm:$0xff pattern:$0x73625140]
      %2578 = vst [vmem:[#allocation1] ss:$4 sm:$0xff] %v1777
      %2579 = vst [vmem:[%s2492] ss:$4 sm:$0xff] %v1778
      %2580 = vst [vmem:[%s2494] ss:$4 sm:$0xff] %v1693
      %2581 = vst [vmem:[%s2496] ss:$4 sm:$0xff] %v1779
      %2582 = vst [vmem:[%s2498] ss:$4 sm:$0xff] %v1780
      %2583 = vst [vmem:[%s2500] ss:$4 sm:$0xff] %v1781
      %2584 = vst [vmem:[%s2502] ss:$4 sm:$0xff] %v1694
      %v2585 = vld.sshfl [vmem:[#allocation1] sm:$0xff pattern:$0x73625140]
      %v2586 = vld.sshfl [vmem:[#allocation1 + $0x20] sm:$0xff pattern:$0x73625140]
      %2587 = vst [vmem:[#allocation1] ss:$4 sm:$0xff] %v1782
      %2588 = vst [vmem:[%s2492] ss:$4 sm:$0xff] %v1783
      %2589 = vst [vmem:[%s2494] ss:$4 sm:$0xff] %v1784
      %2590 = vst [vmem:[%s2496] ss:$4 sm:$0xff] %v1695
      %2591 = vst [vmem:[%s2498] ss:$4 sm:$0xff] %v1785
      %2592 = vst [vmem:[%s2500] ss:$4 sm:$0xff] %v1786
      %2593 = vst [vmem:[%s2502] ss:$4 sm:$0xff] %v1787
      %v2594 = vld.sshfl [vmem:[#allocation1] sm:$0xff pattern:$0x73625140]
      %v2595 = vld.sshfl [vmem:[#allocation1 + $0x20] sm:$0xff pattern:$0x73625140]
      %2596 = vst [vmem:[#allocation1] ss:$4 sm:$0xff] %v1696
      %2597 = vst [vmem:[%s2492] ss:$4 sm:$0xff] %v1788
      %2598 = vst [vmem:[%s2494] ss:$4 sm:$0xff] %v1789
      %2599 = vst [vmem:[%s2496] ss:$4 sm:$0xff] %v1790
      %2600 = vst [vmem:[%s2498] ss:$4 sm:$0xff] %v1697
      %2601 = vst [vmem:[%s2500] ss:$4 sm:$0xff] %v1791
      %2602 = vst [vmem:[%s2502] ss:$4 sm:$0xff] %v1792
      %v2603 = vld.sshfl [vmem:[#allocation1] sm:$0xff pattern:$0x73625140]
      %v2604 = vld.sshfl [vmem:[#allocation1 + $0x20] sm:$0xff pattern:$0x73625140]
      %v2605 = vrot.slane %v2504, 1
      %v2606 = vrot.slane %v2505, 1
      %v2607 = vsel %vm285, %v2605, %v2606
      %v2608 = vrot.slane %v2513, 1
      %v2609 = vrot.slane %v2514, 1
      %v2610 = vsel %vm285, %v2608, %v2609
      %v2611 = vrot.slane %v2522, 1
      %v2612 = vrot.slane %v2523, 1
      %v2613 = vsel %vm285, %v2611, %v2612
      %v2614 = vrot.slane %v2531, 1
      %v2615 = vrot.slane %v2532, 1
      %v2616 = vsel %vm285, %v2614, %v2615
      %v2617 = vrot.slane %v2540, 1
      %v2618 = vrot.slane %v2541, 1
      %v2619 = vsel %vm285, %v2617, %v2618
      %v2620 = vrot.slane %v2549, 1
      %v2621 = vrot.slane %v2550, 1
      %v2622 = vsel %vm285, %v2620, %v2621
      %v2623 = vrot.slane %v2558, 1
      %v2624 = vrot.slane %v2559, 1
      %v2625 = vsel %vm285, %v2623, %v2624
      %v2626 = vrot.slane %v2567, 1
      %v2627 = vrot.slane %v2568, 1
      %v2628 = vsel %vm285, %v2626, %v2627
      %v2629 = vrot.slane %v2576, 1
      %v2630 = vrot.slane %v2577, 1
      %v2631 = vsel %vm285, %v2629, %v2630
      %v2632 = vrot.slane %v2585, 1
      %v2633 = vrot.slane %v2586, 1
      %v2634 = vsel %vm285, %v2632, %v2633
      %v2635 = vrot.slane %v2594, 1
      %v2636 = vrot.slane %v2595, 1
      %v2637 = vsel %vm285, %v2635, %v2636
      %v2638 = vrot.slane %v2603, 1
      %v2639 = vrot.slane %v2604, 1
      %v2640 = vsel %vm285, %v2638, %v2639
      %2641 = vrot.lane.b32.xlu0 %v2607, 32
      %v2642 = vpop.permute.xlu0 %2641
      %2643 = vrot.lane.b32.xlu0 %v2606, 32
      %v2644 = vpop.permute.xlu0 %2643
      %2645 = vrot.lane.b32.xlu0 %v2610, 32
      %v2646 = vpop.permute.xlu0 %2645
      %2647 = vrot.lane.b32.xlu0 %v2609, 32
      %v2648 = vpop.permute.xlu0 %2647
      %2649 = vrot.lane.b32.xlu0 %v2613, 32
      %v2650 = vpop.permute.xlu0 %2649
      %2651 = vrot.lane.b32.xlu0 %v2612, 32
      %v2652 = vpop.permute.xlu0 %2651
      %2653 = vrot.lane.b32.xlu0 %v2616, 32
      %v2654 = vpop.permute.xlu0 %2653
      %2655 = vrot.lane.b32.xlu0 %v2615, 32
      %v2656 = vpop.permute.xlu0 %2655
      %2657 = vrot.lane.b32.xlu0 %v2619, 32
      %v2658 = vpop.permute.xlu0 %2657
      %2659 = vrot.lane.b32.xlu0 %v2618, 32
      %v2660 = vpop.permute.xlu0 %2659
      %2661 = vrot.lane.b32.xlu0 %v2622, 32
      %v2662 = vpop.permute.xlu0 %2661
      %2663 = vrot.lane.b32.xlu0 %v2621, 32
      %v2664 = vpop.permute.xlu0 %2663
      %2665 = vrot.lane.b32.xlu0 %v2625, 32
      %v2666 = vpop.permute.xlu0 %2665
      %2667 = vrot.lane.b32.xlu0 %v2624, 32
      %v2668 = vpop.permute.xlu0 %2667
      %2669 = vrot.lane.b32.xlu0 %v2628, 32
      %v2670 = vpop.permute.xlu0 %2669
      %2671 = vrot.lane.b32.xlu0 %v2627, 32
      %v2672 = vpop.permute.xlu0 %2671
      %2673 = vrot.lane.b32.xlu0 %v2631, 32
      %v2674 = vpop.permute.xlu0 %2673
      %2675 = vrot.lane.b32.xlu0 %v2630, 32
      %v2676 = vpop.permute.xlu0 %2675
      %2677 = vrot.lane.b32.xlu0 %v2634, 32
      %v2678 = vpop.permute.xlu0 %2677
      %2679 = vrot.lane.b32.xlu0 %v2633, 32
      %v2680 = vpop.permute.xlu0 %2679
      %2681 = vrot.lane.b32.xlu0 %v2637, 32
      %v2682 = vpop.permute.xlu0 %2681
      %2683 = vrot.lane.b32.xlu0 %v2636, 32
      %v2684 = vpop.permute.xlu0 %2683
      %2685 = vrot.lane.b32.xlu0 %v2640, 32
      %v2686 = vpop.permute.xlu0 %2685
      %2687 = vrot.lane.b32.xlu0 %v2639, 32
      %v2688 = vpop.permute.xlu0 %2687
      %2713 = vst [vmem:[#allocation1] ss:$4 sm:$0xff] %v1677
      %s2714 = scalar_lea.vmem [#allocation1], 1
      %2715 = vst [vmem:[%s2714] ss:$4 sm:$0xff] %v1731
      %s2716 = scalar_lea.vmem [#allocation1], 2
      %2717 = vst [vmem:[%s2716] ss:$4 sm:$0xff] %v1732
      %s2718 = scalar_lea.vmem [#allocation1], 3
      %2719 = vst [vmem:[%s2718] ss:$4 sm:$0xff] %v1733
      %s2720 = scalar_lea.vmem [#allocation1], 32
      %2721 = vst [vmem:[%s2720] ss:$4 sm:$0xff] %v1678
      %s2722 = scalar_lea.vmem [#allocation1], 33
      %2723 = vst [vmem:[%s2722] ss:$4 sm:$0xff] %v1734
      %v2724 = vld.sshfl [vmem:[#allocation1] sm:$0xff pattern:$0x73625140]
      %v2725 = vld.sshfl [vmem:[#allocation1 + $0x20] sm:$0xff pattern:$0x73625140]
      %2726 = vst [vmem:[#allocation1] ss:$4 sm:$0xff] %v1736
      %2727 = vst [vmem:[%s2714] ss:$4 sm:$0xff] %v1679
      %2728 = vst [vmem:[%s2716] ss:$4 sm:$0xff] %v1737
      %2729 = vst [vmem:[%s2718] ss:$4 sm:$0xff] %v1738
      %2730 = vst [vmem:[%s2720] ss:$4 sm:$0xff] %v1739
      %2731 = vst [vmem:[%s2722] ss:$4 sm:$0xff] %v1680
      %v2732 = vld.sshfl [vmem:[#allocation1] sm:$0xff pattern:$0x73625140]
      %v2733 = vld.sshfl [vmem:[#allocation1 + $0x20] sm:$0xff pattern:$0x73625140]
      %2734 = vst [vmem:[#allocation1] ss:$4 sm:$0xff] %v1741
      %2735 = vst [vmem:[%s2714] ss:$4 sm:$0xff] %v1742
      %2736 = vst [vmem:[%s2716] ss:$4 sm:$0xff] %v1681
      %2737 = vst [vmem:[%s2718] ss:$4 sm:$0xff] %v1743
      %2738 = vst [vmem:[%s2720] ss:$4 sm:$0xff] %v1744
      %2739 = vst [vmem:[%s2722] ss:$4 sm:$0xff] %v1745
      %v2740 = vld.sshfl [vmem:[#allocation1] sm:$0xff pattern:$0x73625140]
      %v2741 = vld.sshfl [vmem:[#allocation1 + $0x20] sm:$0xff pattern:$0x73625140]
      %2742 = vst [vmem:[#allocation1] ss:$4 sm:$0xff] %v1746
      %2743 = vst [vmem:[%s2714] ss:$4 sm:$0xff] %v1747
      %2744 = vst [vmem:[%s2716] ss:$4 sm:$0xff] %v1748
      %2745 = vst [vmem:[%s2718] ss:$4 sm:$0xff] %v1683
      %2746 = vst [vmem:[%s2720] ss:$4 sm:$0xff] %v1749
      %2747 = vst [vmem:[%s2722] ss:$4 sm:$0xff] %v1750
      %v2748 = vld.sshfl [vmem:[#allocation1] sm:$0xff pattern:$0x73625140]
      %v2749 = vld.sshfl [vmem:[#allocation1 + $0x20] sm:$0xff pattern:$0x73625140]
      %2750 = vst [vmem:[#allocation1] ss:$4 sm:$0xff] %v1684
      %2751 = vst [vmem:[%s2714] ss:$4 sm:$0xff] %v1752
      %2752 = vst [vmem:[%s2716] ss:$4 sm:$0xff] %v1753
      %2753 = vst [vmem:[%s2718] ss:$4 sm:$0xff] %v1754
      %2754 = vst [vmem:[%s2720] ss:$4 sm:$0xff] %v1685
      %2755 = vst [vmem:[%s2722] ss:$4 sm:$0xff] %v1755
      %v2756 = vld.sshfl [vmem:[#allocation1] sm:$0xff pattern:$0x73625140]
      %v2757 = vld.sshfl [vmem:[#allocation1 + $0x20] sm:$0xff pattern:$0x73625140]
      %2758 = vst [vmem:[#allocation1] ss:$4 sm:$0xff] %v1757
      %2759 = vst [vmem:[%s2714] ss:$4 sm:$0xff] %v1686
      %2760 = vst [vmem:[%s2716] ss:$4 sm:$0xff] %v1758
      %2761 = vst [vmem:[%s2718] ss:$4 sm:$0xff] %v1759
      %2762 = vst [vmem:[%s2720] ss:$4 sm:$0xff] %v1760
      %2763 = vst [vmem:[%s2722] ss:$4 sm:$0xff] %v1687
      %v2764 = vld.sshfl [vmem:[#allocation1] sm:$0xff pattern:$0x73625140]
      %v2765 = vld.sshfl [vmem:[#allocation1 + $0x20] sm:$0xff pattern:$0x73625140]
      %2766 = vst [vmem:[#allocation1] ss:$4 sm:$0xff] %v1762
      %2767 = vst [vmem:[%s2714] ss:$4 sm:$0xff] %v1763
      %2768 = vst [vmem:[%s2716] ss:$4 sm:$0xff] %v1688
      %2769 = vst [vmem:[%s2718] ss:$4 sm:$0xff] %v1764
      %2770 = vst [vmem:[%s2720] ss:$4 sm:$0xff] %v1765
      %2771 = vst [vmem:[%s2722] ss:$4 sm:$0xff] %v1766
      %v2772 = vld.sshfl [vmem:[#allocation1] sm:$0xff pattern:$0x73625140]
      %v2773 = vld.sshfl [vmem:[#allocation1 + $0x20] sm:$0xff pattern:$0x73625140]
      %2774 = vst [vmem:[#allocation1] ss:$4 sm:$0xff] %v1767
      %2775 = vst [vmem:[%s2714] ss:$4 sm:$0xff] %v1768
      %2776 = vst [vmem:[%s2716] ss:$4 sm:$0xff] %v1769
      %2777 = vst [vmem:[%s2718] ss:$4 sm:$0xff] %v1690
      %2778 = vst [vmem:[%s2720] ss:$4 sm:$0xff] %v1770
      %2779 = vst [vmem:[%s2722] ss:$4 sm:$0xff] %v1771
      %v2780 = vld.sshfl [vmem:[#allocation1] sm:$0xff pattern:$0x73625140]
      %v2781 = vld.sshfl [vmem:[#allocation1 + $0x20] sm:$0xff pattern:$0x73625140]
      %2782 = vst [vmem:[#allocation1] ss:$4 sm:$0xff] %v1691
      %2783 = vst [vmem:[%s2714] ss:$4 sm:$0xff] %v1773
      %2784 = vst [vmem:[%s2716] ss:$4 sm:$0xff] %v1774
      %2785 = vst [vmem:[%s2718] ss:$4 sm:$0xff] %v1775
      %2786 = vst [vmem:[%s2720] ss:$4 sm:$0xff] %v1692
      %2787 = vst [vmem:[%s2722] ss:$4 sm:$0xff] %v1776
      %v2788 = vld.sshfl [vmem:[#allocation1] sm:$0xff pattern:$0x73625140]
      %v2789 = vld.sshfl [vmem:[#allocation1 + $0x20] sm:$0xff pattern:$0x73625140]
      %2790 = vst [vmem:[#allocation1] ss:$4 sm:$0xff] %v1778
      %2791 = vst [vmem:[%s2714] ss:$4 sm:$0xff] %v1693
      %2792 = vst [vmem:[%s2716] ss:$4 sm:$0xff] %v1779
      %2793 = vst [vmem:[%s2718] ss:$4 sm:$0xff] %v1780
      %2794 = vst [vmem:[%s2720] ss:$4 sm:$0xff] %v1781
      %2795 = vst [vmem:[%s2722] ss:$4 sm:$0xff] %v1694
      %v2796 = vld.sshfl [vmem:[#allocation1] sm:$0xff pattern:$0x73625140]
      %v2797 = vld.sshfl [vmem:[#allocation1 + $0x20] sm:$0xff pattern:$0x73625140]
      %2798 = vst [vmem:[#allocation1] ss:$4 sm:$0xff] %v1783
      %2799 = vst [vmem:[%s2714] ss:$4 sm:$0xff] %v1784
      %2800 = vst [vmem:[%s2716] ss:$4 sm:$0xff] %v1695
      %2801 = vst [vmem:[%s2718] ss:$4 sm:$0xff] %v1785
      %2802 = vst [vmem:[%s2720] ss:$4 sm:$0xff] %v1786
      %2803 = vst [vmem:[%s2722] ss:$4 sm:$0xff] %v1787
      %v2804 = vld.sshfl [vmem:[#allocation1] sm:$0xff pattern:$0x73625140]
      %v2805 = vld.sshfl [vmem:[#allocation1 + $0x20] sm:$0xff pattern:$0x73625140]
      %2806 = vst [vmem:[#allocation1] ss:$4 sm:$0xff] %v1788
      %2807 = vst [vmem:[%s2714] ss:$4 sm:$0xff] %v1789
      %2808 = vst [vmem:[%s2716] ss:$4 sm:$0xff] %v1790
      %2809 = vst [vmem:[%s2718] ss:$4 sm:$0xff] %v1697
      %2810 = vst [vmem:[%s2720] ss:$4 sm:$0xff] %v1791
      %2811 = vst [vmem:[%s2722] ss:$4 sm:$0xff] %v1792
      %v2812 = vld.sshfl [vmem:[#allocation1] sm:$0xff pattern:$0x73625140]
      %v2813 = vld.sshfl [vmem:[#allocation1 + $0x20] sm:$0xff pattern:$0x73625140]
      %2814 = vrot.lane.b32.xlu0 %v2724, 40
      %v2815 = vpop.permute.xlu0 %2814
      %2816 = vrot.lane.b32.xlu0 %v2725, 40
      %v2817 = vpop.permute.xlu0 %2816
      %2818 = vrot.lane.b32.xlu0 %v2732, 40
      %v2819 = vpop.permute.xlu0 %2818
      %2820 = vrot.lane.b32.xlu0 %v2733, 40
      %v2821 = vpop.permute.xlu0 %2820
      %2822 = vrot.lane.b32.xlu0 %v2740, 40
      %v2823 = vpop.permute.xlu0 %2822
      %2824 = vrot.lane.b32.xlu0 %v2741, 40
      %v2825 = vpop.permute.xlu0 %2824
      %2826 = vrot.lane.b32.xlu0 %v2748, 40
      %v2827 = vpop.permute.xlu0 %2826
      %2828 = vrot.lane.b32.xlu0 %v2749, 40
      %v2829 = vpop.permute.xlu0 %2828
      %2830 = vrot.lane.b32.xlu0 %v2756, 40
      %v2831 = vpop.permute.xlu0 %2830
      %2832 = vrot.lane.b32.xlu0 %v2757, 40
      %v2833 = vpop.permute.xlu0 %2832
      %2834 = vrot.lane.b32.xlu0 %v2764, 40
      %v2835 = vpop.permute.xlu0 %2834
      %2836 = vrot.lane.b32.xlu0 %v2765, 40
      %v2837 = vpop.permute.xlu0 %2836
      %2838 = vrot.lane.b32.xlu0 %v2772, 40
      %v2839 = vpop.permute.xlu0 %2838
      %2840 = vrot.lane.b32.xlu0 %v2773, 40
      %v2841 = vpop.permute.xlu0 %2840
      %2842 = vrot.lane.b32.xlu0 %v2780, 40
      %v2843 = vpop.permute.xlu0 %2842
      %2844 = vrot.lane.b32.xlu0 %v2781, 40
      %v2845 = vpop.permute.xlu0 %2844
      %2846 = vrot.lane.b32.xlu0 %v2788, 40
      %v2847 = vpop.permute.xlu0 %2846
      %2848 = vrot.lane.b32.xlu0 %v2789, 40
      %v2849 = vpop.permute.xlu0 %2848
      %2850 = vrot.lane.b32.xlu0 %v2796, 40
      %v2851 = vpop.permute.xlu0 %2850
      %2852 = vrot.lane.b32.xlu0 %v2797, 40
      %v2853 = vpop.permute.xlu0 %2852
      %2854 = vrot.lane.b32.xlu0 %v2804, 40
      %v2855 = vpop.permute.xlu0 %2854
      %2856 = vrot.lane.b32.xlu0 %v2805, 40
      %v2857 = vpop.permute.xlu0 %2856
      %2858 = vrot.lane.b32.xlu0 %v2812, 40
      %v2859 = vpop.permute.xlu0 %2858
      %2860 = vrot.lane.b32.xlu0 %v2813, 40
      %v2861 = vpop.permute.xlu0 %2860
      %2886 = vst [vmem:[#allocation1] ss:$4 sm:$0xff] %v1735
      %s2887 = scalar_lea.vmem [#allocation1], 1
      %2888 = vst [vmem:[%s2887] ss:$4 sm:$0xff] %v1736
      %s2889 = scalar_lea.vmem [#allocation1], 2
      %2890 = vst [vmem:[%s2889] ss:$4 sm:$0xff] %v1679
      %s2891 = scalar_lea.vmem [#allocation1], 3
      %2892 = vst [vmem:[%s2891] ss:$4 sm:$0xff] %v1737
      %s2893 = scalar_lea.vmem [#allocation1], 32
      %2894 = vst [vmem:[%s2893] ss:$4 sm:$0xff] %v1738
      %s2895 = scalar_lea.vmem [#allocation1], 33
      %2896 = vst [vmem:[%s2895] ss:$4 sm:$0xff] %v1739
      %v2897 = vld.sshfl [vmem:[#allocation1] sm:$0xff pattern:$0x73625140]
      %v2898 = vld.sshfl [vmem:[#allocation1 + $0x20] sm:$0xff pattern:$0x73625140]
      %2899 = vst [vmem:[#allocation1] ss:$4 sm:$0xff] %v1740
      %2900 = vst [vmem:[%s2887] ss:$4 sm:$0xff] %v1741
      %2901 = vst [vmem:[%s2889] ss:$4 sm:$0xff] %v1742
      %2902 = vst [vmem:[%s2891] ss:$4 sm:$0xff] %v1681
      %2903 = vst [vmem:[%s2893] ss:$4 sm:$0xff] %v1743
      %2904 = vst [vmem:[%s2895] ss:$4 sm:$0xff] %v1744
      %v2905 = vld.sshfl [vmem:[#allocation1] sm:$0xff pattern:$0x73625140]
      %v2906 = vld.sshfl [vmem:[#allocation1 + $0x20] sm:$0xff pattern:$0x73625140]
      %2907 = vst [vmem:[#allocation1] ss:$4 sm:$0xff] %v1682
      %2908 = vst [vmem:[%s2887] ss:$4 sm:$0xff] %v1746
      %2909 = vst [vmem:[%s2889] ss:$4 sm:$0xff] %v1747
      %2910 = vst [vmem:[%s2891] ss:$4 sm:$0xff] %v1748
      %2911 = vst [vmem:[%s2893] ss:$4 sm:$0xff] %v1683
      %2912 = vst [vmem:[%s2895] ss:$4 sm:$0xff] %v1749
      %v2913 = vld.sshfl [vmem:[#allocation1] sm:$0xff pattern:$0x73625140]
      %v2914 = vld.sshfl [vmem:[#allocation1 + $0x20] sm:$0xff pattern:$0x73625140]
      %2915 = vst [vmem:[#allocation1] ss:$4 sm:$0xff] %v1751
      %2916 = vst [vmem:[%s2887] ss:$4 sm:$0xff] %v1684
      %2917 = vst [vmem:[%s2889] ss:$4 sm:$0xff] %v1752
      %2918 = vst [vmem:[%s2891] ss:$4 sm:$0xff] %v1753
      %2919 = vst [vmem:[%s2893] ss:$4 sm:$0xff] %v1754
      %2920 = vst [vmem:[%s2895] ss:$4 sm:$0xff] %v1685
      %v2921 = vld.sshfl [vmem:[#allocation1] sm:$0xff pattern:$0x73625140]
      %v2922 = vld.sshfl [vmem:[#allocation1 + $0x20] sm:$0xff pattern:$0x73625140]
      %2923 = vst [vmem:[#allocation1] ss:$4 sm:$0xff] %v1756
      %2924 = vst [vmem:[%s2887] ss:$4 sm:$0xff] %v1757
      %2925 = vst [vmem:[%s2889] ss:$4 sm:$0xff] %v1686
      %2926 = vst [vmem:[%s2891] ss:$4 sm:$0xff] %v1758
      %2927 = vst [vmem:[%s2893] ss:$4 sm:$0xff] %v1759
      %2928 = vst [vmem:[%s2895] ss:$4 sm:$0xff] %v1760
      %v2929 = vld.sshfl [vmem:[#allocation1] sm:$0xff pattern:$0x73625140]
      %v2930 = vld.sshfl [vmem:[#allocation1 + $0x20] sm:$0xff pattern:$0x73625140]
      %2931 = vst [vmem:[#allocation1] ss:$4 sm:$0xff] %v1761
      %2932 = vst [vmem:[%s2887] ss:$4 sm:$0xff] %v1762
      %2933 = vst [vmem:[%s2889] ss:$4 sm:$0xff] %v1763
      %2934 = vst [vmem:[%s2891] ss:$4 sm:$0xff] %v1688
      %2935 = vst [vmem:[%s2893] ss:$4 sm:$0xff] %v1764
      %2936 = vst [vmem:[%s2895] ss:$4 sm:$0xff] %v1765
      %v2937 = vld.sshfl [vmem:[#allocation1] sm:$0xff pattern:$0x73625140]
      %v2938 = vld.sshfl [vmem:[#allocation1 + $0x20] sm:$0xff pattern:$0x73625140]
      %2939 = vst [vmem:[#allocation1] ss:$4 sm:$0xff] %v1689
      %2940 = vst [vmem:[%s2887] ss:$4 sm:$0xff] %v1767
      %2941 = vst [vmem:[%s2889] ss:$4 sm:$0xff] %v1768
      %2942 = vst [vmem:[%s2891] ss:$4 sm:$0xff] %v1769
      %2943 = vst [vmem:[%s2893] ss:$4 sm:$0xff] %v1690
      %2944 = vst [vmem:[%s2895] ss:$4 sm:$0xff] %v1770
      %v2945 = vld.sshfl [vmem:[#allocation1] sm:$0xff pattern:$0x73625140]
      %v2946 = vld.sshfl [vmem:[#allocation1 + $0x20] sm:$0xff pattern:$0x73625140]
      %2947 = vst [vmem:[#allocation1] ss:$4 sm:$0xff] %v1772
      %2948 = vst [vmem:[%s2887] ss:$4 sm:$0xff] %v1691
      %2949 = vst [vmem:[%s2889] ss:$4 sm:$0xff] %v1773
      %2950 = vst [vmem:[%s2891] ss:$4 sm:$0xff] %v1774
      %2951 = vst [vmem:[%s2893] ss:$4 sm:$0xff] %v1775
      %2952 = vst [vmem:[%s2895] ss:$4 sm:$0xff] %v1692
      %v2953 = vld.sshfl [vmem:[#allocation1] sm:$0xff pattern:$0x73625140]
      %v2954 = vld.sshfl [vmem:[#allocation1 + $0x20] sm:$0xff pattern:$0x73625140]
      %2955 = vst [vmem:[#allocation1] ss:$4 sm:$0xff] %v1777
      %2956 = vst [vmem:[%s2887] ss:$4 sm:$0xff] %v1778
      %2957 = vst [vmem:[%s2889] ss:$4 sm:$0xff] %v1693
      %2958 = vst [vmem:[%s2891] ss:$4 sm:$0xff] %v1779
      %2959 = vst [vmem:[%s2893] ss:$4 sm:$0xff] %v1780
      %2960 = vst [vmem:[%s2895] ss:$4 sm:$0xff] %v1781
      %v2961 = vld.sshfl [vmem:[#allocation1] sm:$0xff pattern:$0x73625140]
      %v2962 = vld.sshfl [vmem:[#allocation1 + $0x20] sm:$0xff pattern:$0x73625140]
      %2963 = vst [vmem:[#allocation1] ss:$4 sm:$0xff] %v1782
      %2964 = vst [vmem:[%s2887] ss:$4 sm:$0xff] %v1783
      %2965 = vst [vmem:[%s2889] ss:$4 sm:$0xff] %v1784
      %2966 = vst [vmem:[%s2891] ss:$4 sm:$0xff] %v1695
      %2967 = vst [vmem:[%s2893] ss:$4 sm:$0xff] %v1785
      %2968 = vst [vmem:[%s2895] ss:$4 sm:$0xff] %v1786
      %v2969 = vld.sshfl [vmem:[#allocation1] sm:$0xff pattern:$0x73625140]
      %v2970 = vld.sshfl [vmem:[#allocation1 + $0x20] sm:$0xff pattern:$0x73625140]
      %2971 = vst [vmem:[#allocation1] ss:$4 sm:$0xff] %v1696
      %2972 = vst [vmem:[%s2887] ss:$4 sm:$0xff] %v1788
      %2973 = vst [vmem:[%s2889] ss:$4 sm:$0xff] %v1789
      %2974 = vst [vmem:[%s2891] ss:$4 sm:$0xff] %v1790
      %2975 = vst [vmem:[%s2893] ss:$4 sm:$0xff] %v1697
      %2976 = vst [vmem:[%s2895] ss:$4 sm:$0xff] %v1791
      %v2977 = vld.sshfl [vmem:[#allocation1] sm:$0xff pattern:$0x73625140]
      %v2978 = vld.sshfl [vmem:[#allocation1 + $0x20] sm:$0xff pattern:$0x73625140]
      %2979 = vst [vmem:[#allocation1] ss:$4 sm:$0xff] %v1793
      %2980 = vst [vmem:[%s2887] ss:$4 sm:$0xff] %v1698
      %2981 = vst [vmem:[%s2889] ss:$4 sm:$0xff] %v1794
      %2982 = vst [vmem:[%s2891] ss:$4 sm:$0xff] %v1795
      %2983 = vst [vmem:[%s2893] ss:$4 sm:$0xff] %v1796
      %2984 = vst [vmem:[%s2895] ss:$4 sm:$0xff] %v1699
      %v2985 = vld.sshfl [vmem:[#allocation1] sm:$0xff pattern:$0x73625140]
      %v2986 = vld.sshfl [vmem:[#allocation1 + $0x20] sm:$0xff pattern:$0x73625140]
      %2987 = vrot.lane.b32.xlu0 %v2897, 48
      %v2988 = vpop.permute.xlu0 %2987
      %2989 = vrot.lane.b32.xlu0 %v2898, 48
      %v2990 = vpop.permute.xlu0 %2989
      %2991 = vrot.lane.b32.xlu0 %v2905, 48
      %v2992 = vpop.permute.xlu0 %2991
      %2993 = vrot.lane.b32.xlu0 %v2906, 48
      %v2994 = vpop.permute.xlu0 %2993
      %2995 = vrot.lane.b32.xlu0 %v2913, 48
      %v2996 = vpop.permute.xlu0 %2995
      %2997 = vrot.lane.b32.xlu0 %v2914, 48
      %v2998 = vpop.permute.xlu0 %2997
      %2999 = vrot.lane.b32.xlu0 %v2921, 48
      %v3000 = vpop.permute.xlu0 %2999
      %3001 = vrot.lane.b32.xlu0 %v2922, 48
      %v3002 = vpop.permute.xlu0 %3001
      %3003 = vrot.lane.b32.xlu0 %v2929, 48
      %v3004 = vpop.permute.xlu0 %3003
      %3005 = vrot.lane.b32.xlu0 %v2930, 48
      %v3006 = vpop.permute.xlu0 %3005
      %3007 = vrot.lane.b32.xlu0 %v2937, 48
      %v3008 = vpop.permute.xlu0 %3007
      %3009 = vrot.lane.b32.xlu0 %v2938, 48
      %v3010 = vpop.permute.xlu0 %3009
      %3011 = vrot.lane.b32.xlu0 %v2945, 48
      %v3012 = vpop.permute.xlu0 %3011
      %3013 = vrot.lane.b32.xlu0 %v2946, 48
      %v3014 = vpop.permute.xlu0 %3013
      %3015 = vrot.lane.b32.xlu0 %v2953, 48
      %v3016 = vpop.permute.xlu0 %3015
      %3017 = vrot.lane.b32.xlu0 %v2954, 48
      %v3018 = vpop.permute.xlu0 %3017
      %3019 = vrot.lane.b32.xlu0 %v2961, 48
      %v3020 = vpop.permute.xlu0 %3019
      %3021 = vrot.lane.b32.xlu0 %v2962, 48
      %v3022 = vpop.permute.xlu0 %3021
      %3023 = vrot.lane.b32.xlu0 %v2969, 48
      %v3024 = vpop.permute.xlu0 %3023
      %3025 = vrot.lane.b32.xlu0 %v2970, 48
      %v3026 = vpop.permute.xlu0 %3025
      %3027 = vrot.lane.b32.xlu0 %v2977, 48
      %v3028 = vpop.permute.xlu0 %3027
      %3029 = vrot.lane.b32.xlu0 %v2978, 48
      %v3030 = vpop.permute.xlu0 %3029
      %3031 = vrot.lane.b32.xlu0 %v2985, 48
      %v3032 = vpop.permute.xlu0 %3031
      %3033 = vrot.lane.b32.xlu0 %v2986, 48
      %v3034 = vpop.permute.xlu0 %3033
      %3059 = vst [vmem:[#allocation1] ss:$4 sm:$0xff] %v1735
      %s3060 = scalar_lea.vmem [#allocation1], 1
      %3061 = vst [vmem:[%s3060] ss:$4 sm:$0xff] %v1736
      %s3062 = scalar_lea.vmem [#allocation1], 2
      %3063 = vst [vmem:[%s3062] ss:$4 sm:$0xff] %v1679
      %s3064 = scalar_lea.vmem [#allocation1], 3
      %3065 = vst [vmem:[%s3064] ss:$4 sm:$0xff] %v1737
      %s3066 = scalar_lea.vmem [#allocation1], 32
      %3067 = vst [vmem:[%s3066] ss:$4 sm:$0xff] %v1738
      %s3068 = scalar_lea.vmem [#allocation1], 33
      %3069 = vst [vmem:[%s3068] ss:$4 sm:$0xff] %v1739
      %s3070 = scalar_lea.vmem [#allocation1], 34
      %3071 = vst [vmem:[%s3070] ss:$4 sm:$0xff] %v1680
      %v3072 = vld.sshfl [vmem:[#allocation1] sm:$0xff pattern:$0x73625140]
      %v3073 = vld.sshfl [vmem:[#allocation1 + $0x20] sm:$0xff pattern:$0x73625140]
      %3074 = vst [vmem:[#allocation1] ss:$4 sm:$0xff] %v1740
      %3075 = vst [vmem:[%s3060] ss:$4 sm:$0xff] %v1741
      %3076 = vst [vmem:[%s3062] ss:$4 sm:$0xff] %v1742
      %3077 = vst [vmem:[%s3064] ss:$4 sm:$0xff] %v1681
      %3078 = vst [vmem:[%s3066] ss:$4 sm:$0xff] %v1743
      %3079 = vst [vmem:[%s3068] ss:$4 sm:$0xff] %v1744
      %3080 = vst [vmem:[%s3070] ss:$4 sm:$0xff] %v1745
      %v3081 = vld.sshfl [vmem:[#allocation1] sm:$0xff pattern:$0x73625140]
      %v3082 = vld.sshfl [vmem:[#allocation1 + $0x20] sm:$0xff pattern:$0x73625140]
      %3083 = vst [vmem:[#allocation1] ss:$4 sm:$0xff] %v1682
      %3084 = vst [vmem:[%s3060] ss:$4 sm:$0xff] %v1746
      %3085 = vst [vmem:[%s3062] ss:$4 sm:$0xff] %v1747
      %3086 = vst [vmem:[%s3064] ss:$4 sm:$0xff] %v1748
      %3087 = vst [vmem:[%s3066] ss:$4 sm:$0xff] %v1683
      %3088 = vst [vmem:[%s3068] ss:$4 sm:$0xff] %v1749
      %3089 = vst [vmem:[%s3070] ss:$4 sm:$0xff] %v1750
      %v3090 = vld.sshfl [vmem:[#allocation1] sm:$0xff pattern:$0x73625140]
      %v3091 = vld.sshfl [vmem:[#allocation1 + $0x20] sm:$0xff pattern:$0x73625140]
      %3092 = vst [vmem:[#allocation1] ss:$4 sm:$0xff] %v1751
      %3093 = vst [vmem:[%s3060] ss:$4 sm:$0xff] %v1684
      %3094 = vst [vmem:[%s3062] ss:$4 sm:$0xff] %v1752
      %3095 = vst [vmem:[%s3064] ss:$4 sm:$0xff] %v1753
      %3096 = vst [vmem:[%s3066] ss:$4 sm:$0xff] %v1754
      %3097 = vst [vmem:[%s3068] ss:$4 sm:$0xff] %v1685
      %3098 = vst [vmem:[%s3070] ss:$4 sm:$0xff] %v1755
      %v3099 = vld.sshfl [vmem:[#allocation1] sm:$0xff pattern:$0x73625140]
      %v3100 = vld.sshfl [vmem:[#allocation1 + $0x20] sm:$0xff pattern:$0x73625140]
      %3101 = vst [vmem:[#allocation1] ss:$4 sm:$0xff] %v1756
      %3102 = vst [vmem:[%s3060] ss:$4 sm:$0xff] %v1757
      %3103 = vst [vmem:[%s3062] ss:$4 sm:$0xff] %v1686
      %3104 = vst [vmem:[%s3064] ss:$4 sm:$0xff] %v1758
      %3105 = vst [vmem:[%s3066] ss:$4 sm:$0xff] %v1759
      %3106 = vst [vmem:[%s3068] ss:$4 sm:$0xff] %v1760
      %3107 = vst [vmem:[%s3070] ss:$4 sm:$0xff] %v1687
      %v3108 = vld.sshfl [vmem:[#allocation1] sm:$0xff pattern:$0x73625140]
      %v3109 = vld.sshfl [vmem:[#allocation1 + $0x20] sm:$0xff pattern:$0x73625140]
      %3110 = vst [vmem:[#allocation1] ss:$4 sm:$0xff] %v1761
      %3111 = vst [vmem:[%s3060] ss:$4 sm:$0xff] %v1762
      %3112 = vst [vmem:[%s3062] ss:$4 sm:$0xff] %v1763
      %3113 = vst [vmem:[%s3064] ss:$4 sm:$0xff] %v1688
      %3114 = vst [vmem:[%s3066] ss:$4 sm:$0xff] %v1764
      %3115 = vst [vmem:[%s3068] ss:$4 sm:$0xff] %v1765
      %3116 = vst [vmem:[%s3070] ss:$4 sm:$0xff] %v1766
      %v3117 = vld.sshfl [vmem:[#allocation1] sm:$0xff pattern:$0x73625140]
      %v3118 = vld.sshfl [vmem:[#allocation1 + $0x20] sm:$0xff pattern:$0x73625140]
      %3119 = vst [vmem:[#allocation1] ss:$4 sm:$0xff] %v1689
      %3120 = vst [vmem:[%s3060] ss:$4 sm:$0xff] %v1767
      %3121 = vst [vmem:[%s3062] ss:$4 sm:$0xff] %v1768
      %3122 = vst [vmem:[%s3064] ss:$4 sm:$0xff] %v1769
      %3123 = vst [vmem:[%s3066] ss:$4 sm:$0xff] %v1690
      %3124 = vst [vmem:[%s3068] ss:$4 sm:$0xff] %v1770
      %3125 = vst [vmem:[%s3070] ss:$4 sm:$0xff] %v1771
      %v3126 = vld.sshfl [vmem:[#allocation1] sm:$0xff pattern:$0x73625140]
      %v3127 = vld.sshfl [vmem:[#allocation1 + $0x20] sm:$0xff pattern:$0x73625140]
      %3128 = vst [vmem:[#allocation1] ss:$4 sm:$0xff] %v1772
      %3129 = vst [vmem:[%s3060] ss:$4 sm:$0xff] %v1691
      %3130 = vst [vmem:[%s3062] ss:$4 sm:$0xff] %v1773
      %3131 = vst [vmem:[%s3064] ss:$4 sm:$0xff] %v1774
      %3132 = vst [vmem:[%s3066] ss:$4 sm:$0xff] %v1775
      %3133 = vst [vmem:[%s3068] ss:$4 sm:$0xff] %v1692
      %3134 = vst [vmem:[%s3070] ss:$4 sm:$0xff] %v1776
      %v3135 = vld.sshfl [vmem:[#allocation1] sm:$0xff pattern:$0x73625140]
      %v3136 = vld.sshfl [vmem:[#allocation1 + $0x20] sm:$0xff pattern:$0x73625140]
      %3137 = vst [vmem:[#allocation1] ss:$4 sm:$0xff] %v1777
      %3138 = vst [vmem:[%s3060] ss:$4 sm:$0xff] %v1778
      %3139 = vst [vmem:[%s3062] ss:$4 sm:$0xff] %v1693
      %3140 = vst [vmem:[%s3064] ss:$4 sm:$0xff] %v1779
      %3141 = vst [vmem:[%s3066] ss:$4 sm:$0xff] %v1780
      %3142 = vst [vmem:[%s3068] ss:$4 sm:$0xff] %v1781
      %3143 = vst [vmem:[%s3070] ss:$4 sm:$0xff] %v1694
      %v3144 = vld.sshfl [vmem:[#allocation1] sm:$0xff pattern:$0x73625140]
      %v3145 = vld.sshfl [vmem:[#allocation1 + $0x20] sm:$0xff pattern:$0x73625140]
      %3146 = vst [vmem:[#allocation1] ss:$4 sm:$0xff] %v1782
      %3147 = vst [vmem:[%s3060] ss:$4 sm:$0xff] %v1783
      %3148 = vst [vmem:[%s3062] ss:$4 sm:$0xff] %v1784
      %3149 = vst [vmem:[%s3064] ss:$4 sm:$0xff] %v1695
      %3150 = vst [vmem:[%s3066] ss:$4 sm:$0xff] %v1785
      %3151 = vst [vmem:[%s3068] ss:$4 sm:$0xff] %v1786
      %3152 = vst [vmem:[%s3070] ss:$4 sm:$0xff] %v1787
      %v3153 = vld.sshfl [vmem:[#allocation1] sm:$0xff pattern:$0x73625140]
      %v3154 = vld.sshfl [vmem:[#allocation1 + $0x20] sm:$0xff pattern:$0x73625140]
      %3155 = vst [vmem:[#allocation1] ss:$4 sm:$0xff] %v1696
      %3156 = vst [vmem:[%s3060] ss:$4 sm:$0xff] %v1788
      %3157 = vst [vmem:[%s3062] ss:$4 sm:$0xff] %v1789
      %3158 = vst [vmem:[%s3064] ss:$4 sm:$0xff] %v1790
      %3159 = vst [vmem:[%s3066] ss:$4 sm:$0xff] %v1697
      %3160 = vst [vmem:[%s3068] ss:$4 sm:$0xff] %v1791
      %3161 = vst [vmem:[%s3070] ss:$4 sm:$0xff] %v1792
      %v3162 = vld.sshfl [vmem:[#allocation1] sm:$0xff pattern:$0x73625140]
      %v3163 = vld.sshfl [vmem:[#allocation1 + $0x20] sm:$0xff pattern:$0x73625140]
      %3164 = vst [vmem:[#allocation1] ss:$4 sm:$0xff] %v1793
      %3165 = vst [vmem:[%s3060] ss:$4 sm:$0xff] %v1698
      %3166 = vst [vmem:[%s3062] ss:$4 sm:$0xff] %v1794
      %3167 = vst [vmem:[%s3064] ss:$4 sm:$0xff] %v1795
      %3168 = vst [vmem:[%s3066] ss:$4 sm:$0xff] %v1796
      %3169 = vst [vmem:[%s3068] ss:$4 sm:$0xff] %v1699
      %3170 = vst [vmem:[%s3070] ss:$4 sm:$0xff] %v1797
      %v3171 = vld.sshfl [vmem:[#allocation1] sm:$0xff pattern:$0x73625140]
      %v3172 = vld.sshfl [vmem:[#allocation1 + $0x20] sm:$0xff pattern:$0x73625140]
      %v3173 = vrot.slane %v3072, 1
      %v3174 = vrot.slane %v3073, 1
      %v3175 = vsel %vm285, %v3173, %v3174
      %v3176 = vrot.slane %v3081, 1
      %v3177 = vrot.slane %v3082, 1
      %v3178 = vsel %vm285, %v3176, %v3177
      %v3179 = vrot.slane %v3090, 1
      %v3180 = vrot.slane %v3091, 1
      %v3181 = vsel %vm285, %v3179, %v3180
      %v3182 = vrot.slane %v3099, 1
      %v3183 = vrot.slane %v3100, 1
      %v3184 = vsel %vm285, %v3182, %v3183
      %v3185 = vrot.slane %v3108, 1
      %v3186 = vrot.slane %v3109, 1
      %v3187 = vsel %vm285, %v3185, %v3186
      %v3188 = vrot.slane %v3117, 1
      %v3189 = vrot.slane %v3118, 1
      %v3190 = vsel %vm285, %v3188, %v3189
      %v3191 = vrot.slane %v3126, 1
      %v3192 = vrot.slane %v3127, 1
      %v3193 = vsel %vm285, %v3191, %v3192
      %v3194 = vrot.slane %v3135, 1
      %v3195 = vrot.slane %v3136, 1
      %v3196 = vsel %vm285, %v3194, %v3195
      %v3197 = vrot.slane %v3144, 1
      %v3198 = vrot.slane %v3145, 1
      %v3199 = vsel %vm285, %v3197, %v3198
      %v3200 = vrot.slane %v3153, 1
      %v3201 = vrot.slane %v3154, 1
      %v3202 = vsel %vm285, %v3200, %v3201
      %v3203 = vrot.slane %v3162, 1
      %v3204 = vrot.slane %v3163, 1
      %v3205 = vsel %vm285, %v3203, %v3204
      %v3206 = vrot.slane %v3171, 1
      %v3207 = vrot.slane %v3172, 1
      %v3208 = vsel %vm285, %v3206, %v3207
      %3209 = vrot.lane.b32.xlu0 %v3175, 56
      %v3210 = vpop.permute.xlu0 %3209
      %3211 = vrot.lane.b32.xlu0 %v3174, 56
      %v3212 = vpop.permute.xlu0 %3211
      %3213 = vrot.lane.b32.xlu0 %v3178, 56
      %v3214 = vpop.permute.xlu0 %3213
      %3215 = vrot.lane.b32.xlu0 %v3177, 56
      %v3216 = vpop.permute.xlu0 %3215
      %3217 = vrot.lane.b32.xlu0 %v3181, 56
      %v3218 = vpop.permute.xlu0 %3217
      %3219 = vrot.lane.b32.xlu0 %v3180, 56
      %v3220 = vpop.permute.xlu0 %3219
      %3221 = vrot.lane.b32.xlu0 %v3184, 56
      %v3222 = vpop.permute.xlu0 %3221
      %3223 = vrot.lane.b32.xlu0 %v3183, 56
      %v3224 = vpop.permute.xlu0 %3223
      %3225 = vrot.lane.b32.xlu0 %v3187, 56
      %v3226 = vpop.permute.xlu0 %3225
      %3227 = vrot.lane.b32.xlu0 %v3186, 56
      %v3228 = vpop.permute.xlu0 %3227
      %3229 = vrot.lane.b32.xlu0 %v3190, 56
      %v3230 = vpop.permute.xlu0 %3229
      %3231 = vrot.lane.b32.xlu0 %v3189, 56
      %v3232 = vpop.permute.xlu0 %3231
      %3233 = vrot.lane.b32.xlu0 %v3193, 56
      %v3234 = vpop.permute.xlu0 %3233
      %3235 = vrot.lane.b32.xlu0 %v3192, 56
      %v3236 = vpop.permute.xlu0 %3235
      %3237 = vrot.lane.b32.xlu0 %v3196, 56
      %v3238 = vpop.permute.xlu0 %3237
      %3239 = vrot.lane.b32.xlu0 %v3195, 56
      %v3240 = vpop.permute.xlu0 %3239
      %3241 = vrot.lane.b32.xlu0 %v3199, 56
      %v3242 = vpop.permute.xlu0 %3241
      %3243 = vrot.lane.b32.xlu0 %v3198, 56
      %v3244 = vpop.permute.xlu0 %3243
      %3245 = vrot.lane.b32.xlu0 %v3202, 56
      %v3246 = vpop.permute.xlu0 %3245
      %3247 = vrot.lane.b32.xlu0 %v3201, 56
      %v3248 = vpop.permute.xlu0 %3247
      %3249 = vrot.lane.b32.xlu0 %v3205, 56
      %v3250 = vpop.permute.xlu0 %3249
      %3251 = vrot.lane.b32.xlu0 %v3204, 56
      %v3252 = vpop.permute.xlu0 %3251
      %3253 = vrot.lane.b32.xlu0 %v3208, 56
      %v3254 = vpop.permute.xlu0 %3253
      %3255 = vrot.lane.b32.xlu0 %v3207, 56
      %v3256 = vpop.permute.xlu0 %3255
      %3281 = vst [vmem:[#allocation1] ss:$4 sm:$0xff] %v1736
      %s3282 = scalar_lea.vmem [#allocation1], 1
      %3283 = vst [vmem:[%s3282] ss:$4 sm:$0xff] %v1679
      %s3284 = scalar_lea.vmem [#allocation1], 2
      %3285 = vst [vmem:[%s3284] ss:$4 sm:$0xff] %v1737
      %s3286 = scalar_lea.vmem [#allocation1], 3
      %3287 = vst [vmem:[%s3286] ss:$4 sm:$0xff] %v1738
      %s3288 = scalar_lea.vmem [#allocation1], 32
      %3289 = vst [vmem:[%s3288] ss:$4 sm:$0xff] %v1739
      %s3290 = scalar_lea.vmem [#allocation1], 33
      %3291 = vst [vmem:[%s3290] ss:$4 sm:$0xff] %v1680
      %v3292 = vld.sshfl [vmem:[#allocation1] sm:$0xff pattern:$0x73625140]
      %v3293 = vld.sshfl [vmem:[#allocation1 + $0x20] sm:$0xff pattern:$0x73625140]
      %3294 = vst [vmem:[#allocation1] ss:$4 sm:$0xff] %v1741
      %3295 = vst [vmem:[%s3282] ss:$4 sm:$0xff] %v1742
      %3296 = vst [vmem:[%s3284] ss:$4 sm:$0xff] %v1681
      %3297 = vst [vmem:[%s3286] ss:$4 sm:$0xff] %v1743
      %3298 = vst [vmem:[%s3288] ss:$4 sm:$0xff] %v1744
      %3299 = vst [vmem:[%s3290] ss:$4 sm:$0xff] %v1745
      %v3300 = vld.sshfl [vmem:[#allocation1] sm:$0xff pattern:$0x73625140]
      %v3301 = vld.sshfl [vmem:[#allocation1 + $0x20] sm:$0xff pattern:$0x73625140]
      %3302 = vst [vmem:[#allocation1] ss:$4 sm:$0xff] %v1746
      %3303 = vst [vmem:[%s3282] ss:$4 sm:$0xff] %v1747
      %3304 = vst [vmem:[%s3284] ss:$4 sm:$0xff] %v1748
      %3305 = vst [vmem:[%s3286] ss:$4 sm:$0xff] %v1683
      %3306 = vst [vmem:[%s3288] ss:$4 sm:$0xff] %v1749
      %3307 = vst [vmem:[%s3290] ss:$4 sm:$0xff] %v1750
      %v3308 = vld.sshfl [vmem:[#allocation1] sm:$0xff pattern:$0x73625140]
      %v3309 = vld.sshfl [vmem:[#allocation1 + $0x20] sm:$0xff pattern:$0x73625140]
      %3310 = vst [vmem:[#allocation1] ss:$4 sm:$0xff] %v1684
      %3311 = vst [vmem:[%s3282] ss:$4 sm:$0xff] %v1752
      %3312 = vst [vmem:[%s3284] ss:$4 sm:$0xff] %v1753
      %3313 = vst [vmem:[%s3286] ss:$4 sm:$0xff] %v1754
      %3314 = vst [vmem:[%s3288] ss:$4 sm:$0xff] %v1685
      %3315 = vst [vmem:[%s3290] ss:$4 sm:$0xff] %v1755
      %v3316 = vld.sshfl [vmem:[#allocation1] sm:$0xff pattern:$0x73625140]
      %v3317 = vld.sshfl [vmem:[#allocation1 + $0x20] sm:$0xff pattern:$0x73625140]
      %3318 = vst [vmem:[#allocation1] ss:$4 sm:$0xff] %v1757
      %3319 = vst [vmem:[%s3282] ss:$4 sm:$0xff] %v1686
      %3320 = vst [vmem:[%s3284] ss:$4 sm:$0xff] %v1758
      %3321 = vst [vmem:[%s3286] ss:$4 sm:$0xff] %v1759
      %3322 = vst [vmem:[%s3288] ss:$4 sm:$0xff] %v1760
      %3323 = vst [vmem:[%s3290] ss:$4 sm:$0xff] %v1687
      %v3324 = vld.sshfl [vmem:[#allocation1] sm:$0xff pattern:$0x73625140]
      %v3325 = vld.sshfl [vmem:[#allocation1 + $0x20] sm:$0xff pattern:$0x73625140]
      %3326 = vst [vmem:[#allocation1] ss:$4 sm:$0xff] %v1762
      %3327 = vst [vmem:[%s3282] ss:$4 sm:$0xff] %v1763
      %3328 = vst [vmem:[%s3284] ss:$4 sm:$0xff] %v1688
      %3329 = vst [vmem:[%s3286] ss:$4 sm:$0xff] %v1764
      %3330 = vst [vmem:[%s3288] ss:$4 sm:$0xff] %v1765
      %3331 = vst [vmem:[%s3290] ss:$4 sm:$0xff] %v1766
      %v3332 = vld.sshfl [vmem:[#allocation1] sm:$0xff pattern:$0x73625140]
      %v3333 = vld.sshfl [vmem:[#allocation1 + $0x20] sm:$0xff pattern:$0x73625140]
      %3334 = vst [vmem:[#allocation1] ss:$4 sm:$0xff] %v1767
      %3335 = vst [vmem:[%s3282] ss:$4 sm:$0xff] %v1768
      %3336 = vst [vmem:[%s3284] ss:$4 sm:$0xff] %v1769
      %3337 = vst [vmem:[%s3286] ss:$4 sm:$0xff] %v1690
      %3338 = vst [vmem:[%s3288] ss:$4 sm:$0xff] %v1770
      %3339 = vst [vmem:[%s3290] ss:$4 sm:$0xff] %v1771
      %v3340 = vld.sshfl [vmem:[#allocation1] sm:$0xff pattern:$0x73625140]
      %v3341 = vld.sshfl [vmem:[#allocation1 + $0x20] sm:$0xff pattern:$0x73625140]
      %3342 = vst [vmem:[#allocation1] ss:$4 sm:$0xff] %v1691
      %3343 = vst [vmem:[%s3282] ss:$4 sm:$0xff] %v1773
      %3344 = vst [vmem:[%s3284] ss:$4 sm:$0xff] %v1774
      %3345 = vst [vmem:[%s3286] ss:$4 sm:$0xff] %v1775
      %3346 = vst [vmem:[%s3288] ss:$4 sm:$0xff] %v1692
      %3347 = vst [vmem:[%s3290] ss:$4 sm:$0xff] %v1776
      %v3348 = vld.sshfl [vmem:[#allocation1] sm:$0xff pattern:$0x73625140]
      %v3349 = vld.sshfl [vmem:[#allocation1 + $0x20] sm:$0xff pattern:$0x73625140]
      %3350 = vst [vmem:[#allocation1] ss:$4 sm:$0xff] %v1778
      %3351 = vst [vmem:[%s3282] ss:$4 sm:$0xff] %v1693
      %3352 = vst [vmem:[%s3284] ss:$4 sm:$0xff] %v1779
      %3353 = vst [vmem:[%s3286] ss:$4 sm:$0xff] %v1780
      %3354 = vst [vmem:[%s3288] ss:$4 sm:$0xff] %v1781
      %3355 = vst [vmem:[%s3290] ss:$4 sm:$0xff] %v1694
      %v3356 = vld.sshfl [vmem:[#allocation1] sm:$0xff pattern:$0x73625140]
      %v3357 = vld.sshfl [vmem:[#allocation1 + $0x20] sm:$0xff pattern:$0x73625140]
      %3358 = vst [vmem:[#allocation1] ss:$4 sm:$0xff] %v1783
      %3359 = vst [vmem:[%s3282] ss:$4 sm:$0xff] %v1784
      %3360 = vst [vmem:[%s3284] ss:$4 sm:$0xff] %v1695
      %3361 = vst [vmem:[%s3286] ss:$4 sm:$0xff] %v1785
      %3362 = vst [vmem:[%s3288] ss:$4 sm:$0xff] %v1786
      %3363 = vst [vmem:[%s3290] ss:$4 sm:$0xff] %v1787
      %v3364 = vld.sshfl [vmem:[#allocation1] sm:$0xff pattern:$0x73625140]
      %v3365 = vld.sshfl [vmem:[#allocation1 + $0x20] sm:$0xff pattern:$0x73625140]
      %3366 = vst [vmem:[#allocation1] ss:$4 sm:$0xff] %v1788
      %3367 = vst [vmem:[%s3282] ss:$4 sm:$0xff] %v1789
      %3368 = vst [vmem:[%s3284] ss:$4 sm:$0xff] %v1790
      %3369 = vst [vmem:[%s3286] ss:$4 sm:$0xff] %v1697
      %3370 = vst [vmem:[%s3288] ss:$4 sm:$0xff] %v1791
      %3371 = vst [vmem:[%s3290] ss:$4 sm:$0xff] %v1792
      %v3372 = vld.sshfl [vmem:[#allocation1] sm:$0xff pattern:$0x73625140]
      %v3373 = vld.sshfl [vmem:[#allocation1 + $0x20] sm:$0xff pattern:$0x73625140]
      %3374 = vst [vmem:[#allocation1] ss:$4 sm:$0xff] %v1698
      %3375 = vst [vmem:[%s3282] ss:$4 sm:$0xff] %v1794
      %3376 = vst [vmem:[%s3284] ss:$4 sm:$0xff] %v1795
      %3377 = vst [vmem:[%s3286] ss:$4 sm:$0xff] %v1796
      %3378 = vst [vmem:[%s3288] ss:$4 sm:$0xff] %v1699
      %3379 = vst [vmem:[%s3290] ss:$4 sm:$0xff] %v1797
      %v3380 = vld.sshfl [vmem:[#allocation1] sm:$0xff pattern:$0x73625140]
      %v3381 = vld.sshfl [vmem:[#allocation1 + $0x20] sm:$0xff pattern:$0x73625140]
      %3382 = vrot.lane.b32.xlu0 %v3292, 64
      %v3383 = vpop.permute.xlu0 %3382
      %3384 = vrot.lane.b32.xlu0 %v3293, 64
      %v3385 = vpop.permute.xlu0 %3384
      %3386 = vrot.lane.b32.xlu0 %v3300, 64
      %v3387 = vpop.permute.xlu0 %3386
      %3388 = vrot.lane.b32.xlu0 %v3301, 64
      %v3389 = vpop.permute.xlu0 %3388
      %3390 = vrot.lane.b32.xlu0 %v3308, 64
      %v3391 = vpop.permute.xlu0 %3390
      %3392 = vrot.lane.b32.xlu0 %v3309, 64
      %v3393 = vpop.permute.xlu0 %3392
      %3394 = vrot.lane.b32.xlu0 %v3316, 64
      %v3395 = vpop.permute.xlu0 %3394
      %3396 = vrot.lane.b32.xlu0 %v3317, 64
      %v3397 = vpop.permute.xlu0 %3396
      %3398 = vrot.lane.b32.xlu0 %v3324, 64
      %v3399 = vpop.permute.xlu0 %3398
      %3400 = vrot.lane.b32.xlu0 %v3325, 64
      %v3401 = vpop.permute.xlu0 %3400
      %3402 = vrot.lane.b32.xlu0 %v3332, 64
      %v3403 = vpop.permute.xlu0 %3402
      %3404 = vrot.lane.b32.xlu0 %v3333, 64
      %v3405 = vpop.permute.xlu0 %3404
      %3406 = vrot.lane.b32.xlu0 %v3340, 64
      %v3407 = vpop.permute.xlu0 %3406
      %3408 = vrot.lane.b32.xlu0 %v3341, 64
      %v3409 = vpop.permute.xlu0 %3408
      %3410 = vrot.lane.b32.xlu0 %v3348, 64
      %v3411 = vpop.permute.xlu0 %3410
      %3412 = vrot.lane.b32.xlu0 %v3349, 64
      %v3413 = vpop.permute.xlu0 %3412
      %3414 = vrot.lane.b32.xlu0 %v3356, 64
      %v3415 = vpop.permute.xlu0 %3414
      %3416 = vrot.lane.b32.xlu0 %v3357, 64
      %v3417 = vpop.permute.xlu0 %3416
      %3418 = vrot.lane.b32.xlu0 %v3364, 64
      %v3419 = vpop.permute.xlu0 %3418
      %3420 = vrot.lane.b32.xlu0 %v3365, 64
      %v3421 = vpop.permute.xlu0 %3420
      %3422 = vrot.lane.b32.xlu0 %v3372, 64
      %v3423 = vpop.permute.xlu0 %3422
      %3424 = vrot.lane.b32.xlu0 %v3373, 64
      %v3425 = vpop.permute.xlu0 %3424
      %3426 = vrot.lane.b32.xlu0 %v3380, 64
      %v3427 = vpop.permute.xlu0 %3426
      %3428 = vrot.lane.b32.xlu0 %v3381, 64
      %v3429 = vpop.permute.xlu0 %3428
      %v3454 = vsel %vm1088, %v1809, %v2074
      %v3455 = vsel %vm1088, %v1810, %v2076
      %v3456 = vsel %vm1088, %v1817, %v2078
      %v3457 = vsel %vm1088, %v1818, %v2080
      %v3458 = vsel %vm1088, %v1825, %v2082
      %v3459 = vsel %vm1088, %v1826, %v2084
      %v3460 = vsel %vm1088, %v1833, %v2086
      %v3461 = vsel %vm1088, %v1834, %v2088
      %v3462 = vsel %vm1088, %v1841, %v2090
      %v3463 = vsel %vm1088, %v1842, %v2092
      %v3464 = vsel %vm1088, %v1849, %v2094
      %v3465 = vsel %vm1088, %v1850, %v2096
      %v3466 = vsel %vm1088, %v1857, %v2098
      %v3467 = vsel %vm1088, %v1858, %v2100
      %v3468 = vsel %vm1088, %v1865, %v2102
      %v3469 = vsel %vm1088, %v1866, %v2104
      %v3470 = vsel %vm1088, %v1873, %v2106
      %v3471 = vsel %vm1088, %v1874, %v2108
      %v3472 = vsel %vm1088, %v1881, %v2110
      %v3473 = vsel %vm1088, %v1882, %v2112
      %v3474 = vsel %vm1088, %v1889, %v2114
      %v3475 = vsel %vm1088, %v1890, %v2116
      %v3476 = vsel %vm1088, %v1897, %v2118
      %v3477 = vsel %vm1088, %v1898, %v2120
      %v3478 = vsel %vm1146, %v3454, %v2247
      %v3479 = vsel %vm1146, %v3455, %v2249
      %v3480 = vsel %vm1146, %v3456, %v2251
      %v3481 = vsel %vm1146, %v3457, %v2253
      %v3482 = vsel %vm1146, %v3458, %v2255
      %v3483 = vsel %vm1146, %v3459, %v2257
      %v3484 = vsel %vm1146, %v3460, %v2259
      %v3485 = vsel %vm1146, %v3461, %v2261
      %v3486 = vsel %vm1146, %v3462, %v2263
      %v3487 = vsel %vm1146, %v3463, %v2265
      %v3488 = vsel %vm1146, %v3464, %v2267
      %v3489 = vsel %vm1146, %v3465, %v2269
      %v3490 = vsel %vm1146, %v3466, %v2271
      %v3491 = vsel %vm1146, %v3467, %v2273
      %v3492 = vsel %vm1146, %v3468, %v2275
      %v3493 = vsel %vm1146, %v3469, %v2277
      %v3494 = vsel %vm1146, %v3470, %v2279
      %v3495 = vsel %vm1146, %v3471, %v2281
      %v3496 = vsel %vm1146, %v3472, %v2283
      %v3497 = vsel %vm1146, %v3473, %v2285
      %v3498 = vsel %vm1146, %v3474, %v2287
      %v3499 = vsel %vm1146, %v3475, %v2289
      %v3500 = vsel %vm1146, %v3476, %v2291
      %v3501 = vsel %vm1146, %v3477, %v2293
      %v3502 = vsel %vm1204, %v3478, %v2420
      %v3503 = vsel %vm1204, %v3479, %v2422
      %v3504 = vsel %vm1204, %v3480, %v2424
      %v3505 = vsel %vm1204, %v3481, %v2426
      %v3506 = vsel %vm1204, %v3482, %v2428
      %v3507 = vsel %vm1204, %v3483, %v2430
      %v3508 = vsel %vm1204, %v3484, %v2432
      %v3509 = vsel %vm1204, %v3485, %v2434
      %v3510 = vsel %vm1204, %v3486, %v2436
      %v3511 = vsel %vm1204, %v3487, %v2438
      %v3512 = vsel %vm1204, %v3488, %v2440
      %v3513 = vsel %vm1204, %v3489, %v2442
      %v3514 = vsel %vm1204, %v3490, %v2444
      %v3515 = vsel %vm1204, %v3491, %v2446
      %v3516 = vsel %vm1204, %v3492, %v2448
      %v3517 = vsel %vm1204, %v3493, %v2450
      %v3518 = vsel %vm1204, %v3494, %v2452
      %v3519 = vsel %vm1204, %v3495, %v2454
      %v3520 = vsel %vm1204, %v3496, %v2456
      %v3521 = vsel %vm1204, %v3497, %v2458
      %v3522 = vsel %vm1204, %v3498, %v2460
      %v3523 = vsel %vm1204, %v3499, %v2462
      %v3524 = vsel %vm1204, %v3500, %v2464
      %v3525 = vsel %vm1204, %v3501, %v2466
      %v3526 = vsel %vm1262, %v3502, %v2642
      %v3527 = vsel %vm1262, %v3503, %v2644
      %v3528 = vsel %vm1262, %v3504, %v2646
      %v3529 = vsel %vm1262, %v3505, %v2648
      %v3530 = vsel %vm1262, %v3506, %v2650
      %v3531 = vsel %vm1262, %v3507, %v2652
      %v3532 = vsel %vm1262, %v3508, %v2654
      %v3533 = vsel %vm1262, %v3509, %v2656
      %v3534 = vsel %vm1262, %v3510, %v2658
      %v3535 = vsel %vm1262, %v3511, %v2660
      %v3536 = vsel %vm1262, %v3512, %v2662
      %v3537 = vsel %vm1262, %v3513, %v2664
      %v3538 = vsel %vm1262, %v3514, %v2666
      %v3539 = vsel %vm1262, %v3515, %v2668
      %v3540 = vsel %vm1262, %v3516, %v2670
      %v3541 = vsel %vm1262, %v3517, %v2672
      %v3542 = vsel %vm1262, %v3518, %v2674
      %v3543 = vsel %vm1262, %v3519, %v2676
      %v3544 = vsel %vm1262, %v3520, %v2678
      %v3545 = vsel %vm1262, %v3521, %v2680
      %v3546 = vsel %vm1262, %v3522, %v2682
      %v3547 = vsel %vm1262, %v3523, %v2684
      %v3548 = vsel %vm1262, %v3524, %v2686
      %v3549 = vsel %vm1262, %v3525, %v2688
      %vm3550 = vcmask 326656
      %v3551 = vsel %vm3550, %v3526, %v2815
      %v3552 = vsel %vm3550, %v3527, %v2817
      %v3553 = vsel %vm3550, %v3528, %v2819
      %v3554 = vsel %vm3550, %v3529, %v2821
      %v3555 = vsel %vm3550, %v3530, %v2823
      %v3556 = vsel %vm3550, %v3531, %v2825
      %v3557 = vsel %vm3550, %v3532, %v2827
      %v3558 = vsel %vm3550, %v3533, %v2829
      %v3559 = vsel %vm3550, %v3534, %v2831
      %v3560 = vsel %vm3550, %v3535, %v2833
      %v3561 = vsel %vm3550, %v3536, %v2835
      %v3562 = vsel %vm3550, %v3537, %v2837
      %v3563 = vsel %vm3550, %v3538, %v2839
      %v3564 = vsel %vm3550, %v3539, %v2841
      %v3565 = vsel %vm3550, %v3540, %v2843
      %v3566 = vsel %vm3550, %v3541, %v2845
      %v3567 = vsel %vm3550, %v3542, %v2847
      %v3568 = vsel %vm3550, %v3543, %v2849
      %v3569 = vsel %vm3550, %v3544, %v2851
      %v3570 = vsel %vm3550, %v3545, %v2853
      %v3571 = vsel %vm3550, %v3546, %v2855
      %v3572 = vsel %vm3550, %v3547, %v2857
      %v3573 = vsel %vm3550, %v3548, %v2859
      %v3574 = vsel %vm3550, %v3549, %v2861
      %vm3575 = vcmask 392192
      %v3576 = vsel %vm3575, %v3551, %v2988
      %v3577 = vsel %vm3575, %v3552, %v2990
      %v3578 = vsel %vm3575, %v3553, %v2992
      %v3579 = vsel %vm3575, %v3554, %v2994
      %v3580 = vsel %vm3575, %v3555, %v2996
      %v3581 = vsel %vm3575, %v3556, %v2998
      %v3582 = vsel %vm3575, %v3557, %v3000
      %v3583 = vsel %vm3575, %v3558, %v3002
      %v3584 = vsel %vm3575, %v3559, %v3004
      %v3585 = vsel %vm3575, %v3560, %v3006
      %v3586 = vsel %vm3575, %v3561, %v3008
      %v3587 = vsel %vm3575, %v3562, %v3010
      %v3588 = vsel %vm3575, %v3563, %v3012
      %v3589 = vsel %vm3575, %v3564, %v3014
      %v3590 = vsel %vm3575, %v3565, %v3016
      %v3591 = vsel %vm3575, %v3566, %v3018
      %v3592 = vsel %vm3575, %v3567, %v3020
      %v3593 = vsel %vm3575, %v3568, %v3022
      %v3594 = vsel %vm3575, %v3569, %v3024
      %v3595 = vsel %vm3575, %v3570, %v3026
      %v3596 = vsel %vm3575, %v3571, %v3028
      %v3597 = vsel %vm3575, %v3572, %v3030
      %v3598 = vsel %vm3575, %v3573, %v3032
      %v3599 = vsel %vm3575, %v3574, %v3034
      %vm3600 = vcmask 457728
      %v3601 = vsel %vm3600, %v3576, %v3210
      %v3602 = vsel %vm3600, %v3577, %v3212
      %v3603 = vsel %vm3600, %v3578, %v3214
      %v3604 = vsel %vm3600, %v3579, %v3216
      %v3605 = vsel %vm3600, %v3580, %v3218
      %v3606 = vsel %vm3600, %v3581, %v3220
      %v3607 = vsel %vm3600, %v3582, %v3222
      %v3608 = vsel %vm3600, %v3583, %v3224
      %v3609 = vsel %vm3600, %v3584, %v3226
      %v3610 = vsel %vm3600, %v3585, %v3228
      %v3611 = vsel %vm3600, %v3586, %v3230
      %v3612 = vsel %vm3600, %v3587, %v3232
      %v3613 = vsel %vm3600, %v3588, %v3234
      %v3614 = vsel %vm3600, %v3589, %v3236
      %v3615 = vsel %vm3600, %v3590, %v3238
      %v3616 = vsel %vm3600, %v3591, %v3240
      %v3617 = vsel %vm3600, %v3592, %v3242
      %v3618 = vsel %vm3600, %v3593, %v3244
      %v3619 = vsel %vm3600, %v3594, %v3246
      %v3620 = vsel %vm3600, %v3595, %v3248
      %v3621 = vsel %vm3600, %v3596, %v3250
      %v3622 = vsel %vm3600, %v3597, %v3252
      %v3623 = vsel %vm3600, %v3598, %v3254
      %v3624 = vsel %vm3600, %v3599, %v3256
      %vm3625 = vcmask 523264
      %v3626 = vsel %vm3625, %v3601, %v3383
      %v3627 = vsel %vm3625, %v3602, %v3385
      %v3628 = vsel %vm3625, %v3603, %v3387
      %v3629 = vsel %vm3625, %v3604, %v3389
      %v3630 = vsel %vm3625, %v3605, %v3391
      %v3631 = vsel %vm3625, %v3606, %v3393
      %v3632 = vsel %vm3625, %v3607, %v3395
      %v3633 = vsel %vm3625, %v3608, %v3397
      %v3634 = vsel %vm3625, %v3609, %v3399
      %v3635 = vsel %vm3625, %v3610, %v3401
      %v3636 = vsel %vm3625, %v3611, %v3403
      %v3637 = vsel %vm3625, %v3612, %v3405
      %v3638 = vsel %vm3625, %v3613, %v3407
      %v3639 = vsel %vm3625, %v3614, %v3409
      %v3640 = vsel %vm3625, %v3615, %v3411
      %v3641 = vsel %vm3625, %v3616, %v3413
      %v3642 = vsel %vm3625, %v3617, %v3415
      %v3643 = vsel %vm3625, %v3618, %v3417
      %v3644 = vsel %vm3625, %v3619, %v3419
      %v3645 = vsel %vm3625, %v3620, %v3421
      %v3646 = vsel %vm3625, %v3621, %v3423
      %v3647 = vsel %vm3625, %v3622, %v3425
      %v3648 = vsel %vm3625, %v3623, %v3427
      %v3649 = vsel %vm3625, %v3624, %v3429
      %v3674 = vrot.slane %v3626, 4
      %v3675 = vrot.slane %v3628, 4
      %v3676 = vrot.slane %v3630, 4
      %v3677 = vrot.slane %v3632, 4
      %v3678 = vrot.slane %v3634, 4
      %v3679 = vrot.slane %v3636, 4
      %v3680 = vrot.slane %v3638, 4
      %v3681 = vrot.slane %v3640, 4
      %v3682 = vrot.slane %v3642, 4
      %v3683 = vrot.slane %v3644, 4
      %v3684 = vrot.slane %v3646, 4
      %v3685 = vrot.slane %v3648, 4
      %v3686 = vld [vmem:[%s3] sm:$0xff]
      %v3687 = vld [vmem:[%s3 + $0x8] sm:$0xff]
      %v3688 = vld [vmem:[%s3 + $0x10] sm:$0xff]
      %v3689 = vld [vmem:[%s3 + $0x18] sm:$0xff]
      %v3690 = vld [vmem:[%s3 + $0x20] sm:$0xff]
      %v3691 = vld [vmem:[%s3 + $0x28] sm:$0xff]
      %v3692 = vld [vmem:[%s3 + $0x30] sm:$0xff]
      %v3693 = vld [vmem:[%s3 + $0x38] sm:$0xff]
      %v3694 = vld [vmem:[%s3 + $0x40] sm:$0xff]
      %v3695 = vld [vmem:[%s4] sm:$0x1]
      %v3697 = vperm.slane %v3695, 0
      %3699 = vst [vmem:[#allocation1] ss:$2 sm:$0xff] %v3626
      %s3700 = scalar_lea.vmem [#allocation1], 1
      %3701 = vst [vmem:[%s3700] ss:$2 sm:$0xff] %v3674
      %s3702 = scalar_lea.vmem [#allocation1], 16
      %3703 = vst [vmem:[%s3702] ss:$2 sm:$0xff] %v3627
      %s3704 = scalar_lea.vmem [#allocation1], 17
      %3705 = vst [vmem:[%s3704] ss:$2 sm:$0xff] %v3628
      %s3706 = scalar_lea.vmem [#allocation1], 32
      %3707 = vst [vmem:[%s3706] ss:$2 sm:$0xff] %v3675
      %s3708 = scalar_lea.vmem [#allocation1], 33
      %3709 = vst [vmem:[%s3708] ss:$2 sm:$0xff] %v3629
      %s3710 = scalar_lea.vmem [#allocation1], 48
      %3711 = vst [vmem:[%s3710] ss:$2 sm:$0xff] %v3630
      %s3712 = scalar_lea.vmem [#allocation1], 49
      %3713 = vst [vmem:[%s3712] ss:$2 sm:$0xff] %v3676
      %v3714 = vld.sshfl [vmem:[#allocation1] sm:$0xff pattern:$0x75316420]
      %v3715 = vld.sshfl [vmem:[#allocation1 + $0x10] sm:$0xff pattern:$0x75316420]
      %v3716 = vld.sshfl [vmem:[#allocation1 + $0x20] sm:$0xff pattern:$0x75316420]
      %v3717 = vld.sshfl [vmem:[#allocation1 + $0x30] sm:$0xff pattern:$0x75316420]
      %3718 = vst [vmem:[#allocation1] ss:$2 sm:$0xff] %v3631
      %3719 = vst [vmem:[%s3700] ss:$2 sm:$0xff] %v3632
      %3720 = vst [vmem:[%s3702] ss:$2 sm:$0xff] %v3677
      %3721 = vst [vmem:[%s3704] ss:$2 sm:$0xff] %v3633
      %3722 = vst [vmem:[%s3706] ss:$2 sm:$0xff] %v3634
      %3723 = vst [vmem:[%s3708] ss:$2 sm:$0xff] %v3678
      %3724 = vst [vmem:[%s3710] ss:$2 sm:$0xff] %v3635
      %3725 = vst [vmem:[%s3712] ss:$2 sm:$0xff] %v3636
      %v3726 = vld.sshfl [vmem:[#allocation1] sm:$0xff pattern:$0x75316420]
      %v3727 = vld.sshfl [vmem:[#allocation1 + $0x10] sm:$0xff pattern:$0x75316420]
      %v3728 = vld.sshfl [vmem:[#allocation1 + $0x20] sm:$0xff pattern:$0x75316420]
      %v3729 = vld.sshfl [vmem:[#allocation1 + $0x30] sm:$0xff pattern:$0x75316420]
      %3730 = vst [vmem:[#allocation1] ss:$2 sm:$0xff] %v3679
      %3731 = vst [vmem:[%s3700] ss:$2 sm:$0xff] %v3637
      %3732 = vst [vmem:[%s3702] ss:$2 sm:$0xff] %v3638
      %3733 = vst [vmem:[%s3704] ss:$2 sm:$0xff] %v3680
      %3734 = vst [vmem:[%s3706] ss:$2 sm:$0xff] %v3639
      %3735 = vst [vmem:[%s3708] ss:$2 sm:$0xff] %v3640
      %3736 = vst [vmem:[%s3710] ss:$2 sm:$0xff] %v3681
      %3737 = vst [vmem:[%s3712] ss:$2 sm:$0xff] %v3641
      %v3738 = vld.sshfl [vmem:[#allocation1] sm:$0xff pattern:$0x75316420]
      %v3739 = vld.sshfl [vmem:[#allocation1 + $0x10] sm:$0xff pattern:$0x75316420]
      %v3740 = vld.sshfl [vmem:[#allocation1 + $0x20] sm:$0xff pattern:$0x75316420]
      %v3741 = vld.sshfl [vmem:[#allocation1 + $0x30] sm:$0xff pattern:$0x75316420]
      %3742 = vst [vmem:[#allocation1] ss:$2 sm:$0xff] %v3642
      %3743 = vst [vmem:[%s3700] ss:$2 sm:$0xff] %v3682
      %3744 = vst [vmem:[%s3702] ss:$2 sm:$0xff] %v3643
      %3745 = vst [vmem:[%s3704] ss:$2 sm:$0xff] %v3644
      %3746 = vst [vmem:[%s3706] ss:$2 sm:$0xff] %v3683
      %3747 = vst [vmem:[%s3708] ss:$2 sm:$0xff] %v3645
      %3748 = vst [vmem:[%s3710] ss:$2 sm:$0xff] %v3646
      %3749 = vst [vmem:[%s3712] ss:$2 sm:$0xff] %v3684
      %v3750 = vld.sshfl [vmem:[#allocation1] sm:$0xff pattern:$0x75316420]
      %v3751 = vld.sshfl [vmem:[#allocation1 + $0x10] sm:$0xff pattern:$0x75316420]
      %v3752 = vld.sshfl [vmem:[#allocation1 + $0x20] sm:$0xff pattern:$0x75316420]
      %v3753 = vld.sshfl [vmem:[#allocation1 + $0x30] sm:$0xff pattern:$0x75316420]
      %3754 = vst [vmem:[#allocation1] ss:$2 sm:$0xff] %v3647
      %3755 = vst [vmem:[%s3700] ss:$2 sm:$0xff] %v3648
      %3756 = vst [vmem:[%s3702] ss:$2 sm:$0xff] %v3685
      %3757 = vst [vmem:[%s3704] ss:$2 sm:$0xff] %v3649
      %v3758 = vld.sshfl [vmem:[#allocation1] sm:$0xff pattern:$0x75316420]
      %v3759 = vld.sshfl [vmem:[#allocation1 + $0x10] sm:$0xff pattern:$0x75316420]
      %vm3760 = vcmask 588800
      %v3761 = vsel %vm3760, %v3714, 0
      %v3763 = vsel %vm3760, %v3715, 0
      %v3765 = vsel %vm3760, %v3716, 0
      %v3767 = vsel %vm3760, %v3717, 0
      %v3769 = vsel %vm3760, %v3726, 0
      %v3771 = vsel %vm3760, %v3727, 0
      %v3773 = vsel %vm3760, %v3728, 0
      %v3775 = vsel %vm3760, %v3729, 0
      %v3777 = vsel %vm3760, %v3738, 0
      %v3779 = vsel %vm3760, %v3739, 0
      %v3781 = vsel %vm3760, %v3740, 0
      %v3783 = vsel %vm3760, %v3741, 0
      %v3785 = vsel %vm3760, %v3750, 0
      %v3787 = vsel %vm3760, %v3751, 0
      %v3789 = vsel %vm3760, %v3752, 0
      %v3791 = vsel %vm3760, %v3753, 0
      %v3793 = vsel %vm3760, %v3758, 0
      %v3795 = vsel %vm3760, %v3759, 0
      %3797 = vmatpush.msra.mxu0 0.0
      %3798 = vmatpush.msra.mxu0 0.0
      %3799 = vmatpush.msra.mxu0 0.0
      %3800 = vmatpush.msra.mxu0 0.0
      %3801 = vmatpush.msra.mxu0 0.0
      %3802 = vmatpush.msra.mxu0 0.0
      %3803 = vmatpush.msra.mxu0 0.0
      %3804 = vmatpush.msra.mxu0 %v3694
      %3805 = vmatpush.msra.mxu0 %v3693
      %3806 = vmatpush.msra.mxu0 %v3692
      %3807 = vmatpush.msra.mxu0 %v3691
      %3808 = vmatpush.msra.mxu0 %v3690
      %3809 = vmatpush.msra.mxu0 %v3689
      %3810 = vmatpush.msra.mxu0 %v3688
      %3811 = vmatpush.msra.mxu0 %v3687
      %3812 = vmatpush.msra.mxu0 %v3686
      %3813 = vmatmul.f32.gmra.mxu0 %v3761
      %v3814 = vpop.f32.mrf.mxu0
      %v3815 = vadd.f32 %v3697, %v3814
      %3816 = vmatmul.f32.gmra.mxu0 %v3763
      %v3817 = vpop.f32.mrf.mxu0
      %v3818 = vadd.f32 %v3697, %v3817
      %3819 = vmatmul.f32.gmra.mxu0 %v3765
      %v3820 = vpop.f32.mrf.mxu0
      %v3821 = vadd.f32 %v3697, %v3820
      %3822 = vmatmul.f32.gmra.mxu0 %v3767
      %v3823 = vpop.f32.mrf.mxu0
      %v3824 = vadd.f32 %v3697, %v3823
      %3825 = vmatmul.f32.gmra.mxu0 %v3769
      %v3826 = vpop.f32.mrf.mxu0
      %v3827 = vadd.f32 %v3697, %v3826
      %3828 = vmatmul.f32.gmra.mxu0 %v3771
      %v3829 = vpop.f32.mrf.mxu0
      %v3830 = vadd.f32 %v3697, %v3829
      %3831 = vmatmul.f32.gmra.mxu0 %v3773
      %v3832 = vpop.f32.mrf.mxu0
      %v3833 = vadd.f32 %v3697, %v3832
      %3834 = vmatmul.f32.gmra.mxu0 %v3775
      %v3835 = vpop.f32.mrf.mxu0
      %v3836 = vadd.f32 %v3697, %v3835
      %3837 = vmatmul.f32.gmra.mxu0 %v3777
      %v3838 = vpop.f32.mrf.mxu0
      %v3839 = vadd.f32 %v3697, %v3838
      %3840 = vmatmul.f32.gmra.mxu0 %v3779
      %v3841 = vpop.f32.mrf.mxu0
      %v3842 = vadd.f32 %v3697, %v3841
      %3843 = vmatmul.f32.gmra.mxu0 %v3781
      %v3844 = vpop.f32.mrf.mxu0
      %v3845 = vadd.f32 %v3697, %v3844
      %3846 = vmatmul.f32.gmra.mxu0 %v3783
      %v3847 = vpop.f32.mrf.mxu0
      %v3848 = vadd.f32 %v3697, %v3847
      %3849 = vmatmul.f32.gmra.mxu0 %v3785
      %v3850 = vpop.f32.mrf.mxu0
      %v3851 = vadd.f32 %v3697, %v3850
      %3852 = vmatmul.f32.gmra.mxu0 %v3787
      %v3853 = vpop.f32.mrf.mxu0
      %v3854 = vadd.f32 %v3697, %v3853
      %3855 = vmatmul.f32.gmra.mxu0 %v3789
      %v3856 = vpop.f32.mrf.mxu0
      %v3857 = vadd.f32 %v3697, %v3856
      %3858 = vmatmul.f32.gmra.mxu0 %v3791
      %v3859 = vpop.f32.mrf.mxu0
      %v3860 = vadd.f32 %v3697, %v3859
      %3861 = vmatmul.f32.gmra.mxu0 %v3793
      %v3862 = vpop.f32.mrf.mxu0
      %v3863 = vadd.f32 %v3697, %v3862
      %3864 = vmatmul.f32.gmra.mxu0 %v3795
      %v3865 = vpop.f32.mrf.mxu0
      %v3866 = vadd.f32 %v3697, %v3865
      %3867 = vdwg.mxu0
      %v3868 = vmax.f32 %v3815, 0.0
      %v3869 = vmax.f32 %v3818, 0.0
      %v3870 = vmax.f32 %v3821, 0.0
      %v3871 = vmax.f32 %v3824, 0.0
      %v3872 = vmax.f32 %v3827, 0.0
      %v3873 = vmax.f32 %v3830, 0.0
      %v3874 = vmax.f32 %v3833, 0.0
      %v3875 = vmax.f32 %v3836, 0.0
      %v3876 = vmax.f32 %v3839, 0.0
      %v3877 = vmax.f32 %v3842, 0.0
      %v3878 = vmax.f32 %v3845, 0.0
      %v3879 = vmax.f32 %v3848, 0.0
      %v3880 = vmax.f32 %v3851, 0.0
      %v3881 = vmax.f32 %v3854, 0.0
      %v3882 = vmax.f32 %v3857, 0.0
      %v3883 = vmax.f32 %v3860, 0.0
      %v3884 = vmax.f32 %v3863, 0.0
      %v3885 = vmax.f32 %v3866, 0.0
      %3886 = vxpose.xlu0.b32.start [1/16] %v3868, 128
      %3887 = vxpose.xlu0.b32.cont [2/16] %v3869, 128
      %3888 = vxpose.xlu0.b32.cont [3/16] %v3870, 128
      %3889 = vxpose.xlu0.b32.cont [4/16] %v3871, 128
      %3890 = vxpose.xlu0.b32.cont [5/16] %v3872, 128
      %3891 = vxpose.xlu0.b32.cont [6/16] %v3873, 128
      %3892 = vxpose.xlu0.b32.cont [7/16] %v3874, 128
      %3893 = vxpose.xlu0.b32.cont [8/16] %v3875, 128
      %3894 = vxpose.xlu0.b32.cont [9/16] %v3876, 128
      %3895 = vxpose.xlu0.b32.cont [10/16] %v3877, 128
      %3896 = vxpose.xlu0.b32.cont [11/16] %v3878, 128
      %3897 = vxpose.xlu0.b32.cont [12/16] %v3879, 128
      %3898 = vxpose.xlu0.b32.cont [13/16] %v3880, 128
      %3899 = vxpose.xlu0.b32.cont [14/16] %v3881, 128
      %3900 = vxpose.xlu0.b32.cont [15/16] %v3882, 128
      %3901 = vxpose.xlu0.b32.end [16/16] %v3883, 128
      %v3902 = vpop.trf.xlu0
      %v3903 = vpop.trf.xlu0
      %v3904 = vpop.trf.xlu0
      %v3905 = vpop.trf.xlu0
      %v3906 = vpop.trf.xlu0
      %v3907 = vpop.trf.xlu0
      %v3908 = vpop.trf.xlu0
      %v3909 = vpop.trf.xlu0
      %v3910 = vpop.trf.xlu0
      %v3911 = vpop.trf.xlu0
      %v3912 = vpop.trf.xlu0
      %v3913 = vpop.trf.xlu0
      %v3914 = vpop.trf.xlu0
      %v3915 = vpop.trf.xlu0
      %v3916 = vpop.trf.xlu0
      %v3917 = vpop.trf.xlu0
      %3918 = vxpose.xlu0.b32.start [1/16] %v3884, 128
      %3919 = vxpose.xlu0.b32.cont [2/16] %v3885, 128
      %3920 = vxpose.xlu0.b32.cont [3/16] 0.0, 128
      %3921 = vxpose.xlu0.b32.cont [4/16] 0.0, 128
      %3922 = vxpose.xlu0.b32.cont [5/16] 0.0, 128
      %3923 = vxpose.xlu0.b32.cont [6/16] 0.0, 128
      %3924 = vxpose.xlu0.b32.cont [7/16] 0.0, 128
      %3925 = vxpose.xlu0.b32.cont [8/16] 0.0, 128
      %3926 = vxpose.xlu0.b32.cont [9/16] 0.0, 128
      %3927 = vxpose.xlu0.b32.cont [10/16] 0.0, 128
      %3928 = vxpose.xlu0.b32.cont [11/16] 0.0, 128
      %3929 = vxpose.xlu0.b32.cont [12/16] 0.0, 128
      %3930 = vxpose.xlu0.b32.cont [13/16] 0.0, 128
      %3931 = vxpose.xlu0.b32.cont [14/16] 0.0, 128
      %3932 = vxpose.xlu0.b32.cont [15/16] 0.0, 128
      %3933 = vxpose.xlu0.b32.end [16/16] 0.0, 128
      %v3934 = vpop.trf.xlu0
      %v3935 = vpop.trf.xlu0
      %v3936 = vpop.trf.xlu0
      %v3937 = vpop.trf.xlu0
      %v3938 = vpop.trf.xlu0
      %v3939 = vpop.trf.xlu0
      %v3940 = vpop.trf.xlu0
      %v3941 = vpop.trf.xlu0
      %v3942 = vpop.trf.xlu0
      %v3943 = vpop.trf.xlu0
      %v3944 = vpop.trf.xlu0
      %v3945 = vpop.trf.xlu0
      %v3946 = vpop.trf.xlu0
      %v3947 = vpop.trf.xlu0
      %v3948 = vpop.trf.xlu0
      %v3949 = vpop.trf.xlu0
      %3950 = vst [vmem:[%s224] sm:$0xff] %v3902
      %3951 = vst.msk [vmem:[%s224 + $0x8] sm:$0xff] %vm1146, %v3934
      %p3952 = scmp.lt.s32.totalorder %s16, 1
      %s3953 = scalar_select %p3952, %s16, 1
      %s3954 = smul.addr %s3953, 2
      %s3955 = smul.addr %s3954, 8
      %s3956 = scalar_lea.vmem %s5, %s3955
      // Predicated region
      $region41: #{block_forward.1} parent=39 // pred_check
        %p3957 = pneg %p144
      $region42: #{block_forward.1} parent=39 // pred_check_branch
        %3959 = sbr.rel (%p3957) target = $region44
      $region43: #{block_forward.1} parent=39 // pred_region
        _
      $region44: #{block_forward.1} parent=39 // pred_fallthru
        _
    $region40: #{block_forward.1} parent=5 // pred_fallthru
      _
    %p3960 = scmp.le.s32.totalorder 2, %s11
    // Predicated region
    $region45: #{block_forward.1} parent=5 // pred_check
      %p3961 = pneg %p3960
    $region46: #{block_forward.1} parent=5 // pred_check_branch
      %3963 = sbr.rel (%p3961) target = $region48
    $region47: #{block_forward.1} parent=5 // pred_region
      %s3964 = ssub.s32 %s11, 2
      // Predicated region
      $region49: #{block_forward.1} parent=47 // pred_check
        %p3965 = pneg %p150
      $region50: #{block_forward.1} parent=47 // pred_check_branch
        %3967 = sbr.rel (%p3965) target = $region52
      $region51: #{block_forward.1} parent=47 // pred_region
        %p3968 = scmp.lt.s32.totalorder %s17, 1
        %s3969 = scalar_select %p3968, %s17, 1
        %s3970 = smul.addr %s3969, 2
        %s3971 = smul.addr %s3970, 8
        %s3972 = scalar_lea.vmem %s5, %s3971
      $region52: #{block_forward.1} parent=47 // pred_fallthru
        _
    $region48: #{block_forward.1} parent=5 // pred_fallthru
      _
  $region6: #{block_forward.1} parent=0 // loop_footer
    %s15 = sadd.s32 1, %s11
  $region7: #{block_forward.1} parent=0 // loop_footer_branch
    %10 = sbr.rel target = $region3
  $region8: #{block_forward.1} parent=0 // loop_exit
    _

</llo_original>
